<compile_context>
chip_gen: v7x
topology: tpu7x:2x2x1
jax: 0.10.0
libtpu: 0.0.40
codegen_flags: <defaults>
</compile_context>

<pallas_src>
import jax
import jax.numpy as jnp
from jax.experimental import pallas as pl
from jax.experimental.pallas import tpu as pltpu

B = 2             # batch
C_IN = 320        # EfficientNet-B0 blocks output channels
H = W = 8         # spatial size of the backbone feature map
C_HEAD = 1280     # enet_out_size
NUM_CLASSES = 53
OUT_ROWS = 8      # sublane-padded logits rows (first B rows are the real ones)

assert B <= OUT_ROWS


def _head_classifier_kernel(x_ref, wh_ref, bh_ref, pool_ref, wc_ref, bc_ref,
                            out_ref):
    """Whole batch in one step: conv_head(1x1)+BN+SiLU -> avg-pool -> classifier.

    x_ref   : (B*H*W, C_IN)        bf16  flattened NHWC feature maps (all images)
    wh_ref  : (C_IN, C_HEAD)       bf16  1x1 conv_head weight with BN scale folded
    bh_ref  : (1, C_HEAD)          f32   folded BatchNorm bias
    pool_ref: (OUT_ROWS, B*H*W)    bf16  block-diagonal 1/hw per-image pool matrix
    wc_ref  : (C_HEAD, NUM_CLASSES) bf16 classifier weight (unpadded)
    bc_ref  : (1, NUM_CLASSES)     f32   classifier bias
    out_ref : (OUT_ROWS, NUM_CLASSES) f32 logits; rows >= B are zero rows
    """
    # pointwise conv_head as one bf16 MXU matmul with f32 accumulation (M = B*hw)
    h = jnp.dot(x_ref[...], wh_ref[...], preferred_element_type=jnp.float32)
    h = h + bh_ref[...]                       # folded BatchNorm bias
    h = h * jax.nn.sigmoid(h)                 # SiLU in f32 (safe on v5e/v6e/v7x)

    # per-image global average pool on the MXU via the block-diagonal selector:
    # (OUT_ROWS, B*hw) @ (B*hw, C_HEAD) -> row i = mean over image i's pixels
    pooled = jnp.dot(pool_ref[...], h.astype(jnp.bfloat16),
                     preferred_element_type=jnp.float32)        # (OUT_ROWS, C_HEAD)

    # classifier linear (natural 53-wide output; single tiny store)
    out_ref[...] = jnp.dot(pooled.astype(jnp.bfloat16), wc_ref[...],
                           preferred_element_type=jnp.float32) + bc_ref[...]


def prepare_params(params, batch, hw):
    """One-time prep: fold BN scale into w_head, cast matmul operands to bf16,
    build the block-diagonal average-pool matrix (1/hw folded in)."""
    w_head = (params["w_head"] * params["bn_scale"]).astype(jnp.bfloat16)
    b_head = params["bn_bias"].astype(jnp.float32)
    w_cls = params["w_cls"].astype(jnp.bfloat16)         # (1280, 53), unpadded
    b_cls = params["b_cls"].astype(jnp.float32)

    # pool[r, p] = 1/hw if pixel p belongs to image r else 0 (rows >= batch are 0)
    row = jnp.arange(OUT_ROWS)[:, None]                   # (OUT_ROWS, 1)
    col_img = jnp.arange(batch * hw)[None, :] // hw       # (1, batch*hw)
    pool = jnp.where(row == col_img, 1.0 / hw, 0.0).astype(jnp.bfloat16)

    return {"w_head": w_head, "b_head": b_head, "pool": pool,
            "w_cls": w_cls, "b_cls": b_cls}


@jax.jit
def card_classifier_forward(x_nchw, prepped):
    """x_nchw: (B, C_IN, H, W) float32 feature map (NCHW, PyTorch convention)."""
    b, c, h, w = x_nchw.shape
    hw = h * w
    m = b * hw
    # cast first (half the transpose traffic), then NCHW -> NHWC -> (B*hw, C)
    x_flat = jnp.transpose(x_nchw.astype(jnp.bfloat16), (0, 2, 3, 1)).reshape(m, c)

    flops = (2 * m * c * C_HEAD
             + 2 * OUT_ROWS * m * C_HEAD
             + 2 * OUT_ROWS * C_HEAD * NUM_CLASSES)
    bytes_accessed = (x_flat.size * 2
                      + prepped["w_head"].size * 2
                      + prepped["b_head"].size * 4
                      + prepped["pool"].size * 2
                      + prepped["w_cls"].size * 2
                      + prepped["b_cls"].size * 4
                      + OUT_ROWS * NUM_CLASSES * 4)

    out = pl.pallas_call(
        _head_classifier_kernel,
        out_shape=jax.ShapeDtypeStruct((OUT_ROWS, NUM_CLASSES), jnp.float32),
        grid=(1,),                                        # single whole-batch step
        in_specs=[
            pl.BlockSpec((m, c), lambda i: (0, 0)),                # activations
            pl.BlockSpec((c, C_HEAD), lambda i: (0, 0)),           # conv_head weight
            pl.BlockSpec((1, C_HEAD), lambda i: (0, 0)),           # folded BN bias
            pl.BlockSpec((OUT_ROWS, m), lambda i: (0, 0)),         # pool matrix
            pl.BlockSpec((C_HEAD, NUM_CLASSES), lambda i: (0, 0)),  # classifier w
            pl.BlockSpec((1, NUM_CLASSES), lambda i: (0, 0)),      # classifier b
        ],
        out_specs=pl.BlockSpec((OUT_ROWS, NUM_CLASSES), lambda i: (0, 0)),
        compiler_params=pltpu.CompilerParams(
            dimension_semantics=("arbitrary",)),
        cost_estimate=pl.CostEstimate(
            flops=flops,
            transcendentals=m * C_HEAD,
            bytes_accessed=bytes_accessed),
    )(x_flat, prepped["w_head"], prepped["b_head"], prepped["pool"],
      prepped["w_cls"], prepped["b_cls"])

    # drop sublane padding -> (B, NUM_CLASSES)
    return out[:b]


def init_params(key):
    k1, k2, k3, k4, k5 = jax.random.split(key, 5)
    return {
        # conv_head weight: PyTorch (1280, 320, 1, 1) -> (320, 1280) for x @ W
        "w_head": jax.random.normal(k1, (C_IN, C_HEAD), jnp.float32) * 0.02,
        # folded BatchNorm parameters
        "bn_scale": 1.0 + 0.01 * jax.random.normal(k2, (1, C_HEAD), jnp.float32),
        "bn_bias": 0.01 * jax.random.normal(k3, (1, C_HEAD), jnp.float32),
        # classifier: PyTorch Linear weight (53, 1280) -> (1280, 53)
        "w_cls": jax.random.normal(k4, (C_HEAD, NUM_CLASSES), jnp.float32) * 0.02,
        "b_cls": 0.01 * jax.random.normal(k5, (1, NUM_CLASSES), jnp.float32),
    }


def _reference_forward(x_nchw, params):
    """Pure-JAX f32 reference for correctness checking."""
    b, c, h, w = x_nchw.shape
    x = jnp.transpose(x_nchw, (0, 2, 3, 1)).reshape(b, h * w, c)
    hh = jnp.einsum("bsc,cd->bsd", x, params["w_head"])
    hh = hh * params["bn_scale"] + params["bn_bias"]
    hh = hh * jax.nn.sigmoid(hh)
    pooled = jnp.mean(hh, axis=1)
    return pooled @ params["w_cls"] + params["b_cls"]


if __name__ == "__main__":
    key = jax.random.PRNGKey(0)
    k_x, k_p = jax.random.split(key)
    # Backbone feature map stand-in (see TODO above): (B, 320, 8, 8), NCHW.
    x = jax.random.normal(k_x, (B, C_IN, H, W), jnp.float32)
    params = init_params(k_p)
    prepped = prepare_params(params, B, H * W)   # one-time BN fold / bf16 / pool

    logits = card_classifier_forward(x, prepped)
    logits = jax.block_until_ready(logits)

    ref = _reference_forward(x, params)
    assert logits.shape == (B, NUM_CLASSES)
    # bf16 matmul operands -> looser tolerance vs. the f32 reference
    assert jnp.allclose(logits, ref, atol=5e-3, rtol=1e-2)

    print("KERNEL_OK")
</pallas_src>

<mosaic_0001>
module attributes {stable_mosaic.version = 11 : i64} {
  func.func @_head_classifier_kernel(%arg0: i32, %arg1: memref<128x320xbf16, #tpu.memory_space<vmem>>, %arg2: memref<320x1280xbf16, #tpu.memory_space<vmem>>, %arg3: memref<1x1280xf32, #tpu.memory_space<vmem>>, %arg4: memref<8x128xbf16, #tpu.memory_space<vmem>>, %arg5: memref<1280x53xbf16, #tpu.memory_space<vmem>>, %arg6: memref<1x53xf32, #tpu.memory_space<vmem>>, %arg7: memref<8x53xf32, #tpu.memory_space<vmem>>) attributes {dimension_semantics = [#tpu.dimension_semantics<arbitrary>], iteration_bounds = array<i64: 1>, scalar_prefetch = 0 : i64, scratch_operands = 0 : i64, tpu.core_type = #tpu.core_type<tc>, window_params = [{pipeline_mode = #tpu.pipeline_mode<synchronous>, transform_indices = @transform_0, window_bounds = array<i64: 128, 320>}, {pipeline_mode = #tpu.pipeline_mode<synchronous>, transform_indices = @transform_1, window_bounds = array<i64: 320, 1280>}, {pipeline_mode = #tpu.pipeline_mode<synchronous>, transform_indices = @transform_2, window_bounds = array<i64: 1, 1280>}, {pipeline_mode = #tpu.pipeline_mode<synchronous>, transform_indices = @transform_3, window_bounds = array<i64: 8, 128>}, {pipeline_mode = #tpu.pipeline_mode<synchronous>, transform_indices = @transform_4, window_bounds = array<i64: 1280, 53>}, {pipeline_mode = #tpu.pipeline_mode<synchronous>, transform_indices = @transform_5, window_bounds = array<i64: 1, 53>}, {pipeline_mode = #tpu.pipeline_mode<synchronous>, transform_indices = @transform_6, window_bounds = array<i64: 8, 53>}]} {
    %c0 = arith.constant 0 : index
    %c0_0 = arith.constant 0 : index
    %0 = vector.load %arg1[%c0, %c0_0] : memref<128x320xbf16, #tpu.memory_space<vmem>>, vector<128x320xbf16>
    %c0_1 = arith.constant 0 : index
    %c0_2 = arith.constant 0 : index
    %1 = vector.load %arg2[%c0_1, %c0_2] : memref<320x1280xbf16, #tpu.memory_space<vmem>>, vector<320x1280xbf16>
    %cst = arith.constant dense<0.000000e+00> : vector<128x1280xf32>
    %2 = tpu.matmul %0, %1, %cst {dimension_numbers = #tpu.dot_dimension_numbers<[1], [0], [0], [1], [0, 0, 1, 1], [], []>} : vector<128x320xbf16>, vector<320x1280xbf16>, vector<128x1280xf32> -> vector<128x1280xf32>
    %c0_3 = arith.constant 0 : index
    %c0_4 = arith.constant 0 : index
    %3 = vector.load %arg3[%c0_3, %c0_4] : memref<1x1280xf32, #tpu.memory_space<vmem>>, vector<1x1280xf32>
    %4 = vector.broadcast %3 : vector<1x1280xf32> to vector<128x1280xf32>
    %5 = arith.addf %2, %4 : vector<128x1280xf32>
    %6 = arith.negf %5 : vector<128x1280xf32>
    %7 = math.exp %6 : vector<128x1280xf32>
    %cst_5 = arith.constant 1.000000e+00 : f32
    %8 = vector.broadcast %cst_5 : f32 to vector<128x1280xf32>
    %9 = arith.addf %8, %7 : vector<128x1280xf32>
    %10 = arith.divf %8, %9 : vector<128x1280xf32>
    %11 = arith.mulf %5, %10 : vector<128x1280xf32>
    %c0_6 = arith.constant 0 : index
    %c0_7 = arith.constant 0 : index
    %12 = vector.load %arg4[%c0_6, %c0_7] : memref<8x128xbf16, #tpu.memory_space<vmem>>, vector<8x128xbf16>
    %13 = arith.truncf %11 : vector<128x1280xf32> to vector<128x1280xbf16>
    %cst_8 = arith.constant dense<0.000000e+00> : vector<8x1280xf32>
    %14 = tpu.matmul %12, %13, %cst_8 {dimension_numbers = #tpu.dot_dimension_numbers<[1], [0], [0], [1], [0, 0, 1, 1], [], []>} : vector<8x128xbf16>, vector<128x1280xbf16>, vector<8x1280xf32> -> vector<8x1280xf32>
    %15 = arith.truncf %14 : vector<8x1280xf32> to vector<8x1280xbf16>
    %c0_9 = arith.constant 0 : index
    %c0_10 = arith.constant 0 : index
    %16 = vector.load %arg5[%c0_9, %c0_10] : memref<1280x53xbf16, #tpu.memory_space<vmem>>, vector<1280x53xbf16>
    %cst_11 = arith.constant dense<0.000000e+00> : vector<8x53xf32>
    %17 = tpu.matmul %15, %16, %cst_11 {dimension_numbers = #tpu.dot_dimension_numbers<[1], [0], [0], [1], [0, 0, 1, 1], [], []>} : vector<8x1280xbf16>, vector<1280x53xbf16>, vector<8x53xf32> -> vector<8x53xf32>
    %c0_12 = arith.constant 0 : index
    %c0_13 = arith.constant 0 : index
    %18 = vector.load %arg6[%c0_12, %c0_13] : memref<1x53xf32, #tpu.memory_space<vmem>>, vector<1x53xf32>
    %19 = vector.broadcast %18 : vector<1x53xf32> to vector<8x53xf32>
    %20 = arith.addf %17, %19 : vector<8x53xf32>
    %c0_14 = arith.constant 0 : index
    %c0_15 = arith.constant 0 : index
    %21 = vector.load %arg7[%c0_14, %c0_15] : memref<8x53xf32, #tpu.memory_space<vmem>>, vector<8x53xf32>
    tpu.vector_store %arg7[%c0_14, %c0_15], %20 {strides = array<i32>} : memref<8x53xf32, #tpu.memory_space<vmem>>, vector<8x53xf32>,
    return
  }
  func.func @transform_0(%arg0: i32) -> (i32, i32) {
    %c0_i32 = arith.constant 0 : i32
    %c0_i32_0 = arith.constant 0 : i32
    %c0_i32_1 = arith.constant 0 : i32
    return %c0_i32, %c0_i32_0 : i32, i32
  }
  func.func @transform_1(%arg0: i32) -> (i32, i32) {
    %c0_i32 = arith.constant 0 : i32
    %c0_i32_0 = arith.constant 0 : i32
    %c0_i32_1 = arith.constant 0 : i32
    return %c0_i32, %c0_i32_0 : i32, i32
  }
  func.func @transform_2(%arg0: i32) -> (i32, i32) {
    %c0_i32 = arith.constant 0 : i32
    %c0_i32_0 = arith.constant 0 : i32
    %c0_i32_1 = arith.constant 0 : i32
    return %c0_i32, %c0_i32_0 : i32, i32
  }
  func.func @transform_3(%arg0: i32) -> (i32, i32) {
    %c0_i32 = arith.constant 0 : i32
    %c0_i32_0 = arith.constant 0 : i32
    %c0_i32_1 = arith.constant 0 : i32
    return %c0_i32, %c0_i32_0 : i32, i32
  }
  func.func @transform_4(%arg0: i32) -> (i32, i32) {
    %c0_i32 = arith.constant 0 : i32
    %c0_i32_0 = arith.constant 0 : i32
    %c0_i32_1 = arith.constant 0 : i32
    return %c0_i32, %c0_i32_0 : i32, i32
  }
  func.func @transform_5(%arg0: i32) -> (i32, i32) {
    %c0_i32 = arith.constant 0 : i32
    %c0_i32_0 = arith.constant 0 : i32
    %c0_i32_1 = arith.constant 0 : i32
    return %c0_i32, %c0_i32_0 : i32, i32
  }
  func.func @transform_6(%arg0: i32) -> (i32, i32) {
    %c0_i32 = arith.constant 0 : i32
    %c0_i32_0 = arith.constant 0 : i32
    %c0_i32_1 = arith.constant 0 : i32
    return %c0_i32, %c0_i32_0 : i32, i32
  }
}

</mosaic_0001>

<llo_original>
// kernel: card_classifier_forward.1
$region0: #{card_classifier_forward.1}
  #allocation0 [shape = 'u32[]', space=smem, size = 0x4, offset = 0x4, fixed_abs, tag = 'smem constant byte address 0x4 - core index']
  #allocation1 [shape = 'u32[144,128]{1,0:T(1,128)}', space=vmem, size = 0x12000, scoped, tag = 'internal scratch']
  %s0 = inlined_call_operand.vmem [shape: bf16[128,320], index: 0, kind: input, shape index: {}]
  %s1 = inlined_call_operand.hbm [shape: bf16[320,1280], index: 1, kind: input, shape index: {}]
  %s2 = inlined_call_operand.vmem [shape: f32[1,1280], index: 2, kind: input, shape index: {}]
  %s3 = inlined_call_operand.vmem [shape: bf16[8,128], index: 3, kind: input, shape index: {}]
  %s4 = inlined_call_operand.vmem [shape: bf16[1280,53], index: 4, kind: input, shape index: {}]
  %s5 = inlined_call_operand.vmem [shape: f32[1,53], index: 5, kind: input, shape index: {}]
  %s6 = inlined_call_operand.vmem [shape: f32[8,53], index: 6, kind: output, shape index: {}]
  %s7 = sld [smem:[#allocation0]]
  $region38: #{card_classifier_forward.1} parent=0
    _
  %s9 = ssub.s32 1, %s7
  %s10 = scalar_select 0, %s9, %s7
  $region1: #{card_classifier_forward.1} parent=0
    #allocation2 [shape = 'u8[819200]{0}', space=vmem, size = 0xc8000, scoped, tag = 'input window, operand 1, single buffered']
    #allocation3 [shape = 's32[1]{0}', space=sflag, size = 0x4, scoped, tag = 'scoped memory for card_classifier_forward.1']
    %11 = vsyncpa [#allocation3], 0
    // Predicated region
    $region2: #{card_classifier_forward.1} parent=1 // pred_check
      _
    $region3: #{card_classifier_forward.1} parent=1 // pred_check_branch
      %13 = sbr.rel (0) target = $region5
    $region4: #{card_classifier_forward.1} parent=1 // pred_region
      _
    $region5: #{card_classifier_forward.1} parent=1 // pred_fallthru
      _
    // Predicated region
    $region6: #{card_classifier_forward.1} parent=1 // pred_check
      _
    $region7: #{card_classifier_forward.1} parent=1 // pred_check_branch
      %15 = sbr.rel (0) target = $region9
    $region8: #{card_classifier_forward.1} parent=1 // pred_region
      %s17 = ssub.s32 25600, 25600
      %18 = vsyncadd [#allocation3], %s17
      %s19 = sshll.u32 [#allocation2], 4
      %s20 = int_to_ptr.vmem [resolvable:$true] %s19
      %25 = dma.hbm_to_vmem [thread:$0]  %s1, 25600, %s20, [#allocation3], 640, 640, 40
    $region9: #{card_classifier_forward.1} parent=1 // pred_fallthru
      _
    // Predicated region
    $region10: #{card_classifier_forward.1} parent=1 // pred_check
      _
    $region11: #{card_classifier_forward.1} parent=1 // pred_check_branch
      %27 = sbr.rel (0) target = $region13
    $region12: #{card_classifier_forward.1} parent=1 // pred_region
      _
    $region13: #{card_classifier_forward.1} parent=1 // pred_fallthru
      _
    // Predicated region
    $region14: #{card_classifier_forward.1} parent=1 // pred_check
      _
    $region15: #{card_classifier_forward.1} parent=1 // pred_check_branch
      %29 = sbr.rel (0) target = $region17
    $region16: #{card_classifier_forward.1} parent=1 // pred_region
      _
    $region17: #{card_classifier_forward.1} parent=1 // pred_fallthru
      _
    // Predicated region
    $region18: #{card_classifier_forward.1} parent=1 // pred_check
      _
    $region19: #{card_classifier_forward.1} parent=1 // pred_check_branch
      %31 = sbr.rel (0) target = $region21
    $region20: #{card_classifier_forward.1} parent=1 // pred_region
      _
    $region21: #{card_classifier_forward.1} parent=1 // pred_fallthru
      _
    // Predicated region
    $region22: #{card_classifier_forward.1} parent=1 // pred_check
      _
    $region23: #{card_classifier_forward.1} parent=1 // pred_check_branch
      %33 = sbr.rel (0) target = $region25
    $region24: #{card_classifier_forward.1} parent=1 // pred_region
      _
    $region25: #{card_classifier_forward.1} parent=1 // pred_fallthru
      _
    // Predicated region
    $region26: #{card_classifier_forward.1} parent=1 // pred_check
      _
    $region27: #{card_classifier_forward.1} parent=1 // pred_check_branch
      %35 = sbr.rel (0) target = $region29
    $region28: #{card_classifier_forward.1} parent=1 // pred_region
      %36 = dma.done [#allocation3], 25600
    $region29: #{card_classifier_forward.1} parent=1 // pred_fallthru
      _
    %v38 = vld [vmem:[%s0] sm:$0xff]
    %v39 = vld [vmem:[%s0 + $0x8] sm:$0xf]
    %v40 = vld [vmem:[%s0 + $0xc] sm:$0xff]
    %v41 = vld [vmem:[%s0 + $0x14] sm:$0xf]
    %v42 = vld [vmem:[%s0 + $0x18] sm:$0xff]
    %v43 = vld [vmem:[%s0 + $0x20] sm:$0xf]
    %v44 = vld [vmem:[%s0 + $0x24] sm:$0xff]
    %v45 = vld [vmem:[%s0 + $0x2c] sm:$0xf]
    %v46 = vld [vmem:[%s0 + $0x30] sm:$0xff]
    %v47 = vld [vmem:[%s0 + $0x38] sm:$0xf]
    %v48 = vld [vmem:[%s0 + $0x3c] sm:$0xff]
    %v49 = vld [vmem:[%s0 + $0x44] sm:$0xf]
    %v50 = vld [vmem:[%s0 + $0x48] sm:$0xff]
    %v51 = vld [vmem:[%s0 + $0x50] sm:$0xf]
    %v52 = vld [vmem:[%s0 + $0x54] sm:$0xff]
    %v53 = vld [vmem:[%s0 + $0x5c] sm:$0xf]
    %v54 = vld [vmem:[%s0 + $0x60] sm:$0xff]
    %v55 = vld [vmem:[%s0 + $0x68] sm:$0xf]
    %v56 = vld [vmem:[%s0 + $0x6c] sm:$0xff]
    %v57 = vld [vmem:[%s0 + $0x74] sm:$0xf]
    %v58 = vld [vmem:[%s0 + $0x78] sm:$0xff]
    %v59 = vld [vmem:[%s0 + $0x80] sm:$0xf]
    %v60 = vld [vmem:[%s0 + $0x84] sm:$0xff]
    %v61 = vld [vmem:[%s0 + $0x8c] sm:$0xf]
    %v62 = vld [vmem:[%s0 + $0x90] sm:$0xff]
    %v63 = vld [vmem:[%s0 + $0x98] sm:$0xf]
    %v64 = vld [vmem:[%s0 + $0x9c] sm:$0xff]
    %v65 = vld [vmem:[%s0 + $0xa4] sm:$0xf]
    %v66 = vld [vmem:[%s0 + $0xa8] sm:$0xff]
    %v67 = vld [vmem:[%s0 + $0xb0] sm:$0xf]
    %v68 = vld [vmem:[%s0 + $0xb4] sm:$0xff]
    %v69 = vld [vmem:[%s0 + $0xbc] sm:$0xf]
    %v70 = vld [vmem:[#allocation2] sm:$0xff]
    %v71 = vld [vmem:[#allocation2 + $0x8] sm:$0xff]
    %v72 = vld [vmem:[#allocation2 + $0x10] sm:$0xff]
    %v73 = vld [vmem:[#allocation2 + $0x18] sm:$0xff]
    %v74 = vld [vmem:[#allocation2 + $0x20] sm:$0xff]
    %v75 = vld [vmem:[#allocation2 + $0x28] sm:$0xff]
    %v76 = vld [vmem:[#allocation2 + $0x30] sm:$0xff]
    %v77 = vld [vmem:[#allocation2 + $0x38] sm:$0xff]
    %v78 = vld [vmem:[#allocation2 + $0x40] sm:$0xff]
    %v79 = vld [vmem:[#allocation2 + $0x48] sm:$0xff]
    %v80 = vld [vmem:[#allocation2 + $0x50] sm:$0xff]
    %v81 = vld [vmem:[#allocation2 + $0x58] sm:$0xff]
    %v82 = vld [vmem:[#allocation2 + $0x60] sm:$0xff]
    %v83 = vld [vmem:[#allocation2 + $0x68] sm:$0xff]
    %v84 = vld [vmem:[#allocation2 + $0x70] sm:$0xff]
    %v85 = vld [vmem:[#allocation2 + $0x78] sm:$0xff]
    %v86 = vld [vmem:[#allocation2 + $0x80] sm:$0xff]
    %v87 = vld [vmem:[#allocation2 + $0x88] sm:$0xff]
    %v88 = vld [vmem:[#allocation2 + $0x90] sm:$0xff]
    %v89 = vld [vmem:[#allocation2 + $0x98] sm:$0xff]
    %v90 = vld [vmem:[#allocation2 + $0xa0] sm:$0xff]
    %v91 = vld [vmem:[#allocation2 + $0xa8] sm:$0xff]
    %v92 = vld [vmem:[#allocation2 + $0xb0] sm:$0xff]
    %v93 = vld [vmem:[#allocation2 + $0xb8] sm:$0xff]
    %v94 = vld [vmem:[#allocation2 + $0xc0] sm:$0xff]
    %v95 = vld [vmem:[#allocation2 + $0xc8] sm:$0xff]
    %v96 = vld [vmem:[#allocation2 + $0xd0] sm:$0xff]
    %v97 = vld [vmem:[#allocation2 + $0xd8] sm:$0xff]
    %v98 = vld [vmem:[#allocation2 + $0xe0] sm:$0xff]
    %v99 = vld [vmem:[#allocation2 + $0xe8] sm:$0xff]
    %v100 = vld [vmem:[#allocation2 + $0xf0] sm:$0xff]
    %v101 = vld [vmem:[#allocation2 + $0xf8] sm:$0xff]
    %v102 = vld [vmem:[#allocation2 + $0x100] sm:$0xff]
    %v103 = vld [vmem:[#allocation2 + $0x108] sm:$0xff]
    %v104 = vld [vmem:[#allocation2 + $0x110] sm:$0xff]
    %v105 = vld [vmem:[#allocation2 + $0x118] sm:$0xff]
    %v106 = vld [vmem:[#allocation2 + $0x120] sm:$0xff]
    %v107 = vld [vmem:[#allocation2 + $0x128] sm:$0xff]
    %v108 = vld [vmem:[#allocation2 + $0x130] sm:$0xff]
    %v109 = vld [vmem:[#allocation2 + $0x138] sm:$0xff]
    %v110 = vld [vmem:[#allocation2 + $0x140] sm:$0xff]
    %v111 = vld [vmem:[#allocation2 + $0x148] sm:$0xff]
    %v112 = vld [vmem:[#allocation2 + $0x150] sm:$0xff]
    %v113 = vld [vmem:[#allocation2 + $0x158] sm:$0xff]
    %v114 = vld [vmem:[#allocation2 + $0x160] sm:$0xff]
    %v115 = vld [vmem:[#allocation2 + $0x168] sm:$0xff]
    %v116 = vld [vmem:[#allocation2 + $0x170] sm:$0xff]
    %v117 = vld [vmem:[#allocation2 + $0x178] sm:$0xff]
    %v118 = vld [vmem:[#allocation2 + $0x180] sm:$0xff]
    %v119 = vld [vmem:[#allocation2 + $0x188] sm:$0xff]
    %v120 = vld [vmem:[#allocation2 + $0x190] sm:$0xff]
    %v121 = vld [vmem:[#allocation2 + $0x198] sm:$0xff]
    %v122 = vld [vmem:[#allocation2 + $0x1a0] sm:$0xff]
    %v123 = vld [vmem:[#allocation2 + $0x1a8] sm:$0xff]
    %v124 = vld [vmem:[#allocation2 + $0x1b0] sm:$0xff]
    %v125 = vld [vmem:[#allocation2 + $0x1b8] sm:$0xff]
    %v126 = vld [vmem:[#allocation2 + $0x1c0] sm:$0xff]
    %v127 = vld [vmem:[#allocation2 + $0x1c8] sm:$0xff]
    %v128 = vld [vmem:[#allocation2 + $0x1d0] sm:$0xff]
    %v129 = vld [vmem:[#allocation2 + $0x1d8] sm:$0xff]
    %v130 = vld [vmem:[#allocation2 + $0x1e0] sm:$0xff]
    %v131 = vld [vmem:[#allocation2 + $0x1e8] sm:$0xff]
    %v132 = vld [vmem:[#allocation2 + $0x1f0] sm:$0xff]
    %v133 = vld [vmem:[#allocation2 + $0x1f8] sm:$0xff]
    %v134 = vld [vmem:[#allocation2 + $0x200] sm:$0xff]
    %v135 = vld [vmem:[#allocation2 + $0x208] sm:$0xff]
    %v136 = vld [vmem:[#allocation2 + $0x210] sm:$0xff]
    %v137 = vld [vmem:[#allocation2 + $0x218] sm:$0xff]
    %v138 = vld [vmem:[#allocation2 + $0x220] sm:$0xff]
    %v139 = vld [vmem:[#allocation2 + $0x228] sm:$0xff]
    %v140 = vld [vmem:[#allocation2 + $0x230] sm:$0xff]
    %v141 = vld [vmem:[#allocation2 + $0x238] sm:$0xff]
    %v142 = vld [vmem:[#allocation2 + $0x240] sm:$0xff]
    %v143 = vld [vmem:[#allocation2 + $0x248] sm:$0xff]
    %v144 = vld [vmem:[#allocation2 + $0x250] sm:$0xff]
    %v145 = vld [vmem:[#allocation2 + $0x258] sm:$0xff]
    %v146 = vld [vmem:[#allocation2 + $0x260] sm:$0xff]
    %v147 = vld [vmem:[#allocation2 + $0x268] sm:$0xff]
    %v148 = vld [vmem:[#allocation2 + $0x270] sm:$0xff]
    %v149 = vld [vmem:[#allocation2 + $0x278] sm:$0xff]
    %v150 = vld [vmem:[#allocation2 + $0x280] sm:$0xff]
    %v151 = vld [vmem:[#allocation2 + $0x288] sm:$0xff]
    %v152 = vld [vmem:[#allocation2 + $0x290] sm:$0xff]
    %v153 = vld [vmem:[#allocation2 + $0x298] sm:$0xff]
    %v154 = vld [vmem:[#allocation2 + $0x2a0] sm:$0xff]
    %v155 = vld [vmem:[#allocation2 + $0x2a8] sm:$0xff]
    %v156 = vld [vmem:[#allocation2 + $0x2b0] sm:$0xff]
    %v157 = vld [vmem:[#allocation2 + $0x2b8] sm:$0xff]
    %v158 = vld [vmem:[#allocation2 + $0x2c0] sm:$0xff]
    %v159 = vld [vmem:[#allocation2 + $0x2c8] sm:$0xff]
    %v160 = vld [vmem:[#allocation2 + $0x2d0] sm:$0xff]
    %v161 = vld [vmem:[#allocation2 + $0x2d8] sm:$0xff]
    %v162 = vld [vmem:[#allocation2 + $0x2e0] sm:$0xff]
    %v163 = vld [vmem:[#allocation2 + $0x2e8] sm:$0xff]
    %v164 = vld [vmem:[#allocation2 + $0x2f0] sm:$0xff]
    %v165 = vld [vmem:[#allocation2 + $0x2f8] sm:$0xff]
    %v166 = vld [vmem:[#allocation2 + $0x300] sm:$0xff]
    %v167 = vld [vmem:[#allocation2 + $0x308] sm:$0xff]
    %v168 = vld [vmem:[#allocation2 + $0x310] sm:$0xff]
    %v169 = vld [vmem:[#allocation2 + $0x318] sm:$0xff]
    %v170 = vld [vmem:[#allocation2 + $0x320] sm:$0xff]
    %v171 = vld [vmem:[#allocation2 + $0x328] sm:$0xff]
    %v172 = vld [vmem:[#allocation2 + $0x330] sm:$0xff]
    %v173 = vld [vmem:[#allocation2 + $0x338] sm:$0xff]
    %v174 = vld [vmem:[#allocation2 + $0x340] sm:$0xff]
    %v175 = vld [vmem:[#allocation2 + $0x348] sm:$0xff]
    %v176 = vld [vmem:[#allocation2 + $0x350] sm:$0xff]
    %v177 = vld [vmem:[#allocation2 + $0x358] sm:$0xff]
    %v178 = vld [vmem:[#allocation2 + $0x360] sm:$0xff]
    %v179 = vld [vmem:[#allocation2 + $0x368] sm:$0xff]
    %v180 = vld [vmem:[#allocation2 + $0x370] sm:$0xff]
    %v181 = vld [vmem:[#allocation2 + $0x378] sm:$0xff]
    %v182 = vld [vmem:[#allocation2 + $0x380] sm:$0xff]
    %v183 = vld [vmem:[#allocation2 + $0x388] sm:$0xff]
    %v184 = vld [vmem:[#allocation2 + $0x390] sm:$0xff]
    %v185 = vld [vmem:[#allocation2 + $0x398] sm:$0xff]
    %v186 = vld [vmem:[#allocation2 + $0x3a0] sm:$0xff]
    %v187 = vld [vmem:[#allocation2 + $0x3a8] sm:$0xff]
    %v188 = vld [vmem:[#allocation2 + $0x3b0] sm:$0xff]
    %v189 = vld [vmem:[#allocation2 + $0x3b8] sm:$0xff]
    %v190 = vld [vmem:[#allocation2 + $0x3c0] sm:$0xff]
    %v191 = vld [vmem:[#allocation2 + $0x3c8] sm:$0xff]
    %v192 = vld [vmem:[#allocation2 + $0x3d0] sm:$0xff]
    %v193 = vld [vmem:[#allocation2 + $0x3d8] sm:$0xff]
    %v194 = vld [vmem:[#allocation2 + $0x3e0] sm:$0xff]
    %v195 = vld [vmem:[#allocation2 + $0x3e8] sm:$0xff]
    %v196 = vld [vmem:[#allocation2 + $0x3f0] sm:$0xff]
    %v197 = vld [vmem:[#allocation2 + $0x3f8] sm:$0xff]
    %v198 = vld [vmem:[#allocation2 + $0x400] sm:$0xff]
    %v199 = vld [vmem:[#allocation2 + $0x408] sm:$0xff]
    %v200 = vld [vmem:[#allocation2 + $0x410] sm:$0xff]
    %v201 = vld [vmem:[#allocation2 + $0x418] sm:$0xff]
    %v202 = vld [vmem:[#allocation2 + $0x420] sm:$0xff]
    %v203 = vld [vmem:[#allocation2 + $0x428] sm:$0xff]
    %v204 = vld [vmem:[#allocation2 + $0x430] sm:$0xff]
    %v205 = vld [vmem:[#allocation2 + $0x438] sm:$0xff]
    %v206 = vld [vmem:[#allocation2 + $0x440] sm:$0xff]
    %v207 = vld [vmem:[#allocation2 + $0x448] sm:$0xff]
    %v208 = vld [vmem:[#allocation2 + $0x450] sm:$0xff]
    %v209 = vld [vmem:[#allocation2 + $0x458] sm:$0xff]
    %v210 = vld [vmem:[#allocation2 + $0x460] sm:$0xff]
    %v211 = vld [vmem:[#allocation2 + $0x468] sm:$0xff]
    %v212 = vld [vmem:[#allocation2 + $0x470] sm:$0xff]
    %v213 = vld [vmem:[#allocation2 + $0x478] sm:$0xff]
    %v214 = vld [vmem:[#allocation2 + $0x480] sm:$0xff]
    %v215 = vld [vmem:[#allocation2 + $0x488] sm:$0xff]
    %v216 = vld [vmem:[#allocation2 + $0x490] sm:$0xff]
    %v217 = vld [vmem:[#allocation2 + $0x498] sm:$0xff]
    %v218 = vld [vmem:[#allocation2 + $0x4a0] sm:$0xff]
    %v219 = vld [vmem:[#allocation2 + $0x4a8] sm:$0xff]
    %v220 = vld [vmem:[#allocation2 + $0x4b0] sm:$0xff]
    %v221 = vld [vmem:[#allocation2 + $0x4b8] sm:$0xff]
    %v222 = vld [vmem:[#allocation2 + $0x4c0] sm:$0xff]
    %v223 = vld [vmem:[#allocation2 + $0x4c8] sm:$0xff]
    %v224 = vld [vmem:[#allocation2 + $0x4d0] sm:$0xff]
    %v225 = vld [vmem:[#allocation2 + $0x4d8] sm:$0xff]
    %v226 = vld [vmem:[#allocation2 + $0x4e0] sm:$0xff]
    %v227 = vld [vmem:[#allocation2 + $0x4e8] sm:$0xff]
    %v228 = vld [vmem:[#allocation2 + $0x4f0] sm:$0xff]
    %v229 = vld [vmem:[#allocation2 + $0x4f8] sm:$0xff]
    %v230 = vld [vmem:[#allocation2 + $0x500] sm:$0xff]
    %v231 = vld [vmem:[#allocation2 + $0x508] sm:$0xff]
    %v232 = vld [vmem:[#allocation2 + $0x510] sm:$0xff]
    %v233 = vld [vmem:[#allocation2 + $0x518] sm:$0xff]
    %v234 = vld [vmem:[#allocation2 + $0x520] sm:$0xff]
    %v235 = vld [vmem:[#allocation2 + $0x528] sm:$0xff]
    %v236 = vld [vmem:[#allocation2 + $0x530] sm:$0xff]
    %v237 = vld [vmem:[#allocation2 + $0x538] sm:$0xff]
    %v238 = vld [vmem:[#allocation2 + $0x540] sm:$0xff]
    %v239 = vld [vmem:[#allocation2 + $0x548] sm:$0xff]
    %v240 = vld [vmem:[#allocation2 + $0x550] sm:$0xff]
    %v241 = vld [vmem:[#allocation2 + $0x558] sm:$0xff]
    %v242 = vld [vmem:[#allocation2 + $0x560] sm:$0xff]
    %v243 = vld [vmem:[#allocation2 + $0x568] sm:$0xff]
    %v244 = vld [vmem:[#allocation2 + $0x570] sm:$0xff]
    %v245 = vld [vmem:[#allocation2 + $0x578] sm:$0xff]
    %v246 = vld [vmem:[#allocation2 + $0x580] sm:$0xff]
    %v247 = vld [vmem:[#allocation2 + $0x588] sm:$0xff]
    %v248 = vld [vmem:[#allocation2 + $0x590] sm:$0xff]
    %v249 = vld [vmem:[#allocation2 + $0x598] sm:$0xff]
    %v250 = vld [vmem:[#allocation2 + $0x5a0] sm:$0xff]
    %v251 = vld [vmem:[#allocation2 + $0x5a8] sm:$0xff]
    %v252 = vld [vmem:[#allocation2 + $0x5b0] sm:$0xff]
    %v253 = vld [vmem:[#allocation2 + $0x5b8] sm:$0xff]
    %v254 = vld [vmem:[#allocation2 + $0x5c0] sm:$0xff]
    %v255 = vld [vmem:[#allocation2 + $0x5c8] sm:$0xff]
    %v256 = vld [vmem:[#allocation2 + $0x5d0] sm:$0xff]
    %v257 = vld [vmem:[#allocation2 + $0x5d8] sm:$0xff]
    %v258 = vld [vmem:[#allocation2 + $0x5e0] sm:$0xff]
    %v259 = vld [vmem:[#allocation2 + $0x5e8] sm:$0xff]
    %v260 = vld [vmem:[#allocation2 + $0x5f0] sm:$0xff]
    %v261 = vld [vmem:[#allocation2 + $0x5f8] sm:$0xff]
    %v262 = vld [vmem:[#allocation2 + $0x600] sm:$0xff]
    %v263 = vld [vmem:[#allocation2 + $0x608] sm:$0xff]
    %v264 = vld [vmem:[#allocation2 + $0x610] sm:$0xff]
    %v265 = vld [vmem:[#allocation2 + $0x618] sm:$0xff]
    %v266 = vld [vmem:[#allocation2 + $0x620] sm:$0xff]
    %v267 = vld [vmem:[#allocation2 + $0x628] sm:$0xff]
    %v268 = vld [vmem:[#allocation2 + $0x630] sm:$0xff]
    %v269 = vld [vmem:[#allocation2 + $0x638] sm:$0xff]
    %v270 = vld [vmem:[%s2] sm:$0xff]
    %v271 = vld [vmem:[%s2 + $0x8] sm:$0x3]
    %v274 = vlaneseq
    %v275 = vshrl.u32 %v274, 7
    %v276 = vsub.s32 0, %v275
    %v277 = vrot.slane %v270, %v276
    %v278 = vlaneseq
    %v279 = vshrl.u32 %v278, 7
    %v280 = vsub.s32 1, %v279
    %v281 = vrot.slane %v270, %v280
    %v282 = vlaneseq
    %v283 = vshrl.u32 %v282, 7
    %v284 = vsub.s32 2, %v283
    %v285 = vrot.slane %v270, %v284
    %v286 = vlaneseq
    %v287 = vshrl.u32 %v286, 7
    %v288 = vsub.s32 3, %v287
    %v289 = vrot.slane %v270, %v288
    %v290 = vlaneseq
    %v291 = vshrl.u32 %v290, 7
    %v292 = vsub.s32 4, %v291
    %v293 = vrot.slane %v270, %v292
    %v294 = vlaneseq
    %v295 = vshrl.u32 %v294, 7
    %v296 = vsub.s32 5, %v295
    %v297 = vrot.slane %v270, %v296
    %v298 = vlaneseq
    %v299 = vshrl.u32 %v298, 7
    %v300 = vsub.s32 6, %v299
    %v301 = vrot.slane %v270, %v300
    %v302 = vlaneseq
    %v303 = vshrl.u32 %v302, 7
    %v304 = vsub.s32 7, %v303
    %v305 = vrot.slane %v270, %v304
    %v306 = vlaneseq
    %v307 = vshrl.u32 %v306, 7
    %v308 = vsub.s32 0, %v307
    %v309 = vrot.slane %v271, %v308
    %v310 = vlaneseq
    %v311 = vshrl.u32 %v310, 7
    %v312 = vsub.s32 1, %v311
    %v313 = vrot.slane %v271, %v312
    %v356 = vunpack.c.l.b16 %v38
    %v357 = vunpack.c.h.b16 %v38
    %v358 = vunpack.c.l.b16 %v39
    %v359 = vunpack.c.l.b16 %v40
    %v360 = vunpack.c.h.b16 %v40
    %v361 = vunpack.c.l.b16 %v41
    %v362 = vunpack.c.l.b16 %v42
    %v363 = vunpack.c.h.b16 %v42
    %v364 = vunpack.c.l.b16 %v43
    %v365 = vunpack.c.l.b16 %v44
    %v366 = vunpack.c.h.b16 %v44
    %v367 = vunpack.c.l.b16 %v45
    %v368 = vunpack.c.l.b16 %v46
    %v369 = vunpack.c.h.b16 %v46
    %v370 = vunpack.c.l.b16 %v47
    %v371 = vunpack.c.l.b16 %v48
    %v372 = vunpack.c.h.b16 %v48
    %v373 = vunpack.c.l.b16 %v49
    %v374 = vunpack.c.l.b16 %v50
    %v375 = vunpack.c.h.b16 %v50
    %v376 = vunpack.c.l.b16 %v51
    %v377 = vunpack.c.l.b16 %v52
    %v378 = vunpack.c.h.b16 %v52
    %v379 = vunpack.c.l.b16 %v53
    %v380 = vunpack.c.l.b16 %v54
    %v381 = vunpack.c.h.b16 %v54
    %v382 = vunpack.c.l.b16 %v55
    %v383 = vunpack.c.l.b16 %v56
    %v384 = vunpack.c.h.b16 %v56
    %v385 = vunpack.c.l.b16 %v57
    %v386 = vunpack.c.l.b16 %v58
    %v387 = vunpack.c.h.b16 %v58
    %v388 = vunpack.c.l.b16 %v59
    %v389 = vunpack.c.l.b16 %v60
    %v390 = vunpack.c.h.b16 %v60
    %v391 = vunpack.c.l.b16 %v61
    %v392 = vunpack.c.l.b16 %v62
    %v393 = vunpack.c.h.b16 %v62
    %v394 = vunpack.c.l.b16 %v63
    %v395 = vunpack.c.l.b16 %v64
    %v396 = vunpack.c.h.b16 %v64
    %v397 = vunpack.c.l.b16 %v65
    %v398 = vunpack.c.l.b16 %v66
    %v399 = vunpack.c.h.b16 %v66
    %v400 = vunpack.c.l.b16 %v67
    %v401 = vunpack.c.l.b16 %v68
    %v402 = vunpack.c.h.b16 %v68
    %v403 = vunpack.c.l.b16 %v69
    %v404 = vpack.c.b16 %v359, %v356
    %v405 = vpack.c.b16 %v360, %v357
    %v406 = vpack.c.b16 %v361, %v358
    %v407 = vpack.c.b16 %v365, %v362
    %v408 = vpack.c.b16 %v366, %v363
    %v409 = vpack.c.b16 %v367, %v364
    %v410 = vpack.c.b16 %v371, %v368
    %v411 = vpack.c.b16 %v372, %v369
    %v412 = vpack.c.b16 %v373, %v370
    %v413 = vpack.c.b16 %v377, %v374
    %v414 = vpack.c.b16 %v378, %v375
    %v415 = vpack.c.b16 %v379, %v376
    %v416 = vpack.c.b16 %v383, %v380
    %v417 = vpack.c.b16 %v384, %v381
    %v418 = vpack.c.b16 %v385, %v382
    %v419 = vpack.c.b16 %v389, %v386
    %v420 = vpack.c.b16 %v390, %v387
    %v421 = vpack.c.b16 %v391, %v388
    %v422 = vpack.c.b16 %v395, %v392
    %v423 = vpack.c.b16 %v396, %v393
    %v424 = vpack.c.b16 %v397, %v394
    %v425 = vpack.c.b16 %v401, %v398
    %v426 = vpack.c.b16 %v402, %v399
    %v427 = vpack.c.b16 %v403, %v400
    %v644 = vunpack.c.l.b16 %v70
    %v645 = vunpack.c.h.b16 %v70
    %v646 = vunpack.c.l.b16 %v71
    %v647 = vunpack.c.h.b16 %v71
    %v648 = vunpack.c.l.b16 %v72
    %v649 = vunpack.c.h.b16 %v72
    %v650 = vunpack.c.l.b16 %v73
    %v651 = vunpack.c.h.b16 %v73
    %v652 = vunpack.c.l.b16 %v74
    %v653 = vunpack.c.h.b16 %v74
    %v654 = vunpack.c.l.b16 %v75
    %v655 = vunpack.c.h.b16 %v75
    %v656 = vunpack.c.l.b16 %v76
    %v657 = vunpack.c.h.b16 %v76
    %v658 = vunpack.c.l.b16 %v77
    %v659 = vunpack.c.h.b16 %v77
    %v660 = vunpack.c.l.b16 %v78
    %v661 = vunpack.c.h.b16 %v78
    %v662 = vunpack.c.l.b16 %v79
    %v663 = vunpack.c.h.b16 %v79
    %v664 = vunpack.c.l.b16 %v80
    %v665 = vunpack.c.h.b16 %v80
    %v666 = vunpack.c.l.b16 %v81
    %v667 = vunpack.c.h.b16 %v81
    %v668 = vunpack.c.l.b16 %v82
    %v669 = vunpack.c.h.b16 %v82
    %v670 = vunpack.c.l.b16 %v83
    %v671 = vunpack.c.h.b16 %v83
    %v672 = vunpack.c.l.b16 %v84
    %v673 = vunpack.c.h.b16 %v84
    %v674 = vunpack.c.l.b16 %v85
    %v675 = vunpack.c.h.b16 %v85
    %v676 = vunpack.c.l.b16 %v86
    %v677 = vunpack.c.h.b16 %v86
    %v678 = vunpack.c.l.b16 %v87
    %v679 = vunpack.c.h.b16 %v87
    %v680 = vunpack.c.l.b16 %v88
    %v681 = vunpack.c.h.b16 %v88
    %v682 = vunpack.c.l.b16 %v89
    %v683 = vunpack.c.h.b16 %v89
    %v684 = vunpack.c.l.b16 %v90
    %v685 = vunpack.c.h.b16 %v90
    %v686 = vunpack.c.l.b16 %v91
    %v687 = vunpack.c.h.b16 %v91
    %v688 = vunpack.c.l.b16 %v92
    %v689 = vunpack.c.h.b16 %v92
    %v690 = vunpack.c.l.b16 %v93
    %v691 = vunpack.c.h.b16 %v93
    %v692 = vunpack.c.l.b16 %v94
    %v693 = vunpack.c.h.b16 %v94
    %v694 = vunpack.c.l.b16 %v95
    %v695 = vunpack.c.h.b16 %v95
    %v696 = vunpack.c.l.b16 %v96
    %v697 = vunpack.c.h.b16 %v96
    %v698 = vunpack.c.l.b16 %v97
    %v699 = vunpack.c.h.b16 %v97
    %v700 = vunpack.c.l.b16 %v98
    %v701 = vunpack.c.h.b16 %v98
    %v702 = vunpack.c.l.b16 %v99
    %v703 = vunpack.c.h.b16 %v99
    %v704 = vunpack.c.l.b16 %v100
    %v705 = vunpack.c.h.b16 %v100
    %v706 = vunpack.c.l.b16 %v101
    %v707 = vunpack.c.h.b16 %v101
    %v708 = vunpack.c.l.b16 %v102
    %v709 = vunpack.c.h.b16 %v102
    %v710 = vunpack.c.l.b16 %v103
    %v711 = vunpack.c.h.b16 %v103
    %v712 = vunpack.c.l.b16 %v104
    %v713 = vunpack.c.h.b16 %v104
    %v714 = vunpack.c.l.b16 %v105
    %v715 = vunpack.c.h.b16 %v105
    %v716 = vunpack.c.l.b16 %v106
    %v717 = vunpack.c.h.b16 %v106
    %v718 = vunpack.c.l.b16 %v107
    %v719 = vunpack.c.h.b16 %v107
    %v720 = vunpack.c.l.b16 %v108
    %v721 = vunpack.c.h.b16 %v108
    %v722 = vunpack.c.l.b16 %v109
    %v723 = vunpack.c.h.b16 %v109
    %v724 = vunpack.c.l.b16 %v110
    %v725 = vunpack.c.h.b16 %v110
    %v726 = vunpack.c.l.b16 %v111
    %v727 = vunpack.c.h.b16 %v111
    %v728 = vunpack.c.l.b16 %v112
    %v729 = vunpack.c.h.b16 %v112
    %v730 = vunpack.c.l.b16 %v113
    %v731 = vunpack.c.h.b16 %v113
    %v732 = vunpack.c.l.b16 %v114
    %v733 = vunpack.c.h.b16 %v114
    %v734 = vunpack.c.l.b16 %v115
    %v735 = vunpack.c.h.b16 %v115
    %v736 = vunpack.c.l.b16 %v116
    %v737 = vunpack.c.h.b16 %v116
    %v738 = vunpack.c.l.b16 %v117
    %v739 = vunpack.c.h.b16 %v117
    %v740 = vunpack.c.l.b16 %v118
    %v741 = vunpack.c.h.b16 %v118
    %v742 = vunpack.c.l.b16 %v119
    %v743 = vunpack.c.h.b16 %v119
    %v744 = vunpack.c.l.b16 %v120
    %v745 = vunpack.c.h.b16 %v120
    %v746 = vunpack.c.l.b16 %v121
    %v747 = vunpack.c.h.b16 %v121
    %v748 = vunpack.c.l.b16 %v122
    %v749 = vunpack.c.h.b16 %v122
    %v750 = vunpack.c.l.b16 %v123
    %v751 = vunpack.c.h.b16 %v123
    %v752 = vunpack.c.l.b16 %v124
    %v753 = vunpack.c.h.b16 %v124
    %v754 = vunpack.c.l.b16 %v125
    %v755 = vunpack.c.h.b16 %v125
    %v756 = vunpack.c.l.b16 %v126
    %v757 = vunpack.c.h.b16 %v126
    %v758 = vunpack.c.l.b16 %v127
    %v759 = vunpack.c.h.b16 %v127
    %v760 = vunpack.c.l.b16 %v128
    %v761 = vunpack.c.h.b16 %v128
    %v762 = vunpack.c.l.b16 %v129
    %v763 = vunpack.c.h.b16 %v129
    %v764 = vunpack.c.l.b16 %v130
    %v765 = vunpack.c.h.b16 %v130
    %v766 = vunpack.c.l.b16 %v131
    %v767 = vunpack.c.h.b16 %v131
    %v768 = vunpack.c.l.b16 %v132
    %v769 = vunpack.c.h.b16 %v132
    %v770 = vunpack.c.l.b16 %v133
    %v771 = vunpack.c.h.b16 %v133
    %v772 = vunpack.c.l.b16 %v134
    %v773 = vunpack.c.h.b16 %v134
    %v774 = vunpack.c.l.b16 %v135
    %v775 = vunpack.c.h.b16 %v135
    %v776 = vunpack.c.l.b16 %v136
    %v777 = vunpack.c.h.b16 %v136
    %v778 = vunpack.c.l.b16 %v137
    %v779 = vunpack.c.h.b16 %v137
    %v780 = vunpack.c.l.b16 %v138
    %v781 = vunpack.c.h.b16 %v138
    %v782 = vunpack.c.l.b16 %v139
    %v783 = vunpack.c.h.b16 %v139
    %v784 = vunpack.c.l.b16 %v140
    %v785 = vunpack.c.h.b16 %v140
    %v786 = vunpack.c.l.b16 %v141
    %v787 = vunpack.c.h.b16 %v141
    %v788 = vunpack.c.l.b16 %v142
    %v789 = vunpack.c.h.b16 %v142
    %v790 = vunpack.c.l.b16 %v143
    %v791 = vunpack.c.h.b16 %v143
    %v792 = vunpack.c.l.b16 %v144
    %v793 = vunpack.c.h.b16 %v144
    %v794 = vunpack.c.l.b16 %v145
    %v795 = vunpack.c.h.b16 %v145
    %v796 = vunpack.c.l.b16 %v146
    %v797 = vunpack.c.h.b16 %v146
    %v798 = vunpack.c.l.b16 %v147
    %v799 = vunpack.c.h.b16 %v147
    %v800 = vunpack.c.l.b16 %v148
    %v801 = vunpack.c.h.b16 %v148
    %v802 = vunpack.c.l.b16 %v149
    %v803 = vunpack.c.h.b16 %v149
    %v804 = vunpack.c.l.b16 %v150
    %v805 = vunpack.c.h.b16 %v150
    %v806 = vunpack.c.l.b16 %v151
    %v807 = vunpack.c.h.b16 %v151
    %v808 = vunpack.c.l.b16 %v152
    %v809 = vunpack.c.h.b16 %v152
    %v810 = vunpack.c.l.b16 %v153
    %v811 = vunpack.c.h.b16 %v153
    %v812 = vunpack.c.l.b16 %v154
    %v813 = vunpack.c.h.b16 %v154
    %v814 = vunpack.c.l.b16 %v155
    %v815 = vunpack.c.h.b16 %v155
    %v816 = vunpack.c.l.b16 %v156
    %v817 = vunpack.c.h.b16 %v156
    %v818 = vunpack.c.l.b16 %v157
    %v819 = vunpack.c.h.b16 %v157
    %v820 = vunpack.c.l.b16 %v158
    %v821 = vunpack.c.h.b16 %v158
    %v822 = vunpack.c.l.b16 %v159
    %v823 = vunpack.c.h.b16 %v159
    %v824 = vunpack.c.l.b16 %v160
    %v825 = vunpack.c.h.b16 %v160
    %v826 = vunpack.c.l.b16 %v161
    %v827 = vunpack.c.h.b16 %v161
    %v828 = vunpack.c.l.b16 %v162
    %v829 = vunpack.c.h.b16 %v162
    %v830 = vunpack.c.l.b16 %v163
    %v831 = vunpack.c.h.b16 %v163
    %v832 = vunpack.c.l.b16 %v164
    %v833 = vunpack.c.h.b16 %v164
    %v834 = vunpack.c.l.b16 %v165
    %v835 = vunpack.c.h.b16 %v165
    %v836 = vunpack.c.l.b16 %v166
    %v837 = vunpack.c.h.b16 %v166
    %v838 = vunpack.c.l.b16 %v167
    %v839 = vunpack.c.h.b16 %v167
    %v840 = vunpack.c.l.b16 %v168
    %v841 = vunpack.c.h.b16 %v168
    %v842 = vunpack.c.l.b16 %v169
    %v843 = vunpack.c.h.b16 %v169
    %v844 = vunpack.c.l.b16 %v170
    %v845 = vunpack.c.h.b16 %v170
    %v846 = vunpack.c.l.b16 %v171
    %v847 = vunpack.c.h.b16 %v171
    %v848 = vunpack.c.l.b16 %v172
    %v849 = vunpack.c.h.b16 %v172
    %v850 = vunpack.c.l.b16 %v173
    %v851 = vunpack.c.h.b16 %v173
    %v852 = vunpack.c.l.b16 %v174
    %v853 = vunpack.c.h.b16 %v174
    %v854 = vunpack.c.l.b16 %v175
    %v855 = vunpack.c.h.b16 %v175
    %v856 = vunpack.c.l.b16 %v176
    %v857 = vunpack.c.h.b16 %v176
    %v858 = vunpack.c.l.b16 %v177
    %v859 = vunpack.c.h.b16 %v177
    %v860 = vunpack.c.l.b16 %v178
    %v861 = vunpack.c.h.b16 %v178
    %v862 = vunpack.c.l.b16 %v179
    %v863 = vunpack.c.h.b16 %v179
    %v864 = vunpack.c.l.b16 %v180
    %v865 = vunpack.c.h.b16 %v180
    %v866 = vunpack.c.l.b16 %v181
    %v867 = vunpack.c.h.b16 %v181
    %v868 = vunpack.c.l.b16 %v182
    %v869 = vunpack.c.h.b16 %v182
    %v870 = vunpack.c.l.b16 %v183
    %v871 = vunpack.c.h.b16 %v183
    %v872 = vunpack.c.l.b16 %v184
    %v873 = vunpack.c.h.b16 %v184
    %v874 = vunpack.c.l.b16 %v185
    %v875 = vunpack.c.h.b16 %v185
    %v876 = vunpack.c.l.b16 %v186
    %v877 = vunpack.c.h.b16 %v186
    %v878 = vunpack.c.l.b16 %v187
    %v879 = vunpack.c.h.b16 %v187
    %v880 = vunpack.c.l.b16 %v188
    %v881 = vunpack.c.h.b16 %v188
    %v882 = vunpack.c.l.b16 %v189
    %v883 = vunpack.c.h.b16 %v189
    %v884 = vunpack.c.l.b16 %v190
    %v885 = vunpack.c.h.b16 %v190
    %v886 = vunpack.c.l.b16 %v191
    %v887 = vunpack.c.h.b16 %v191
    %v888 = vunpack.c.l.b16 %v192
    %v889 = vunpack.c.h.b16 %v192
    %v890 = vunpack.c.l.b16 %v193
    %v891 = vunpack.c.h.b16 %v193
    %v892 = vunpack.c.l.b16 %v194
    %v893 = vunpack.c.h.b16 %v194
    %v894 = vunpack.c.l.b16 %v195
    %v895 = vunpack.c.h.b16 %v195
    %v896 = vunpack.c.l.b16 %v196
    %v897 = vunpack.c.h.b16 %v196
    %v898 = vunpack.c.l.b16 %v197
    %v899 = vunpack.c.h.b16 %v197
    %v900 = vunpack.c.l.b16 %v198
    %v901 = vunpack.c.h.b16 %v198
    %v902 = vunpack.c.l.b16 %v199
    %v903 = vunpack.c.h.b16 %v199
    %v904 = vunpack.c.l.b16 %v200
    %v905 = vunpack.c.h.b16 %v200
    %v906 = vunpack.c.l.b16 %v201
    %v907 = vunpack.c.h.b16 %v201
    %v908 = vunpack.c.l.b16 %v202
    %v909 = vunpack.c.h.b16 %v202
    %v910 = vunpack.c.l.b16 %v203
    %v911 = vunpack.c.h.b16 %v203
    %v912 = vunpack.c.l.b16 %v204
    %v913 = vunpack.c.h.b16 %v204
    %v914 = vunpack.c.l.b16 %v205
    %v915 = vunpack.c.h.b16 %v205
    %v916 = vunpack.c.l.b16 %v206
    %v917 = vunpack.c.h.b16 %v206
    %v918 = vunpack.c.l.b16 %v207
    %v919 = vunpack.c.h.b16 %v207
    %v920 = vunpack.c.l.b16 %v208
    %v921 = vunpack.c.h.b16 %v208
    %v922 = vunpack.c.l.b16 %v209
    %v923 = vunpack.c.h.b16 %v209
    %v924 = vunpack.c.l.b16 %v210
    %v925 = vunpack.c.h.b16 %v210
    %v926 = vunpack.c.l.b16 %v211
    %v927 = vunpack.c.h.b16 %v211
    %v928 = vunpack.c.l.b16 %v212
    %v929 = vunpack.c.h.b16 %v212
    %v930 = vunpack.c.l.b16 %v213
    %v931 = vunpack.c.h.b16 %v213
    %v932 = vunpack.c.l.b16 %v214
    %v933 = vunpack.c.h.b16 %v214
    %v934 = vunpack.c.l.b16 %v215
    %v935 = vunpack.c.h.b16 %v215
    %v936 = vunpack.c.l.b16 %v216
    %v937 = vunpack.c.h.b16 %v216
    %v938 = vunpack.c.l.b16 %v217
    %v939 = vunpack.c.h.b16 %v217
    %v940 = vunpack.c.l.b16 %v218
    %v941 = vunpack.c.h.b16 %v218
    %v942 = vunpack.c.l.b16 %v219
    %v943 = vunpack.c.h.b16 %v219
    %v944 = vunpack.c.l.b16 %v220
    %v945 = vunpack.c.h.b16 %v220
    %v946 = vunpack.c.l.b16 %v221
    %v947 = vunpack.c.h.b16 %v221
    %v948 = vunpack.c.l.b16 %v222
    %v949 = vunpack.c.h.b16 %v222
    %v950 = vunpack.c.l.b16 %v223
    %v951 = vunpack.c.h.b16 %v223
    %v952 = vunpack.c.l.b16 %v224
    %v953 = vunpack.c.h.b16 %v224
    %v954 = vunpack.c.l.b16 %v225
    %v955 = vunpack.c.h.b16 %v225
    %v956 = vunpack.c.l.b16 %v226
    %v957 = vunpack.c.h.b16 %v226
    %v958 = vunpack.c.l.b16 %v227
    %v959 = vunpack.c.h.b16 %v227
    %v960 = vunpack.c.l.b16 %v228
    %v961 = vunpack.c.h.b16 %v228
    %v962 = vunpack.c.l.b16 %v229
    %v963 = vunpack.c.h.b16 %v229
    %v964 = vunpack.c.l.b16 %v230
    %v965 = vunpack.c.h.b16 %v230
    %v966 = vunpack.c.l.b16 %v231
    %v967 = vunpack.c.h.b16 %v231
    %v968 = vunpack.c.l.b16 %v232
    %v969 = vunpack.c.h.b16 %v232
    %v970 = vunpack.c.l.b16 %v233
    %v971 = vunpack.c.h.b16 %v233
    %v972 = vunpack.c.l.b16 %v234
    %v973 = vunpack.c.h.b16 %v234
    %v974 = vunpack.c.l.b16 %v235
    %v975 = vunpack.c.h.b16 %v235
    %v976 = vunpack.c.l.b16 %v236
    %v977 = vunpack.c.h.b16 %v236
    %v978 = vunpack.c.l.b16 %v237
    %v979 = vunpack.c.h.b16 %v237
    %v980 = vunpack.c.l.b16 %v238
    %v981 = vunpack.c.h.b16 %v238
    %v982 = vunpack.c.l.b16 %v239
    %v983 = vunpack.c.h.b16 %v239
    %v984 = vunpack.c.l.b16 %v240
    %v985 = vunpack.c.h.b16 %v240
    %v986 = vunpack.c.l.b16 %v241
    %v987 = vunpack.c.h.b16 %v241
    %v988 = vunpack.c.l.b16 %v242
    %v989 = vunpack.c.h.b16 %v242
    %v990 = vunpack.c.l.b16 %v243
    %v991 = vunpack.c.h.b16 %v243
    %v992 = vunpack.c.l.b16 %v244
    %v993 = vunpack.c.h.b16 %v244
    %v994 = vunpack.c.l.b16 %v245
    %v995 = vunpack.c.h.b16 %v245
    %v996 = vunpack.c.l.b16 %v246
    %v997 = vunpack.c.h.b16 %v246
    %v998 = vunpack.c.l.b16 %v247
    %v999 = vunpack.c.h.b16 %v247
    %v1000 = vunpack.c.l.b16 %v248
    %v1001 = vunpack.c.h.b16 %v248
    %v1002 = vunpack.c.l.b16 %v249
    %v1003 = vunpack.c.h.b16 %v249
    %v1004 = vunpack.c.l.b16 %v250
    %v1005 = vunpack.c.h.b16 %v250
    %v1006 = vunpack.c.l.b16 %v251
    %v1007 = vunpack.c.h.b16 %v251
    %v1008 = vunpack.c.l.b16 %v252
    %v1009 = vunpack.c.h.b16 %v252
    %v1010 = vunpack.c.l.b16 %v253
    %v1011 = vunpack.c.h.b16 %v253
    %v1012 = vunpack.c.l.b16 %v254
    %v1013 = vunpack.c.h.b16 %v254
    %v1014 = vunpack.c.l.b16 %v255
    %v1015 = vunpack.c.h.b16 %v255
    %v1016 = vunpack.c.l.b16 %v256
    %v1017 = vunpack.c.h.b16 %v256
    %v1018 = vunpack.c.l.b16 %v257
    %v1019 = vunpack.c.h.b16 %v257
    %v1020 = vunpack.c.l.b16 %v258
    %v1021 = vunpack.c.h.b16 %v258
    %v1022 = vunpack.c.l.b16 %v259
    %v1023 = vunpack.c.h.b16 %v259
    %v1024 = vunpack.c.l.b16 %v260
    %v1025 = vunpack.c.h.b16 %v260
    %v1026 = vunpack.c.l.b16 %v261
    %v1027 = vunpack.c.h.b16 %v261
    %v1028 = vunpack.c.l.b16 %v262
    %v1029 = vunpack.c.h.b16 %v262
    %v1030 = vunpack.c.l.b16 %v263
    %v1031 = vunpack.c.h.b16 %v263
    %v1032 = vunpack.c.l.b16 %v264
    %v1033 = vunpack.c.h.b16 %v264
    %v1034 = vunpack.c.l.b16 %v265
    %v1035 = vunpack.c.h.b16 %v265
    %v1036 = vunpack.c.l.b16 %v266
    %v1037 = vunpack.c.h.b16 %v266
    %v1038 = vunpack.c.l.b16 %v267
    %v1039 = vunpack.c.h.b16 %v267
    %v1040 = vunpack.c.l.b16 %v268
    %v1041 = vunpack.c.h.b16 %v268
    %v1042 = vunpack.c.l.b16 %v269
    %v1043 = vunpack.c.h.b16 %v269
    %v1044 = vpack.c.b16 %v654, %v644
    %v1045 = vpack.c.b16 %v655, %v645
    %v1046 = vpack.c.b16 %v656, %v646
    %v1047 = vpack.c.b16 %v657, %v647
    %v1048 = vpack.c.b16 %v658, %v648
    %v1049 = vpack.c.b16 %v659, %v649
    %v1050 = vpack.c.b16 %v660, %v650
    %v1051 = vpack.c.b16 %v661, %v651
    %v1052 = vpack.c.b16 %v662, %v652
    %v1053 = vpack.c.b16 %v663, %v653
    %v1054 = vpack.c.b16 %v674, %v664
    %v1055 = vpack.c.b16 %v675, %v665
    %v1056 = vpack.c.b16 %v676, %v666
    %v1057 = vpack.c.b16 %v677, %v667
    %v1058 = vpack.c.b16 %v678, %v668
    %v1059 = vpack.c.b16 %v679, %v669
    %v1060 = vpack.c.b16 %v680, %v670
    %v1061 = vpack.c.b16 %v681, %v671
    %v1062 = vpack.c.b16 %v682, %v672
    %v1063 = vpack.c.b16 %v683, %v673
    %v1064 = vpack.c.b16 %v694, %v684
    %v1065 = vpack.c.b16 %v695, %v685
    %v1066 = vpack.c.b16 %v696, %v686
    %v1067 = vpack.c.b16 %v697, %v687
    %v1068 = vpack.c.b16 %v698, %v688
    %v1069 = vpack.c.b16 %v699, %v689
    %v1070 = vpack.c.b16 %v700, %v690
    %v1071 = vpack.c.b16 %v701, %v691
    %v1072 = vpack.c.b16 %v702, %v692
    %v1073 = vpack.c.b16 %v703, %v693
    %v1074 = vpack.c.b16 %v714, %v704
    %v1075 = vpack.c.b16 %v715, %v705
    %v1076 = vpack.c.b16 %v716, %v706
    %v1077 = vpack.c.b16 %v717, %v707
    %v1078 = vpack.c.b16 %v718, %v708
    %v1079 = vpack.c.b16 %v719, %v709
    %v1080 = vpack.c.b16 %v720, %v710
    %v1081 = vpack.c.b16 %v721, %v711
    %v1082 = vpack.c.b16 %v722, %v712
    %v1083 = vpack.c.b16 %v723, %v713
    %v1084 = vpack.c.b16 %v734, %v724
    %v1085 = vpack.c.b16 %v735, %v725
    %v1086 = vpack.c.b16 %v736, %v726
    %v1087 = vpack.c.b16 %v737, %v727
    %v1088 = vpack.c.b16 %v738, %v728
    %v1089 = vpack.c.b16 %v739, %v729
    %v1090 = vpack.c.b16 %v740, %v730
    %v1091 = vpack.c.b16 %v741, %v731
    %v1092 = vpack.c.b16 %v742, %v732
    %v1093 = vpack.c.b16 %v743, %v733
    %v1094 = vpack.c.b16 %v754, %v744
    %v1095 = vpack.c.b16 %v755, %v745
    %v1096 = vpack.c.b16 %v756, %v746
    %v1097 = vpack.c.b16 %v757, %v747
    %v1098 = vpack.c.b16 %v758, %v748
    %v1099 = vpack.c.b16 %v759, %v749
    %v1100 = vpack.c.b16 %v760, %v750
    %v1101 = vpack.c.b16 %v761, %v751
    %v1102 = vpack.c.b16 %v762, %v752
    %v1103 = vpack.c.b16 %v763, %v753
    %v1104 = vpack.c.b16 %v774, %v764
    %v1105 = vpack.c.b16 %v775, %v765
    %v1106 = vpack.c.b16 %v776, %v766
    %v1107 = vpack.c.b16 %v777, %v767
    %v1108 = vpack.c.b16 %v778, %v768
    %v1109 = vpack.c.b16 %v779, %v769
    %v1110 = vpack.c.b16 %v780, %v770
    %v1111 = vpack.c.b16 %v781, %v771
    %v1112 = vpack.c.b16 %v782, %v772
    %v1113 = vpack.c.b16 %v783, %v773
    %v1114 = vpack.c.b16 %v794, %v784
    %v1115 = vpack.c.b16 %v795, %v785
    %v1116 = vpack.c.b16 %v796, %v786
    %v1117 = vpack.c.b16 %v797, %v787
    %v1118 = vpack.c.b16 %v798, %v788
    %v1119 = vpack.c.b16 %v799, %v789
    %v1120 = vpack.c.b16 %v800, %v790
    %v1121 = vpack.c.b16 %v801, %v791
    %v1122 = vpack.c.b16 %v802, %v792
    %v1123 = vpack.c.b16 %v803, %v793
    %v1124 = vpack.c.b16 %v814, %v804
    %v1125 = vpack.c.b16 %v815, %v805
    %v1126 = vpack.c.b16 %v816, %v806
    %v1127 = vpack.c.b16 %v817, %v807
    %v1128 = vpack.c.b16 %v818, %v808
    %v1129 = vpack.c.b16 %v819, %v809
    %v1130 = vpack.c.b16 %v820, %v810
    %v1131 = vpack.c.b16 %v821, %v811
    %v1132 = vpack.c.b16 %v822, %v812
    %v1133 = vpack.c.b16 %v823, %v813
    %v1134 = vpack.c.b16 %v834, %v824
    %v1135 = vpack.c.b16 %v835, %v825
    %v1136 = vpack.c.b16 %v836, %v826
    %v1137 = vpack.c.b16 %v837, %v827
    %v1138 = vpack.c.b16 %v838, %v828
    %v1139 = vpack.c.b16 %v839, %v829
    %v1140 = vpack.c.b16 %v840, %v830
    %v1141 = vpack.c.b16 %v841, %v831
    %v1142 = vpack.c.b16 %v842, %v832
    %v1143 = vpack.c.b16 %v843, %v833
    %v1144 = vpack.c.b16 %v854, %v844
    %v1145 = vpack.c.b16 %v855, %v845
    %v1146 = vpack.c.b16 %v856, %v846
    %v1147 = vpack.c.b16 %v857, %v847
    %v1148 = vpack.c.b16 %v858, %v848
    %v1149 = vpack.c.b16 %v859, %v849
    %v1150 = vpack.c.b16 %v860, %v850
    %v1151 = vpack.c.b16 %v861, %v851
    %v1152 = vpack.c.b16 %v862, %v852
    %v1153 = vpack.c.b16 %v863, %v853
    %v1154 = vpack.c.b16 %v874, %v864
    %v1155 = vpack.c.b16 %v875, %v865
    %v1156 = vpack.c.b16 %v876, %v866
    %v1157 = vpack.c.b16 %v877, %v867
    %v1158 = vpack.c.b16 %v878, %v868
    %v1159 = vpack.c.b16 %v879, %v869
    %v1160 = vpack.c.b16 %v880, %v870
    %v1161 = vpack.c.b16 %v881, %v871
    %v1162 = vpack.c.b16 %v882, %v872
    %v1163 = vpack.c.b16 %v883, %v873
    %v1164 = vpack.c.b16 %v894, %v884
    %v1165 = vpack.c.b16 %v895, %v885
    %v1166 = vpack.c.b16 %v896, %v886
    %v1167 = vpack.c.b16 %v897, %v887
    %v1168 = vpack.c.b16 %v898, %v888
    %v1169 = vpack.c.b16 %v899, %v889
    %v1170 = vpack.c.b16 %v900, %v890
    %v1171 = vpack.c.b16 %v901, %v891
    %v1172 = vpack.c.b16 %v902, %v892
    %v1173 = vpack.c.b16 %v903, %v893
    %v1174 = vpack.c.b16 %v914, %v904
    %v1175 = vpack.c.b16 %v915, %v905
    %v1176 = vpack.c.b16 %v916, %v906
    %v1177 = vpack.c.b16 %v917, %v907
    %v1178 = vpack.c.b16 %v918, %v908
    %v1179 = vpack.c.b16 %v919, %v909
    %v1180 = vpack.c.b16 %v920, %v910
    %v1181 = vpack.c.b16 %v921, %v911
    %v1182 = vpack.c.b16 %v922, %v912
    %v1183 = vpack.c.b16 %v923, %v913
    %v1184 = vpack.c.b16 %v934, %v924
    %v1185 = vpack.c.b16 %v935, %v925
    %v1186 = vpack.c.b16 %v936, %v926
    %v1187 = vpack.c.b16 %v937, %v927
    %v1188 = vpack.c.b16 %v938, %v928
    %v1189 = vpack.c.b16 %v939, %v929
    %v1190 = vpack.c.b16 %v940, %v930
    %v1191 = vpack.c.b16 %v941, %v931
    %v1192 = vpack.c.b16 %v942, %v932
    %v1193 = vpack.c.b16 %v943, %v933
    %v1194 = vpack.c.b16 %v954, %v944
    %v1195 = vpack.c.b16 %v955, %v945
    %v1196 = vpack.c.b16 %v956, %v946
    %v1197 = vpack.c.b16 %v957, %v947
    %v1198 = vpack.c.b16 %v958, %v948
    %v1199 = vpack.c.b16 %v959, %v949
    %v1200 = vpack.c.b16 %v960, %v950
    %v1201 = vpack.c.b16 %v961, %v951
    %v1202 = vpack.c.b16 %v962, %v952
    %v1203 = vpack.c.b16 %v963, %v953
    %v1204 = vpack.c.b16 %v974, %v964
    %v1205 = vpack.c.b16 %v975, %v965
    %v1206 = vpack.c.b16 %v976, %v966
    %v1207 = vpack.c.b16 %v977, %v967
    %v1208 = vpack.c.b16 %v978, %v968
    %v1209 = vpack.c.b16 %v979, %v969
    %v1210 = vpack.c.b16 %v980, %v970
    %v1211 = vpack.c.b16 %v981, %v971
    %v1212 = vpack.c.b16 %v982, %v972
    %v1213 = vpack.c.b16 %v983, %v973
    %v1214 = vpack.c.b16 %v994, %v984
    %v1215 = vpack.c.b16 %v995, %v985
    %v1216 = vpack.c.b16 %v996, %v986
    %v1217 = vpack.c.b16 %v997, %v987
    %v1218 = vpack.c.b16 %v998, %v988
    %v1219 = vpack.c.b16 %v999, %v989
    %v1220 = vpack.c.b16 %v1000, %v990
    %v1221 = vpack.c.b16 %v1001, %v991
    %v1222 = vpack.c.b16 %v1002, %v992
    %v1223 = vpack.c.b16 %v1003, %v993
    %v1224 = vpack.c.b16 %v1014, %v1004
    %v1225 = vpack.c.b16 %v1015, %v1005
    %v1226 = vpack.c.b16 %v1016, %v1006
    %v1227 = vpack.c.b16 %v1017, %v1007
    %v1228 = vpack.c.b16 %v1018, %v1008
    %v1229 = vpack.c.b16 %v1019, %v1009
    %v1230 = vpack.c.b16 %v1020, %v1010
    %v1231 = vpack.c.b16 %v1021, %v1011
    %v1232 = vpack.c.b16 %v1022, %v1012
    %v1233 = vpack.c.b16 %v1023, %v1013
    %v1234 = vpack.c.b16 %v1034, %v1024
    %v1235 = vpack.c.b16 %v1035, %v1025
    %v1236 = vpack.c.b16 %v1036, %v1026
    %v1237 = vpack.c.b16 %v1037, %v1027
    %v1238 = vpack.c.b16 %v1038, %v1028
    %v1239 = vpack.c.b16 %v1039, %v1029
    %v1240 = vpack.c.b16 %v1040, %v1030
    %v1241 = vpack.c.b16 %v1041, %v1031
    %v1242 = vpack.c.b16 %v1042, %v1032
    %v1243 = vpack.c.b16 %v1043, %v1033
    %vm1444 = vcmask 523264
    %v1446 = vsel %vm1444, %v406, 0
    %v1449 = vsel %vm1444, %v409, 0
    %v1452 = vsel %vm1444, %v412, 0
    %v1455 = vsel %vm1444, %v415, 0
    %v1458 = vsel %vm1444, %v418, 0
    %v1461 = vsel %vm1444, %v421, 0
    %v1464 = vsel %vm1444, %v424, 0
    %v1467 = vsel %vm1444, %v427, 0
    %1469 = vmatprep.subr.bf16.mxu0 %v1045
    %1470 = vmatpush1.bf16.msra.mxu0 %v1044
    %1471 = vmatprep.subr.bf16.mxu0 %v1055
    %1472 = vmatpush1.bf16.msra.mxu0 %v1054
    %1473 = vmatprep.subr.bf16.mxu0 %v1065
    %1474 = vmatpush1.bf16.msra.mxu0 %v1064
    %1475 = vmatprep.subr.bf16.mxu0 %v1075
    %1476 = vmatpush1.bf16.msra.mxu0 %v1074
    %1477 = vmatprep.subr.bf16.mxu0 %v1085
    %1478 = vmatpush1.bf16.msra.mxu0 %v1084
    %1479 = vmatprep.subr.bf16.mxu0 %v1095
    %1480 = vmatpush1.bf16.msra.mxu0 %v1094
    %1481 = vmatprep.subr.bf16.mxu0 %v1105
    %1482 = vmatpush1.bf16.msra.mxu0 %v1104
    %1483 = vmatprep.subr.bf16.mxu0 %v1115
    %1484 = vmatpush1.bf16.msra.mxu0 %v1114
    %1485 = vmatprep.subr.bf16.mxu0 %v1125
    %1486 = vmatpush1.bf16.msra.mxu0 %v1124
    %1487 = vmatprep.subr.bf16.mxu0 %v1135
    %1488 = vmatpush1.bf16.msra.mxu0 %v1134
    %1489 = vmatprep.subr.bf16.mxu0 %v1145
    %1490 = vmatpush1.bf16.msra.mxu0 %v1144
    %1491 = vmatprep.subr.bf16.mxu0 %v1155
    %1492 = vmatpush1.bf16.msra.mxu0 %v1154
    %1493 = vmatprep.subr.bf16.mxu0 %v1165
    %1494 = vmatpush1.bf16.msra.mxu0 %v1164
    %1495 = vmatprep.subr.bf16.mxu0 %v1175
    %1496 = vmatpush1.bf16.msra.mxu0 %v1174
    %1497 = vmatprep.subr.bf16.mxu0 %v1185
    %1498 = vmatpush1.bf16.msra.mxu0 %v1184
    %1499 = vmatprep.subr.bf16.mxu0 %v1195
    %1500 = vmatpush1.bf16.msra.mxu0 %v1194
    %1501 = vmatprep.mubr.bf16.mxu0 %v405
    %1502 = vmatmul.mubr.bf16.gmra.mrb[0].mxu0 %v404
    %v1503 = vpop.f32.mrb[0].mxu0
    %v1504 = vadd.f32 %v277, %v1503
    %v1505 = vpop.f32.mrb[0].mxu0
    %v1506 = vadd.f32 %v281, %v1505
    %v1507 = vpop.f32.mrb[0].mxu0
    %v1508 = vadd.f32 %v277, %v1507
    %v1509 = vpop.f32.mrb[0].mxu0
    %v1510 = vadd.f32 %v281, %v1509
    %1511 = vmatprep.mubr.bf16.mxu0 %v408
    %1512 = vmatmul.mubr.bf16.gmra.mrb[0].mxu0 %v407
    %v1513 = vpop.f32.mrb[0].mxu0
    %v1514 = vadd.f32 %v277, %v1513
    %v1515 = vpop.f32.mrb[0].mxu0
    %v1516 = vadd.f32 %v281, %v1515
    %v1517 = vpop.f32.mrb[0].mxu0
    %v1518 = vadd.f32 %v277, %v1517
    %v1519 = vpop.f32.mrb[0].mxu0
    %v1520 = vadd.f32 %v281, %v1519
    %1521 = vmatprep.mubr.bf16.mxu0 %v411
    %1522 = vmatmul.mubr.bf16.gmra.mrb[0].mxu0 %v410
    %v1523 = vpop.f32.mrb[0].mxu0
    %v1524 = vadd.f32 %v277, %v1523
    %v1525 = vpop.f32.mrb[0].mxu0
    %v1526 = vadd.f32 %v281, %v1525
    %v1527 = vpop.f32.mrb[0].mxu0
    %v1528 = vadd.f32 %v277, %v1527
    %v1529 = vpop.f32.mrb[0].mxu0
    %v1530 = vadd.f32 %v281, %v1529
    %1531 = vmatprep.mubr.bf16.mxu0 %v414
    %1532 = vmatmul.mubr.bf16.gmra.mrb[0].mxu0 %v413
    %v1533 = vpop.f32.mrb[0].mxu0
    %v1534 = vadd.f32 %v277, %v1533
    %v1535 = vpop.f32.mrb[0].mxu0
    %v1536 = vadd.f32 %v281, %v1535
    %v1537 = vpop.f32.mrb[0].mxu0
    %v1538 = vadd.f32 %v277, %v1537
    %v1539 = vpop.f32.mrb[0].mxu0
    %v1540 = vadd.f32 %v281, %v1539
    %1541 = vmatprep.mubr.bf16.mxu0 %v417
    %1542 = vmatmul.mubr.bf16.gmra.mrb[0].mxu0 %v416
    %v1543 = vpop.f32.mrb[0].mxu0
    %v1544 = vadd.f32 %v277, %v1543
    %v1545 = vpop.f32.mrb[0].mxu0
    %v1546 = vadd.f32 %v281, %v1545
    %v1547 = vpop.f32.mrb[0].mxu0
    %v1548 = vadd.f32 %v277, %v1547
    %v1549 = vpop.f32.mrb[0].mxu0
    %v1550 = vadd.f32 %v281, %v1549
    %1551 = vmatprep.mubr.bf16.mxu0 %v420
    %1552 = vmatmul.mubr.bf16.gmra.mrb[0].mxu0 %v419
    %v1553 = vpop.f32.mrb[0].mxu0
    %v1554 = vadd.f32 %v277, %v1553
    %v1555 = vpop.f32.mrb[0].mxu0
    %v1556 = vadd.f32 %v281, %v1555
    %v1557 = vpop.f32.mrb[0].mxu0
    %v1558 = vadd.f32 %v277, %v1557
    %v1559 = vpop.f32.mrb[0].mxu0
    %v1560 = vadd.f32 %v281, %v1559
    %1561 = vmatprep.mubr.bf16.mxu0 %v423
    %1562 = vmatmul.mubr.bf16.gmra.mrb[0].mxu0 %v422
    %v1563 = vpop.f32.mrb[0].mxu0
    %v1564 = vadd.f32 %v277, %v1563
    %v1565 = vpop.f32.mrb[0].mxu0
    %v1566 = vadd.f32 %v281, %v1565
    %v1567 = vpop.f32.mrb[0].mxu0
    %v1568 = vadd.f32 %v277, %v1567
    %v1569 = vpop.f32.mrb[0].mxu0
    %v1570 = vadd.f32 %v281, %v1569
    %1571 = vmatprep.mubr.bf16.mxu0 %v426
    %1572 = vmatmul.mubr.bf16.gmra.mrb[0].mxu0 %v425
    %v1573 = vpop.f32.mrb[0].mxu0
    %v1574 = vadd.f32 %v277, %v1573
    %v1575 = vpop.f32.mrb[0].mxu0
    %v1576 = vadd.f32 %v281, %v1575
    %v1577 = vpop.f32.mrb[0].mxu0
    %v1578 = vadd.f32 %v277, %v1577
    %v1579 = vpop.f32.mrb[0].mxu0
    %v1580 = vadd.f32 %v281, %v1579
    %1581 = vdwg.mxu0
    %1582 = vmatprep.subr.bf16.mxu0 %v1205
    %1583 = vmatpush1.bf16.msra.mxu0 %v1204
    %1584 = vmatprep.subr.bf16.mxu0 %v1215
    %1585 = vmatpush1.bf16.msra.mxu0 %v1214
    %1586 = vmatprep.subr.bf16.mxu0 %v1225
    %1587 = vmatpush1.bf16.msra.mxu0 %v1224
    %1588 = vmatprep.subr.bf16.mxu0 %v1235
    %1589 = vmatpush1.bf16.msra.mxu0 %v1234
    %1590 = vmatprep.subr.bf16.mxu0 0
    %1591 = vmatpush1.bf16.msra.mxu0 0
    %1592 = vmatprep.subr.bf16.mxu0 0
    %1593 = vmatpush1.bf16.msra.mxu0 0
    %1594 = vmatprep.subr.bf16.mxu0 0
    %1595 = vmatpush1.bf16.msra.mxu0 0
    %1596 = vmatprep.subr.bf16.mxu0 0
    %1597 = vmatpush1.bf16.msra.mxu0 0
    %1598 = vmatprep.subr.bf16.mxu0 0
    %1599 = vmatpush1.bf16.msra.mxu0 0
    %1600 = vmatprep.subr.bf16.mxu0 0
    %1601 = vmatpush1.bf16.msra.mxu0 0
    %1602 = vmatprep.subr.bf16.mxu0 0
    %1603 = vmatpush1.bf16.msra.mxu0 0
    %1604 = vmatprep.subr.bf16.mxu0 0
    %1605 = vmatpush1.bf16.msra.mxu0 0
    %1606 = vmatprep.subr.bf16.mxu0 0
    %1607 = vmatpush1.bf16.msra.mxu0 0
    %1608 = vmatprep.subr.bf16.mxu0 0
    %1609 = vmatpush1.bf16.msra.mxu0 0
    %1610 = vmatprep.subr.bf16.mxu0 0
    %1611 = vmatpush1.bf16.msra.mxu0 0
    %1612 = vmatprep.subr.bf16.mxu0 0
    %1613 = vmatpush1.bf16.msra.mxu0 0
    %1614 = vmatprep.mubr.bf16.mxu0 0
    %1615 = vmatmul.mubr.bf16.gmra.mrb[0].mxu0 %v1446
    %v1616 = vpop.f32.mrb[0].mxu0
    %v1617 = vadd.f32 %v1504, %v1616
    %v1618 = vpop.f32.mrb[0].mxu0
    %v1619 = vadd.f32 %v1506, %v1618
    %v1620 = vpop.f32.mrb[0].mxu0
    %v1621 = vadd.f32 %v1508, %v1620
    %v1622 = vpop.f32.mrb[0].mxu0
    %v1623 = vadd.f32 %v1510, %v1622
    %1624 = vmatprep.mubr.bf16.mxu0 0
    %1625 = vmatmul.mubr.bf16.gmra.mrb[0].mxu0 %v1449
    %v1626 = vpop.f32.mrb[0].mxu0
    %v1627 = vadd.f32 %v1514, %v1626
    %v1628 = vpop.f32.mrb[0].mxu0
    %v1629 = vadd.f32 %v1516, %v1628
    %v1630 = vpop.f32.mrb[0].mxu0
    %v1631 = vadd.f32 %v1518, %v1630
    %v1632 = vpop.f32.mrb[0].mxu0
    %v1633 = vadd.f32 %v1520, %v1632
    %1634 = vmatprep.mubr.bf16.mxu0 0
    %1635 = vmatmul.mubr.bf16.gmra.mrb[0].mxu0 %v1452
    %v1636 = vpop.f32.mrb[0].mxu0
    %v1637 = vadd.f32 %v1524, %v1636
    %v1638 = vpop.f32.mrb[0].mxu0
    %v1639 = vadd.f32 %v1526, %v1638
    %v1640 = vpop.f32.mrb[0].mxu0
    %v1641 = vadd.f32 %v1528, %v1640
    %v1642 = vpop.f32.mrb[0].mxu0
    %v1643 = vadd.f32 %v1530, %v1642
    %1644 = vmatprep.mubr.bf16.mxu0 0
    %1645 = vmatmul.mubr.bf16.gmra.mrb[0].mxu0 %v1455
    %v1646 = vpop.f32.mrb[0].mxu0
    %v1647 = vadd.f32 %v1534, %v1646
    %v1648 = vpop.f32.mrb[0].mxu0
    %v1649 = vadd.f32 %v1536, %v1648
    %v1650 = vpop.f32.mrb[0].mxu0
    %v1651 = vadd.f32 %v1538, %v1650
    %v1652 = vpop.f32.mrb[0].mxu0
    %v1653 = vadd.f32 %v1540, %v1652
    %1654 = vmatprep.mubr.bf16.mxu0 0
    %1655 = vmatmul.mubr.bf16.gmra.mrb[0].mxu0 %v1458
    %v1656 = vpop.f32.mrb[0].mxu0
    %v1657 = vadd.f32 %v1544, %v1656
    %v1658 = vpop.f32.mrb[0].mxu0
    %v1659 = vadd.f32 %v1546, %v1658
    %v1660 = vpop.f32.mrb[0].mxu0
    %v1661 = vadd.f32 %v1548, %v1660
    %v1662 = vpop.f32.mrb[0].mxu0
    %v1663 = vadd.f32 %v1550, %v1662
    %1664 = vmatprep.mubr.bf16.mxu0 0
    %1665 = vmatmul.mubr.bf16.gmra.mrb[0].mxu0 %v1461
    %v1666 = vpop.f32.mrb[0].mxu0
    %v1667 = vadd.f32 %v1554, %v1666
    %v1668 = vpop.f32.mrb[0].mxu0
    %v1669 = vadd.f32 %v1556, %v1668
    %v1670 = vpop.f32.mrb[0].mxu0
    %v1671 = vadd.f32 %v1558, %v1670
    %v1672 = vpop.f32.mrb[0].mxu0
    %v1673 = vadd.f32 %v1560, %v1672
    %1674 = vmatprep.mubr.bf16.mxu0 0
    %1675 = vmatmul.mubr.bf16.gmra.mrb[0].mxu0 %v1464
    %v1676 = vpop.f32.mrb[0].mxu0
    %v1677 = vadd.f32 %v1564, %v1676
    %v1678 = vpop.f32.mrb[0].mxu0
    %v1679 = vadd.f32 %v1566, %v1678
    %v1680 = vpop.f32.mrb[0].mxu0
    %v1681 = vadd.f32 %v1568, %v1680
    %v1682 = vpop.f32.mrb[0].mxu0
    %v1683 = vadd.f32 %v1570, %v1682
    %1684 = vmatprep.mubr.bf16.mxu0 0
    %1685 = vmatmul.mubr.bf16.gmra.mrb[0].mxu0 %v1467
    %v1686 = vpop.f32.mrb[0].mxu0
    %v1687 = vadd.f32 %v1574, %v1686
    %v1688 = vpop.f32.mrb[0].mxu0
    %v1689 = vadd.f32 %v1576, %v1688
    %v1690 = vpop.f32.mrb[0].mxu0
    %v1691 = vadd.f32 %v1578, %v1690
    %v1692 = vpop.f32.mrb[0].mxu0
    %v1693 = vadd.f32 %v1580, %v1692
    %1694 = vdwg.mxu0
    %1695 = vmatprep.subr.bf16.mxu0 %v1047
    %1696 = vmatpush1.bf16.msra.mxu0 %v1046
    %1697 = vmatprep.subr.bf16.mxu0 %v1057
    %1698 = vmatpush1.bf16.msra.mxu0 %v1056
    %1699 = vmatprep.subr.bf16.mxu0 %v1067
    %1700 = vmatpush1.bf16.msra.mxu0 %v1066
    %1701 = vmatprep.subr.bf16.mxu0 %v1077
    %1702 = vmatpush1.bf16.msra.mxu0 %v1076
    %1703 = vmatprep.subr.bf16.mxu0 %v1087
    %1704 = vmatpush1.bf16.msra.mxu0 %v1086
    %1705 = vmatprep.subr.bf16.mxu0 %v1097
    %1706 = vmatpush1.bf16.msra.mxu0 %v1096
    %1707 = vmatprep.subr.bf16.mxu0 %v1107
    %1708 = vmatpush1.bf16.msra.mxu0 %v1106
    %1709 = vmatprep.subr.bf16.mxu0 %v1117
    %1710 = vmatpush1.bf16.msra.mxu0 %v1116
    %1711 = vmatprep.subr.bf16.mxu0 %v1127
    %1712 = vmatpush1.bf16.msra.mxu0 %v1126
    %1713 = vmatprep.subr.bf16.mxu0 %v1137
    %1714 = vmatpush1.bf16.msra.mxu0 %v1136
    %1715 = vmatprep.subr.bf16.mxu0 %v1147
    %1716 = vmatpush1.bf16.msra.mxu0 %v1146
    %1717 = vmatprep.subr.bf16.mxu0 %v1157
    %1718 = vmatpush1.bf16.msra.mxu0 %v1156
    %1719 = vmatprep.subr.bf16.mxu0 %v1167
    %1720 = vmatpush1.bf16.msra.mxu0 %v1166
    %1721 = vmatprep.subr.bf16.mxu0 %v1177
    %1722 = vmatpush1.bf16.msra.mxu0 %v1176
    %1723 = vmatprep.subr.bf16.mxu0 %v1187
    %1724 = vmatpush1.bf16.msra.mxu0 %v1186
    %1725 = vmatprep.subr.bf16.mxu0 %v1197
    %1726 = vmatpush1.bf16.msra.mxu0 %v1196
    %1727 = vmatprep.mubr.bf16.mxu0 %v405
    %1728 = vmatmul.mubr.bf16.gmra.mrb[0].mxu0 %v404
    %v1729 = vpop.f32.mrb[0].mxu0
    %v1730 = vadd.f32 %v285, %v1729
    %v1731 = vpop.f32.mrb[0].mxu0
    %v1732 = vadd.f32 %v289, %v1731
    %v1733 = vpop.f32.mrb[0].mxu0
    %v1734 = vadd.f32 %v285, %v1733
    %v1735 = vpop.f32.mrb[0].mxu0
    %v1736 = vadd.f32 %v289, %v1735
    %1737 = vmatprep.mubr.bf16.mxu0 %v408
    %1738 = vmatmul.mubr.bf16.gmra.mrb[0].mxu0 %v407
    %v1739 = vpop.f32.mrb[0].mxu0
    %v1740 = vadd.f32 %v285, %v1739
    %v1741 = vpop.f32.mrb[0].mxu0
    %v1742 = vadd.f32 %v289, %v1741
    %v1743 = vpop.f32.mrb[0].mxu0
    %v1744 = vadd.f32 %v285, %v1743
    %v1745 = vpop.f32.mrb[0].mxu0
    %v1746 = vadd.f32 %v289, %v1745
    %1747 = vmatprep.mubr.bf16.mxu0 %v411
    %1748 = vmatmul.mubr.bf16.gmra.mrb[0].mxu0 %v410
    %v1749 = vpop.f32.mrb[0].mxu0
    %v1750 = vadd.f32 %v285, %v1749
    %v1751 = vpop.f32.mrb[0].mxu0
    %v1752 = vadd.f32 %v289, %v1751
    %v1753 = vpop.f32.mrb[0].mxu0
    %v1754 = vadd.f32 %v285, %v1753
    %v1755 = vpop.f32.mrb[0].mxu0
    %v1756 = vadd.f32 %v289, %v1755
    %1757 = vmatprep.mubr.bf16.mxu0 %v414
    %1758 = vmatmul.mubr.bf16.gmra.mrb[0].mxu0 %v413
    %v1759 = vpop.f32.mrb[0].mxu0
    %v1760 = vadd.f32 %v285, %v1759
    %v1761 = vpop.f32.mrb[0].mxu0
    %v1762 = vadd.f32 %v289, %v1761
    %v1763 = vpop.f32.mrb[0].mxu0
    %v1764 = vadd.f32 %v285, %v1763
    %v1765 = vpop.f32.mrb[0].mxu0
    %v1766 = vadd.f32 %v289, %v1765
    %1767 = vmatprep.mubr.bf16.mxu0 %v417
    %1768 = vmatmul.mubr.bf16.gmra.mrb[0].mxu0 %v416
    %v1769 = vpop.f32.mrb[0].mxu0
    %v1770 = vadd.f32 %v285, %v1769
    %v1771 = vpop.f32.mrb[0].mxu0
    %v1772 = vadd.f32 %v289, %v1771
    %v1773 = vpop.f32.mrb[0].mxu0
    %v1774 = vadd.f32 %v285, %v1773
    %v1775 = vpop.f32.mrb[0].mxu0
    %v1776 = vadd.f32 %v289, %v1775
    %1777 = vmatprep.mubr.bf16.mxu0 %v420
    %1778 = vmatmul.mubr.bf16.gmra.mrb[0].mxu0 %v419
    %v1779 = vpop.f32.mrb[0].mxu0
    %v1780 = vadd.f32 %v285, %v1779
    %v1781 = vpop.f32.mrb[0].mxu0
    %v1782 = vadd.f32 %v289, %v1781
    %v1783 = vpop.f32.mrb[0].mxu0
    %v1784 = vadd.f32 %v285, %v1783
    %v1785 = vpop.f32.mrb[0].mxu0
    %v1786 = vadd.f32 %v289, %v1785
    %1787 = vmatprep.mubr.bf16.mxu0 %v423
    %1788 = vmatmul.mubr.bf16.gmra.mrb[0].mxu0 %v422
    %v1789 = vpop.f32.mrb[0].mxu0
    %v1790 = vadd.f32 %v285, %v1789
    %v1791 = vpop.f32.mrb[0].mxu0
    %v1792 = vadd.f32 %v289, %v1791
    %v1793 = vpop.f32.mrb[0].mxu0
    %v1794 = vadd.f32 %v285, %v1793
    %v1795 = vpop.f32.mrb[0].mxu0
    %v1796 = vadd.f32 %v289, %v1795
    %1797 = vmatprep.mubr.bf16.mxu0 %v426
    %1798 = vmatmul.mubr.bf16.gmra.mrb[0].mxu0 %v425
    %v1799 = vpop.f32.mrb[0].mxu0
    %v1800 = vadd.f32 %v285, %v1799
    %v1801 = vpop.f32.mrb[0].mxu0
    %v1802 = vadd.f32 %v289, %v1801
    %v1803 = vpop.f32.mrb[0].mxu0
    %v1804 = vadd.f32 %v285, %v1803
    %v1805 = vpop.f32.mrb[0].mxu0
    %v1806 = vadd.f32 %v289, %v1805
    %1807 = vdwg.mxu0
    %1808 = vmatprep.subr.bf16.mxu0 %v1207
    %1809 = vmatpush1.bf16.msra.mxu0 %v1206
    %1810 = vmatprep.subr.bf16.mxu0 %v1217
    %1811 = vmatpush1.bf16.msra.mxu0 %v1216
    %1812 = vmatprep.subr.bf16.mxu0 %v1227
    %1813 = vmatpush1.bf16.msra.mxu0 %v1226
    %1814 = vmatprep.subr.bf16.mxu0 %v1237
    %1815 = vmatpush1.bf16.msra.mxu0 %v1236
    %1816 = vmatprep.subr.bf16.mxu0 0
    %1817 = vmatpush1.bf16.msra.mxu0 0
    %1818 = vmatprep.subr.bf16.mxu0 0
    %1819 = vmatpush1.bf16.msra.mxu0 0
    %1820 = vmatprep.subr.bf16.mxu0 0
    %1821 = vmatpush1.bf16.msra.mxu0 0
    %1822 = vmatprep.subr.bf16.mxu0 0
    %1823 = vmatpush1.bf16.msra.mxu0 0
    %1824 = vmatprep.subr.bf16.mxu0 0
    %1825 = vmatpush1.bf16.msra.mxu0 0
    %1826 = vmatprep.subr.bf16.mxu0 0
    %1827 = vmatpush1.bf16.msra.mxu0 0
    %1828 = vmatprep.subr.bf16.mxu0 0
    %1829 = vmatpush1.bf16.msra.mxu0 0
    %1830 = vmatprep.subr.bf16.mxu0 0
    %1831 = vmatpush1.bf16.msra.mxu0 0
    %1832 = vmatprep.subr.bf16.mxu0 0
    %1833 = vmatpush1.bf16.msra.mxu0 0
    %1834 = vmatprep.subr.bf16.mxu0 0
    %1835 = vmatpush1.bf16.msra.mxu0 0
    %1836 = vmatprep.subr.bf16.mxu0 0
    %1837 = vmatpush1.bf16.msra.mxu0 0
    %1838 = vmatprep.subr.bf16.mxu0 0
    %1839 = vmatpush1.bf16.msra.mxu0 0
    %1840 = vmatprep.mubr.bf16.mxu0 0
    %1841 = vmatmul.mubr.bf16.gmra.mrb[0].mxu0 %v1446
    %v1842 = vpop.f32.mrb[0].mxu0
    %v1843 = vadd.f32 %v1730, %v1842
    %v1844 = vpop.f32.mrb[0].mxu0
    %v1845 = vadd.f32 %v1732, %v1844
    %v1846 = vpop.f32.mrb[0].mxu0
    %v1847 = vadd.f32 %v1734, %v1846
    %v1848 = vpop.f32.mrb[0].mxu0
    %v1849 = vadd.f32 %v1736, %v1848
    %1850 = vmatprep.mubr.bf16.mxu0 0
    %1851 = vmatmul.mubr.bf16.gmra.mrb[0].mxu0 %v1449
    %v1852 = vpop.f32.mrb[0].mxu0
    %v1853 = vadd.f32 %v1740, %v1852
    %v1854 = vpop.f32.mrb[0].mxu0
    %v1855 = vadd.f32 %v1742, %v1854
    %v1856 = vpop.f32.mrb[0].mxu0
    %v1857 = vadd.f32 %v1744, %v1856
    %v1858 = vpop.f32.mrb[0].mxu0
    %v1859 = vadd.f32 %v1746, %v1858
    %1860 = vmatprep.mubr.bf16.mxu0 0
    %1861 = vmatmul.mubr.bf16.gmra.mrb[0].mxu0 %v1452
    %v1862 = vpop.f32.mrb[0].mxu0
    %v1863 = vadd.f32 %v1750, %v1862
    %v1864 = vpop.f32.mrb[0].mxu0
    %v1865 = vadd.f32 %v1752, %v1864
    %v1866 = vpop.f32.mrb[0].mxu0
    %v1867 = vadd.f32 %v1754, %v1866
    %v1868 = vpop.f32.mrb[0].mxu0
    %v1869 = vadd.f32 %v1756, %v1868
    %1870 = vmatprep.mubr.bf16.mxu0 0
    %1871 = vmatmul.mubr.bf16.gmra.mrb[0].mxu0 %v1455
    %v1872 = vpop.f32.mrb[0].mxu0
    %v1873 = vadd.f32 %v1760, %v1872
    %v1874 = vpop.f32.mrb[0].mxu0
    %v1875 = vadd.f32 %v1762, %v1874
    %v1876 = vpop.f32.mrb[0].mxu0
    %v1877 = vadd.f32 %v1764, %v1876
    %v1878 = vpop.f32.mrb[0].mxu0
    %v1879 = vadd.f32 %v1766, %v1878
    %1880 = vmatprep.mubr.bf16.mxu0 0
    %1881 = vmatmul.mubr.bf16.gmra.mrb[0].mxu0 %v1458
    %v1882 = vpop.f32.mrb[0].mxu0
    %v1883 = vadd.f32 %v1770, %v1882
    %v1884 = vpop.f32.mrb[0].mxu0
    %v1885 = vadd.f32 %v1772, %v1884
    %v1886 = vpop.f32.mrb[0].mxu0
    %v1887 = vadd.f32 %v1774, %v1886
    %v1888 = vpop.f32.mrb[0].mxu0
    %v1889 = vadd.f32 %v1776, %v1888
    %1890 = vmatprep.mubr.bf16.mxu0 0
    %1891 = vmatmul.mubr.bf16.gmra.mrb[0].mxu0 %v1461
    %v1892 = vpop.f32.mrb[0].mxu0
    %v1893 = vadd.f32 %v1780, %v1892
    %v1894 = vpop.f32.mrb[0].mxu0
    %v1895 = vadd.f32 %v1782, %v1894
    %v1896 = vpop.f32.mrb[0].mxu0
    %v1897 = vadd.f32 %v1784, %v1896
    %v1898 = vpop.f32.mrb[0].mxu0
    %v1899 = vadd.f32 %v1786, %v1898
    %1900 = vmatprep.mubr.bf16.mxu0 0
    %1901 = vmatmul.mubr.bf16.gmra.mrb[0].mxu0 %v1464
    %v1902 = vpop.f32.mrb[0].mxu0
    %v1903 = vadd.f32 %v1790, %v1902
    %v1904 = vpop.f32.mrb[0].mxu0
    %v1905 = vadd.f32 %v1792, %v1904
    %v1906 = vpop.f32.mrb[0].mxu0
    %v1907 = vadd.f32 %v1794, %v1906
    %v1908 = vpop.f32.mrb[0].mxu0
    %v1909 = vadd.f32 %v1796, %v1908
    %1910 = vmatprep.mubr.bf16.mxu0 0
    %1911 = vmatmul.mubr.bf16.gmra.mrb[0].mxu0 %v1467
    %v1912 = vpop.f32.mrb[0].mxu0
    %v1913 = vadd.f32 %v1800, %v1912
    %v1914 = vpop.f32.mrb[0].mxu0
    %v1915 = vadd.f32 %v1802, %v1914
    %v1916 = vpop.f32.mrb[0].mxu0
    %v1917 = vadd.f32 %v1804, %v1916
    %v1918 = vpop.f32.mrb[0].mxu0
    %v1919 = vadd.f32 %v1806, %v1918
    %1920 = vdwg.mxu0
    %1921 = vmatprep.subr.bf16.mxu0 %v1049
    %1922 = vmatpush1.bf16.msra.mxu0 %v1048
    %1923 = vmatprep.subr.bf16.mxu0 %v1059
    %1924 = vmatpush1.bf16.msra.mxu0 %v1058
    %1925 = vmatprep.subr.bf16.mxu0 %v1069
    %1926 = vmatpush1.bf16.msra.mxu0 %v1068
    %1927 = vmatprep.subr.bf16.mxu0 %v1079
    %1928 = vmatpush1.bf16.msra.mxu0 %v1078
    %1929 = vmatprep.subr.bf16.mxu0 %v1089
    %1930 = vmatpush1.bf16.msra.mxu0 %v1088
    %1931 = vmatprep.subr.bf16.mxu0 %v1099
    %1932 = vmatpush1.bf16.msra.mxu0 %v1098
    %1933 = vmatprep.subr.bf16.mxu0 %v1109
    %1934 = vmatpush1.bf16.msra.mxu0 %v1108
    %1935 = vmatprep.subr.bf16.mxu0 %v1119
    %1936 = vmatpush1.bf16.msra.mxu0 %v1118
    %1937 = vmatprep.subr.bf16.mxu0 %v1129
    %1938 = vmatpush1.bf16.msra.mxu0 %v1128
    %1939 = vmatprep.subr.bf16.mxu0 %v1139
    %1940 = vmatpush1.bf16.msra.mxu0 %v1138
    %1941 = vmatprep.subr.bf16.mxu0 %v1149
    %1942 = vmatpush1.bf16.msra.mxu0 %v1148
    %1943 = vmatprep.subr.bf16.mxu0 %v1159
    %1944 = vmatpush1.bf16.msra.mxu0 %v1158
    %1945 = vmatprep.subr.bf16.mxu0 %v1169
    %1946 = vmatpush1.bf16.msra.mxu0 %v1168
    %1947 = vmatprep.subr.bf16.mxu0 %v1179
    %1948 = vmatpush1.bf16.msra.mxu0 %v1178
    %1949 = vmatprep.subr.bf16.mxu0 %v1189
    %1950 = vmatpush1.bf16.msra.mxu0 %v1188
    %1951 = vmatprep.subr.bf16.mxu0 %v1199
    %1952 = vmatpush1.bf16.msra.mxu0 %v1198
    %1953 = vmatprep.mubr.bf16.mxu0 %v405
    %1954 = vmatmul.mubr.bf16.gmra.mrb[0].mxu0 %v404
    %v1955 = vpop.f32.mrb[0].mxu0
    %v1956 = vadd.f32 %v293, %v1955
    %v1957 = vpop.f32.mrb[0].mxu0
    %v1958 = vadd.f32 %v297, %v1957
    %v1959 = vpop.f32.mrb[0].mxu0
    %v1960 = vadd.f32 %v293, %v1959
    %v1961 = vpop.f32.mrb[0].mxu0
    %v1962 = vadd.f32 %v297, %v1961
    %1963 = vmatprep.mubr.bf16.mxu0 %v408
    %1964 = vmatmul.mubr.bf16.gmra.mrb[0].mxu0 %v407
    %v1965 = vpop.f32.mrb[0].mxu0
    %v1966 = vadd.f32 %v293, %v1965
    %v1967 = vpop.f32.mrb[0].mxu0
    %v1968 = vadd.f32 %v297, %v1967
    %v1969 = vpop.f32.mrb[0].mxu0
    %v1970 = vadd.f32 %v293, %v1969
    %v1971 = vpop.f32.mrb[0].mxu0
    %v1972 = vadd.f32 %v297, %v1971
    %1973 = vmatprep.mubr.bf16.mxu0 %v411
    %1974 = vmatmul.mubr.bf16.gmra.mrb[0].mxu0 %v410
    %v1975 = vpop.f32.mrb[0].mxu0
    %v1976 = vadd.f32 %v293, %v1975
    %v1977 = vpop.f32.mrb[0].mxu0
    %v1978 = vadd.f32 %v297, %v1977
    %v1979 = vpop.f32.mrb[0].mxu0
    %v1980 = vadd.f32 %v293, %v1979
    %v1981 = vpop.f32.mrb[0].mxu0
    %v1982 = vadd.f32 %v297, %v1981
    %1983 = vmatprep.mubr.bf16.mxu0 %v414
    %1984 = vmatmul.mubr.bf16.gmra.mrb[0].mxu0 %v413
    %v1985 = vpop.f32.mrb[0].mxu0
    %v1986 = vadd.f32 %v293, %v1985
    %v1987 = vpop.f32.mrb[0].mxu0
    %v1988 = vadd.f32 %v297, %v1987
    %v1989 = vpop.f32.mrb[0].mxu0
    %v1990 = vadd.f32 %v293, %v1989
    %v1991 = vpop.f32.mrb[0].mxu0
    %v1992 = vadd.f32 %v297, %v1991
    %1993 = vmatprep.mubr.bf16.mxu0 %v417
    %1994 = vmatmul.mubr.bf16.gmra.mrb[0].mxu0 %v416
    %v1995 = vpop.f32.mrb[0].mxu0
    %v1996 = vadd.f32 %v293, %v1995
    %v1997 = vpop.f32.mrb[0].mxu0
    %v1998 = vadd.f32 %v297, %v1997
    %v1999 = vpop.f32.mrb[0].mxu0
    %v2000 = vadd.f32 %v293, %v1999
    %v2001 = vpop.f32.mrb[0].mxu0
    %v2002 = vadd.f32 %v297, %v2001
    %2003 = vmatprep.mubr.bf16.mxu0 %v420
    %2004 = vmatmul.mubr.bf16.gmra.mrb[0].mxu0 %v419
    %v2005 = vpop.f32.mrb[0].mxu0
    %v2006 = vadd.f32 %v293, %v2005
    %v2007 = vpop.f32.mrb[0].mxu0
    %v2008 = vadd.f32 %v297, %v2007
    %v2009 = vpop.f32.mrb[0].mxu0
    %v2010 = vadd.f32 %v293, %v2009
    %v2011 = vpop.f32.mrb[0].mxu0
    %v2012 = vadd.f32 %v297, %v2011
    %2013 = vmatprep.mubr.bf16.mxu0 %v423
    %2014 = vmatmul.mubr.bf16.gmra.mrb[0].mxu0 %v422
    %v2015 = vpop.f32.mrb[0].mxu0
    %v2016 = vadd.f32 %v293, %v2015
    %v2017 = vpop.f32.mrb[0].mxu0
    %v2018 = vadd.f32 %v297, %v2017
    %v2019 = vpop.f32.mrb[0].mxu0
    %v2020 = vadd.f32 %v293, %v2019
    %v2021 = vpop.f32.mrb[0].mxu0
    %v2022 = vadd.f32 %v297, %v2021
    %2023 = vmatprep.mubr.bf16.mxu0 %v426
    %2024 = vmatmul.mubr.bf16.gmra.mrb[0].mxu0 %v425
    %v2025 = vpop.f32.mrb[0].mxu0
    %v2026 = vadd.f32 %v293, %v2025
    %v2027 = vpop.f32.mrb[0].mxu0
    %v2028 = vadd.f32 %v297, %v2027
    %v2029 = vpop.f32.mrb[0].mxu0
    %v2030 = vadd.f32 %v293, %v2029
    %v2031 = vpop.f32.mrb[0].mxu0
    %v2032 = vadd.f32 %v297, %v2031
    %2033 = vdwg.mxu0
    %2034 = vmatprep.subr.bf16.mxu0 %v1209
    %2035 = vmatpush1.bf16.msra.mxu0 %v1208
    %2036 = vmatprep.subr.bf16.mxu0 %v1219
    %2037 = vmatpush1.bf16.msra.mxu0 %v1218
    %2038 = vmatprep.subr.bf16.mxu0 %v1229
    %2039 = vmatpush1.bf16.msra.mxu0 %v1228
    %2040 = vmatprep.subr.bf16.mxu0 %v1239
    %2041 = vmatpush1.bf16.msra.mxu0 %v1238
    %2042 = vmatprep.subr.bf16.mxu0 0
    %2043 = vmatpush1.bf16.msra.mxu0 0
    %2044 = vmatprep.subr.bf16.mxu0 0
    %2045 = vmatpush1.bf16.msra.mxu0 0
    %2046 = vmatprep.subr.bf16.mxu0 0
    %2047 = vmatpush1.bf16.msra.mxu0 0
    %2048 = vmatprep.subr.bf16.mxu0 0
    %2049 = vmatpush1.bf16.msra.mxu0 0
    %2050 = vmatprep.subr.bf16.mxu0 0
    %2051 = vmatpush1.bf16.msra.mxu0 0
    %2052 = vmatprep.subr.bf16.mxu0 0
    %2053 = vmatpush1.bf16.msra.mxu0 0
    %2054 = vmatprep.subr.bf16.mxu0 0
    %2055 = vmatpush1.bf16.msra.mxu0 0
    %2056 = vmatprep.subr.bf16.mxu0 0
    %2057 = vmatpush1.bf16.msra.mxu0 0
    %2058 = vmatprep.subr.bf16.mxu0 0
    %2059 = vmatpush1.bf16.msra.mxu0 0
    %2060 = vmatprep.subr.bf16.mxu0 0
    %2061 = vmatpush1.bf16.msra.mxu0 0
    %2062 = vmatprep.subr.bf16.mxu0 0
    %2063 = vmatpush1.bf16.msra.mxu0 0
    %2064 = vmatprep.subr.bf16.mxu0 0
    %2065 = vmatpush1.bf16.msra.mxu0 0
    %2066 = vmatprep.mubr.bf16.mxu0 0
    %2067 = vmatmul.mubr.bf16.gmra.mrb[0].mxu0 %v1446
    %v2068 = vpop.f32.mrb[0].mxu0
    %v2069 = vadd.f32 %v1956, %v2068
    %v2070 = vpop.f32.mrb[0].mxu0
    %v2071 = vadd.f32 %v1958, %v2070
    %v2072 = vpop.f32.mrb[0].mxu0
    %v2073 = vadd.f32 %v1960, %v2072
    %v2074 = vpop.f32.mrb[0].mxu0
    %v2075 = vadd.f32 %v1962, %v2074
    %2076 = vmatprep.mubr.bf16.mxu0 0
    %2077 = vmatmul.mubr.bf16.gmra.mrb[0].mxu0 %v1449
    %v2078 = vpop.f32.mrb[0].mxu0
    %v2079 = vadd.f32 %v1966, %v2078
    %v2080 = vpop.f32.mrb[0].mxu0
    %v2081 = vadd.f32 %v1968, %v2080
    %v2082 = vpop.f32.mrb[0].mxu0
    %v2083 = vadd.f32 %v1970, %v2082
    %v2084 = vpop.f32.mrb[0].mxu0
    %v2085 = vadd.f32 %v1972, %v2084
    %2086 = vmatprep.mubr.bf16.mxu0 0
    %2087 = vmatmul.mubr.bf16.gmra.mrb[0].mxu0 %v1452
    %v2088 = vpop.f32.mrb[0].mxu0
    %v2089 = vadd.f32 %v1976, %v2088
    %v2090 = vpop.f32.mrb[0].mxu0
    %v2091 = vadd.f32 %v1978, %v2090
    %v2092 = vpop.f32.mrb[0].mxu0
    %v2093 = vadd.f32 %v1980, %v2092
    %v2094 = vpop.f32.mrb[0].mxu0
    %v2095 = vadd.f32 %v1982, %v2094
    %2096 = vmatprep.mubr.bf16.mxu0 0
    %2097 = vmatmul.mubr.bf16.gmra.mrb[0].mxu0 %v1455
    %v2098 = vpop.f32.mrb[0].mxu0
    %v2099 = vadd.f32 %v1986, %v2098
    %v2100 = vpop.f32.mrb[0].mxu0
    %v2101 = vadd.f32 %v1988, %v2100
    %v2102 = vpop.f32.mrb[0].mxu0
    %v2103 = vadd.f32 %v1990, %v2102
    %v2104 = vpop.f32.mrb[0].mxu0
    %v2105 = vadd.f32 %v1992, %v2104
    %2106 = vmatprep.mubr.bf16.mxu0 0
    %2107 = vmatmul.mubr.bf16.gmra.mrb[0].mxu0 %v1458
    %v2108 = vpop.f32.mrb[0].mxu0
    %v2109 = vadd.f32 %v1996, %v2108
    %v2110 = vpop.f32.mrb[0].mxu0
    %v2111 = vadd.f32 %v1998, %v2110
    %v2112 = vpop.f32.mrb[0].mxu0
    %v2113 = vadd.f32 %v2000, %v2112
    %v2114 = vpop.f32.mrb[0].mxu0
    %v2115 = vadd.f32 %v2002, %v2114
    %2116 = vmatprep.mubr.bf16.mxu0 0
    %2117 = vmatmul.mubr.bf16.gmra.mrb[0].mxu0 %v1461
    %v2118 = vpop.f32.mrb[0].mxu0
    %v2119 = vadd.f32 %v2006, %v2118
    %v2120 = vpop.f32.mrb[0].mxu0
    %v2121 = vadd.f32 %v2008, %v2120
    %v2122 = vpop.f32.mrb[0].mxu0
    %v2123 = vadd.f32 %v2010, %v2122
    %v2124 = vpop.f32.mrb[0].mxu0
    %v2125 = vadd.f32 %v2012, %v2124
    %2126 = vmatprep.mubr.bf16.mxu0 0
    %2127 = vmatmul.mubr.bf16.gmra.mrb[0].mxu0 %v1464
    %v2128 = vpop.f32.mrb[0].mxu0
    %v2129 = vadd.f32 %v2016, %v2128
    %v2130 = vpop.f32.mrb[0].mxu0
    %v2131 = vadd.f32 %v2018, %v2130
    %v2132 = vpop.f32.mrb[0].mxu0
    %v2133 = vadd.f32 %v2020, %v2132
    %v2134 = vpop.f32.mrb[0].mxu0
    %v2135 = vadd.f32 %v2022, %v2134
    %2136 = vmatprep.mubr.bf16.mxu0 0
    %2137 = vmatmul.mubr.bf16.gmra.mrb[0].mxu0 %v1467
    %v2138 = vpop.f32.mrb[0].mxu0
    %v2139 = vadd.f32 %v2026, %v2138
    %v2140 = vpop.f32.mrb[0].mxu0
    %v2141 = vadd.f32 %v2028, %v2140
    %v2142 = vpop.f32.mrb[0].mxu0
    %v2143 = vadd.f32 %v2030, %v2142
    %v2144 = vpop.f32.mrb[0].mxu0
    %v2145 = vadd.f32 %v2032, %v2144
    %2146 = vdwg.mxu0
    %2147 = vmatprep.subr.bf16.mxu0 %v1051
    %2148 = vmatpush1.bf16.msra.mxu0 %v1050
    %2149 = vmatprep.subr.bf16.mxu0 %v1061
    %2150 = vmatpush1.bf16.msra.mxu0 %v1060
    %2151 = vmatprep.subr.bf16.mxu0 %v1071
    %2152 = vmatpush1.bf16.msra.mxu0 %v1070
    %2153 = vmatprep.subr.bf16.mxu0 %v1081
    %2154 = vmatpush1.bf16.msra.mxu0 %v1080
    %2155 = vmatprep.subr.bf16.mxu0 %v1091
    %2156 = vmatpush1.bf16.msra.mxu0 %v1090
    %2157 = vmatprep.subr.bf16.mxu0 %v1101
    %2158 = vmatpush1.bf16.msra.mxu0 %v1100
    %2159 = vmatprep.subr.bf16.mxu0 %v1111
    %2160 = vmatpush1.bf16.msra.mxu0 %v1110
    %2161 = vmatprep.subr.bf16.mxu0 %v1121
    %2162 = vmatpush1.bf16.msra.mxu0 %v1120
    %2163 = vmatprep.subr.bf16.mxu0 %v1131
    %2164 = vmatpush1.bf16.msra.mxu0 %v1130
    %2165 = vmatprep.subr.bf16.mxu0 %v1141
    %2166 = vmatpush1.bf16.msra.mxu0 %v1140
    %2167 = vmatprep.subr.bf16.mxu0 %v1151
    %2168 = vmatpush1.bf16.msra.mxu0 %v1150
    %2169 = vmatprep.subr.bf16.mxu0 %v1161
    %2170 = vmatpush1.bf16.msra.mxu0 %v1160
    %2171 = vmatprep.subr.bf16.mxu0 %v1171
    %2172 = vmatpush1.bf16.msra.mxu0 %v1170
    %2173 = vmatprep.subr.bf16.mxu0 %v1181
    %2174 = vmatpush1.bf16.msra.mxu0 %v1180
    %2175 = vmatprep.subr.bf16.mxu0 %v1191
    %2176 = vmatpush1.bf16.msra.mxu0 %v1190
    %2177 = vmatprep.subr.bf16.mxu0 %v1201
    %2178 = vmatpush1.bf16.msra.mxu0 %v1200
    %2179 = vmatprep.mubr.bf16.mxu0 %v405
    %2180 = vmatmul.mubr.bf16.gmra.mrb[0].mxu0 %v404
    %v2181 = vpop.f32.mrb[0].mxu0
    %v2182 = vadd.f32 %v301, %v2181
    %v2183 = vpop.f32.mrb[0].mxu0
    %v2184 = vadd.f32 %v305, %v2183
    %v2185 = vpop.f32.mrb[0].mxu0
    %v2186 = vadd.f32 %v301, %v2185
    %v2187 = vpop.f32.mrb[0].mxu0
    %v2188 = vadd.f32 %v305, %v2187
    %2189 = vmatprep.mubr.bf16.mxu0 %v408
    %2190 = vmatmul.mubr.bf16.gmra.mrb[0].mxu0 %v407
    %v2191 = vpop.f32.mrb[0].mxu0
    %v2192 = vadd.f32 %v301, %v2191
    %v2193 = vpop.f32.mrb[0].mxu0
    %v2194 = vadd.f32 %v305, %v2193
    %v2195 = vpop.f32.mrb[0].mxu0
    %v2196 = vadd.f32 %v301, %v2195
    %v2197 = vpop.f32.mrb[0].mxu0
    %v2198 = vadd.f32 %v305, %v2197
    %2199 = vmatprep.mubr.bf16.mxu0 %v411
    %2200 = vmatmul.mubr.bf16.gmra.mrb[0].mxu0 %v410
    %v2201 = vpop.f32.mrb[0].mxu0
    %v2202 = vadd.f32 %v301, %v2201
    %v2203 = vpop.f32.mrb[0].mxu0
    %v2204 = vadd.f32 %v305, %v2203
    %v2205 = vpop.f32.mrb[0].mxu0
    %v2206 = vadd.f32 %v301, %v2205
    %v2207 = vpop.f32.mrb[0].mxu0
    %v2208 = vadd.f32 %v305, %v2207
    %2209 = vmatprep.mubr.bf16.mxu0 %v414
    %2210 = vmatmul.mubr.bf16.gmra.mrb[0].mxu0 %v413
    %v2211 = vpop.f32.mrb[0].mxu0
    %v2212 = vadd.f32 %v301, %v2211
    %v2213 = vpop.f32.mrb[0].mxu0
    %v2214 = vadd.f32 %v305, %v2213
    %v2215 = vpop.f32.mrb[0].mxu0
    %v2216 = vadd.f32 %v301, %v2215
    %v2217 = vpop.f32.mrb[0].mxu0
    %v2218 = vadd.f32 %v305, %v2217
    %2219 = vmatprep.mubr.bf16.mxu0 %v417
    %2220 = vmatmul.mubr.bf16.gmra.mrb[0].mxu0 %v416
    %v2221 = vpop.f32.mrb[0].mxu0
    %v2222 = vadd.f32 %v301, %v2221
    %v2223 = vpop.f32.mrb[0].mxu0
    %v2224 = vadd.f32 %v305, %v2223
    %v2225 = vpop.f32.mrb[0].mxu0
    %v2226 = vadd.f32 %v301, %v2225
    %v2227 = vpop.f32.mrb[0].mxu0
    %v2228 = vadd.f32 %v305, %v2227
    %2229 = vmatprep.mubr.bf16.mxu0 %v420
    %2230 = vmatmul.mubr.bf16.gmra.mrb[0].mxu0 %v419
    %v2231 = vpop.f32.mrb[0].mxu0
    %v2232 = vadd.f32 %v301, %v2231
    %v2233 = vpop.f32.mrb[0].mxu0
    %v2234 = vadd.f32 %v305, %v2233
    %v2235 = vpop.f32.mrb[0].mxu0
    %v2236 = vadd.f32 %v301, %v2235
    %v2237 = vpop.f32.mrb[0].mxu0
    %v2238 = vadd.f32 %v305, %v2237
    %2239 = vmatprep.mubr.bf16.mxu0 %v423
    %2240 = vmatmul.mubr.bf16.gmra.mrb[0].mxu0 %v422
    %v2241 = vpop.f32.mrb[0].mxu0
    %v2242 = vadd.f32 %v301, %v2241
    %v2243 = vpop.f32.mrb[0].mxu0
    %v2244 = vadd.f32 %v305, %v2243
    %v2245 = vpop.f32.mrb[0].mxu0
    %v2246 = vadd.f32 %v301, %v2245
    %v2247 = vpop.f32.mrb[0].mxu0
    %v2248 = vadd.f32 %v305, %v2247
    %2249 = vmatprep.mubr.bf16.mxu0 %v426
    %2250 = vmatmul.mubr.bf16.gmra.mrb[0].mxu0 %v425
    %v2251 = vpop.f32.mrb[0].mxu0
    %v2252 = vadd.f32 %v301, %v2251
    %v2253 = vpop.f32.mrb[0].mxu0
    %v2254 = vadd.f32 %v305, %v2253
    %v2255 = vpop.f32.mrb[0].mxu0
    %v2256 = vadd.f32 %v301, %v2255
    %v2257 = vpop.f32.mrb[0].mxu0
    %v2258 = vadd.f32 %v305, %v2257
    %2259 = vdwg.mxu0
    %2260 = vmatprep.subr.bf16.mxu0 %v1211
    %2261 = vmatpush1.bf16.msra.mxu0 %v1210
    %2262 = vmatprep.subr.bf16.mxu0 %v1221
    %2263 = vmatpush1.bf16.msra.mxu0 %v1220
    %2264 = vmatprep.subr.bf16.mxu0 %v1231
    %2265 = vmatpush1.bf16.msra.mxu0 %v1230
    %2266 = vmatprep.subr.bf16.mxu0 %v1241
    %2267 = vmatpush1.bf16.msra.mxu0 %v1240
    %2268 = vmatprep.subr.bf16.mxu0 0
    %2269 = vmatpush1.bf16.msra.mxu0 0
    %2270 = vmatprep.subr.bf16.mxu0 0
    %2271 = vmatpush1.bf16.msra.mxu0 0
    %2272 = vmatprep.subr.bf16.mxu0 0
    %2273 = vmatpush1.bf16.msra.mxu0 0
    %2274 = vmatprep.subr.bf16.mxu0 0
    %2275 = vmatpush1.bf16.msra.mxu0 0
    %2276 = vmatprep.subr.bf16.mxu0 0
    %2277 = vmatpush1.bf16.msra.mxu0 0
    %2278 = vmatprep.subr.bf16.mxu0 0
    %2279 = vmatpush1.bf16.msra.mxu0 0
    %2280 = vmatprep.subr.bf16.mxu0 0
    %2281 = vmatpush1.bf16.msra.mxu0 0
    %2282 = vmatprep.subr.bf16.mxu0 0
    %2283 = vmatpush1.bf16.msra.mxu0 0
    %2284 = vmatprep.subr.bf16.mxu0 0
    %2285 = vmatpush1.bf16.msra.mxu0 0
    %2286 = vmatprep.subr.bf16.mxu0 0
    %2287 = vmatpush1.bf16.msra.mxu0 0
    %2288 = vmatprep.subr.bf16.mxu0 0
    %2289 = vmatpush1.bf16.msra.mxu0 0
    %2290 = vmatprep.subr.bf16.mxu0 0
    %2291 = vmatpush1.bf16.msra.mxu0 0
    %2292 = vmatprep.mubr.bf16.mxu0 0
    %2293 = vmatmul.mubr.bf16.gmra.mrb[0].mxu0 %v1446
    %v2294 = vpop.f32.mrb[0].mxu0
    %v2295 = vadd.f32 %v2182, %v2294
    %v2296 = vpop.f32.mrb[0].mxu0
    %v2297 = vadd.f32 %v2184, %v2296
    %v2298 = vpop.f32.mrb[0].mxu0
    %v2299 = vadd.f32 %v2186, %v2298
    %v2300 = vpop.f32.mrb[0].mxu0
    %v2301 = vadd.f32 %v2188, %v2300
    %2302 = vmatprep.mubr.bf16.mxu0 0
    %2303 = vmatmul.mubr.bf16.gmra.mrb[0].mxu0 %v1449
    %v2304 = vpop.f32.mrb[0].mxu0
    %v2305 = vadd.f32 %v2192, %v2304
    %v2306 = vpop.f32.mrb[0].mxu0
    %v2307 = vadd.f32 %v2194, %v2306
    %v2308 = vpop.f32.mrb[0].mxu0
    %v2309 = vadd.f32 %v2196, %v2308
    %v2310 = vpop.f32.mrb[0].mxu0
    %v2311 = vadd.f32 %v2198, %v2310
    %2312 = vmatprep.mubr.bf16.mxu0 0
    %2313 = vmatmul.mubr.bf16.gmra.mrb[0].mxu0 %v1452
    %v2314 = vpop.f32.mrb[0].mxu0
    %v2315 = vadd.f32 %v2202, %v2314
    %v2316 = vpop.f32.mrb[0].mxu0
    %v2317 = vadd.f32 %v2204, %v2316
    %v2318 = vpop.f32.mrb[0].mxu0
    %v2319 = vadd.f32 %v2206, %v2318
    %v2320 = vpop.f32.mrb[0].mxu0
    %v2321 = vadd.f32 %v2208, %v2320
    %2322 = vmatprep.mubr.bf16.mxu0 0
    %2323 = vmatmul.mubr.bf16.gmra.mrb[0].mxu0 %v1455
    %v2324 = vpop.f32.mrb[0].mxu0
    %v2325 = vadd.f32 %v2212, %v2324
    %v2326 = vpop.f32.mrb[0].mxu0
    %v2327 = vadd.f32 %v2214, %v2326
    %v2328 = vpop.f32.mrb[0].mxu0
    %v2329 = vadd.f32 %v2216, %v2328
    %v2330 = vpop.f32.mrb[0].mxu0
    %v2331 = vadd.f32 %v2218, %v2330
    %2332 = vmatprep.mubr.bf16.mxu0 0
    %2333 = vmatmul.mubr.bf16.gmra.mrb[0].mxu0 %v1458
    %v2334 = vpop.f32.mrb[0].mxu0
    %v2335 = vadd.f32 %v2222, %v2334
    %v2336 = vpop.f32.mrb[0].mxu0
    %v2337 = vadd.f32 %v2224, %v2336
    %v2338 = vpop.f32.mrb[0].mxu0
    %v2339 = vadd.f32 %v2226, %v2338
    %v2340 = vpop.f32.mrb[0].mxu0
    %v2341 = vadd.f32 %v2228, %v2340
    %2342 = vmatprep.mubr.bf16.mxu0 0
    %2343 = vmatmul.mubr.bf16.gmra.mrb[0].mxu0 %v1461
    %v2344 = vpop.f32.mrb[0].mxu0
    %v2345 = vadd.f32 %v2232, %v2344
    %v2346 = vpop.f32.mrb[0].mxu0
    %v2347 = vadd.f32 %v2234, %v2346
    %v2348 = vpop.f32.mrb[0].mxu0
    %v2349 = vadd.f32 %v2236, %v2348
    %v2350 = vpop.f32.mrb[0].mxu0
    %v2351 = vadd.f32 %v2238, %v2350
    %2352 = vmatprep.mubr.bf16.mxu0 0
    %2353 = vmatmul.mubr.bf16.gmra.mrb[0].mxu0 %v1464
    %v2354 = vpop.f32.mrb[0].mxu0
    %v2355 = vadd.f32 %v2242, %v2354
    %v2356 = vpop.f32.mrb[0].mxu0
    %v2357 = vadd.f32 %v2244, %v2356
    %v2358 = vpop.f32.mrb[0].mxu0
    %v2359 = vadd.f32 %v2246, %v2358
    %v2360 = vpop.f32.mrb[0].mxu0
    %v2361 = vadd.f32 %v2248, %v2360
    %2362 = vmatprep.mubr.bf16.mxu0 0
    %2363 = vmatmul.mubr.bf16.gmra.mrb[0].mxu0 %v1467
    %v2364 = vpop.f32.mrb[0].mxu0
    %v2365 = vadd.f32 %v2252, %v2364
    %v2366 = vpop.f32.mrb[0].mxu0
    %v2367 = vadd.f32 %v2254, %v2366
    %v2368 = vpop.f32.mrb[0].mxu0
    %v2369 = vadd.f32 %v2256, %v2368
    %v2370 = vpop.f32.mrb[0].mxu0
    %v2371 = vadd.f32 %v2258, %v2370
    %2372 = vdwg.mxu0
    %2373 = vmatprep.subr.bf16.mxu0 %v1053
    %2374 = vmatpush1.bf16.msra.mxu0 %v1052
    %2375 = vmatprep.subr.bf16.mxu0 %v1063
    %2376 = vmatpush1.bf16.msra.mxu0 %v1062
    %2377 = vmatprep.subr.bf16.mxu0 %v1073
    %2378 = vmatpush1.bf16.msra.mxu0 %v1072
    %2379 = vmatprep.subr.bf16.mxu0 %v1083
    %2380 = vmatpush1.bf16.msra.mxu0 %v1082
    %2381 = vmatprep.subr.bf16.mxu0 %v1093
    %2382 = vmatpush1.bf16.msra.mxu0 %v1092
    %2383 = vmatprep.subr.bf16.mxu0 %v1103
    %2384 = vmatpush1.bf16.msra.mxu0 %v1102
    %2385 = vmatprep.subr.bf16.mxu0 %v1113
    %2386 = vmatpush1.bf16.msra.mxu0 %v1112
    %2387 = vmatprep.subr.bf16.mxu0 %v1123
    %2388 = vmatpush1.bf16.msra.mxu0 %v1122
    %2389 = vmatprep.subr.bf16.mxu0 %v1133
    %2390 = vmatpush1.bf16.msra.mxu0 %v1132
    %2391 = vmatprep.subr.bf16.mxu0 %v1143
    %2392 = vmatpush1.bf16.msra.mxu0 %v1142
    %2393 = vmatprep.subr.bf16.mxu0 %v1153
    %2394 = vmatpush1.bf16.msra.mxu0 %v1152
    %2395 = vmatprep.subr.bf16.mxu0 %v1163
    %2396 = vmatpush1.bf16.msra.mxu0 %v1162
    %2397 = vmatprep.subr.bf16.mxu0 %v1173
    %2398 = vmatpush1.bf16.msra.mxu0 %v1172
    %2399 = vmatprep.subr.bf16.mxu0 %v1183
    %2400 = vmatpush1.bf16.msra.mxu0 %v1182
    %2401 = vmatprep.subr.bf16.mxu0 %v1193
    %2402 = vmatpush1.bf16.msra.mxu0 %v1192
    %2403 = vmatprep.subr.bf16.mxu0 %v1203
    %2404 = vmatpush1.bf16.msra.mxu0 %v1202
    %2405 = vmatprep.mubr.bf16.mxu0 %v405
    %2406 = vmatmul.mubr.bf16.gmra.mrb[0].mxu0 %v404
    %v2407 = vpop.f32.mrb[0].mxu0
    %v2408 = vadd.f32 %v309, %v2407
    %v2409 = vpop.f32.mrb[0].mxu0
    %v2410 = vadd.f32 %v313, %v2409
    %v2411 = vpop.f32.mrb[0].mxu0
    %v2412 = vadd.f32 %v309, %v2411
    %v2413 = vpop.f32.mrb[0].mxu0
    %v2414 = vadd.f32 %v313, %v2413
    %2415 = vmatprep.mubr.bf16.mxu0 %v408
    %2416 = vmatmul.mubr.bf16.gmra.mrb[0].mxu0 %v407
    %v2417 = vpop.f32.mrb[0].mxu0
    %v2418 = vadd.f32 %v309, %v2417
    %v2419 = vpop.f32.mrb[0].mxu0
    %v2420 = vadd.f32 %v313, %v2419
    %v2421 = vpop.f32.mrb[0].mxu0
    %v2422 = vadd.f32 %v309, %v2421
    %v2423 = vpop.f32.mrb[0].mxu0
    %v2424 = vadd.f32 %v313, %v2423
    %2425 = vmatprep.mubr.bf16.mxu0 %v411
    %2426 = vmatmul.mubr.bf16.gmra.mrb[0].mxu0 %v410
    %v2427 = vpop.f32.mrb[0].mxu0
    %v2428 = vadd.f32 %v309, %v2427
    %v2429 = vpop.f32.mrb[0].mxu0
    %v2430 = vadd.f32 %v313, %v2429
    %v2431 = vpop.f32.mrb[0].mxu0
    %v2432 = vadd.f32 %v309, %v2431
    %v2433 = vpop.f32.mrb[0].mxu0
    %v2434 = vadd.f32 %v313, %v2433
    %2435 = vmatprep.mubr.bf16.mxu0 %v414
    %2436 = vmatmul.mubr.bf16.gmra.mrb[0].mxu0 %v413
    %v2437 = vpop.f32.mrb[0].mxu0
    %v2438 = vadd.f32 %v309, %v2437
    %v2439 = vpop.f32.mrb[0].mxu0
    %v2440 = vadd.f32 %v313, %v2439
    %v2441 = vpop.f32.mrb[0].mxu0
    %v2442 = vadd.f32 %v309, %v2441
    %v2443 = vpop.f32.mrb[0].mxu0
    %v2444 = vadd.f32 %v313, %v2443
    %2445 = vmatprep.mubr.bf16.mxu0 %v417
    %2446 = vmatmul.mubr.bf16.gmra.mrb[0].mxu0 %v416
    %v2447 = vpop.f32.mrb[0].mxu0
    %v2448 = vadd.f32 %v309, %v2447
    %v2449 = vpop.f32.mrb[0].mxu0
    %v2450 = vadd.f32 %v313, %v2449
    %v2451 = vpop.f32.mrb[0].mxu0
    %v2452 = vadd.f32 %v309, %v2451
    %v2453 = vpop.f32.mrb[0].mxu0
    %v2454 = vadd.f32 %v313, %v2453
    %2455 = vmatprep.mubr.bf16.mxu0 %v420
    %2456 = vmatmul.mubr.bf16.gmra.mrb[0].mxu0 %v419
    %v2457 = vpop.f32.mrb[0].mxu0
    %v2458 = vadd.f32 %v309, %v2457
    %v2459 = vpop.f32.mrb[0].mxu0
    %v2460 = vadd.f32 %v313, %v2459
    %v2461 = vpop.f32.mrb[0].mxu0
    %v2462 = vadd.f32 %v309, %v2461
    %v2463 = vpop.f32.mrb[0].mxu0
    %v2464 = vadd.f32 %v313, %v2463
    %2465 = vmatprep.mubr.bf16.mxu0 %v423
    %2466 = vmatmul.mubr.bf16.gmra.mrb[0].mxu0 %v422
    %v2467 = vpop.f32.mrb[0].mxu0
    %v2468 = vadd.f32 %v309, %v2467
    %v2469 = vpop.f32.mrb[0].mxu0
    %v2470 = vadd.f32 %v313, %v2469
    %v2471 = vpop.f32.mrb[0].mxu0
    %v2472 = vadd.f32 %v309, %v2471
    %v2473 = vpop.f32.mrb[0].mxu0
    %v2474 = vadd.f32 %v313, %v2473
    %2475 = vmatprep.mubr.bf16.mxu0 %v426
    %2476 = vmatmul.mubr.bf16.gmra.mrb[0].mxu0 %v425
    %v2477 = vpop.f32.mrb[0].mxu0
    %v2478 = vadd.f32 %v309, %v2477
    %v2479 = vpop.f32.mrb[0].mxu0
    %v2480 = vadd.f32 %v313, %v2479
    %v2481 = vpop.f32.mrb[0].mxu0
    %v2482 = vadd.f32 %v309, %v2481
    %v2483 = vpop.f32.mrb[0].mxu0
    %v2484 = vadd.f32 %v313, %v2483
    %2485 = vdwg.mxu0
    %2486 = vmatprep.subr.bf16.mxu0 %v1213
    %2487 = vmatpush1.bf16.msra.mxu0 %v1212
    %2488 = vmatprep.subr.bf16.mxu0 %v1223
    %2489 = vmatpush1.bf16.msra.mxu0 %v1222
    %2490 = vmatprep.subr.bf16.mxu0 %v1233
    %2491 = vmatpush1.bf16.msra.mxu0 %v1232
    %2492 = vmatprep.subr.bf16.mxu0 %v1243
    %2493 = vmatpush1.bf16.msra.mxu0 %v1242
    %2494 = vmatprep.subr.bf16.mxu0 0
    %2495 = vmatpush1.bf16.msra.mxu0 0
    %2496 = vmatprep.subr.bf16.mxu0 0
    %2497 = vmatpush1.bf16.msra.mxu0 0
    %2498 = vmatprep.subr.bf16.mxu0 0
    %2499 = vmatpush1.bf16.msra.mxu0 0
    %2500 = vmatprep.subr.bf16.mxu0 0
    %2501 = vmatpush1.bf16.msra.mxu0 0
    %2502 = vmatprep.subr.bf16.mxu0 0
    %2503 = vmatpush1.bf16.msra.mxu0 0
    %2504 = vmatprep.subr.bf16.mxu0 0
    %2505 = vmatpush1.bf16.msra.mxu0 0
    %2506 = vmatprep.subr.bf16.mxu0 0
    %2507 = vmatpush1.bf16.msra.mxu0 0
    %2508 = vmatprep.subr.bf16.mxu0 0
    %2509 = vmatpush1.bf16.msra.mxu0 0
    %2510 = vmatprep.subr.bf16.mxu0 0
    %2511 = vmatpush1.bf16.msra.mxu0 0
    %2512 = vmatprep.subr.bf16.mxu0 0
    %2513 = vmatpush1.bf16.msra.mxu0 0
    %2514 = vmatprep.subr.bf16.mxu0 0
    %2515 = vmatpush1.bf16.msra.mxu0 0
    %2516 = vmatprep.subr.bf16.mxu0 0
    %2517 = vmatpush1.bf16.msra.mxu0 0
    %2518 = vmatprep.mubr.bf16.mxu0 0
    %2519 = vmatmul.mubr.bf16.gmra.mrb[0].mxu0 %v1446
    %v2520 = vpop.f32.mrb[0].mxu0
    %v2521 = vadd.f32 %v2408, %v2520
    %v2522 = vpop.f32.mrb[0].mxu0
    %v2523 = vadd.f32 %v2410, %v2522
    %v2524 = vpop.f32.mrb[0].mxu0
    %v2525 = vadd.f32 %v2412, %v2524
    %v2526 = vpop.f32.mrb[0].mxu0
    %v2527 = vadd.f32 %v2414, %v2526
    %2528 = vmatprep.mubr.bf16.mxu0 0
    %2529 = vmatmul.mubr.bf16.gmra.mrb[0].mxu0 %v1449
    %v2530 = vpop.f32.mrb[0].mxu0
    %v2531 = vadd.f32 %v2418, %v2530
    %v2532 = vpop.f32.mrb[0].mxu0
    %v2533 = vadd.f32 %v2420, %v2532
    %v2534 = vpop.f32.mrb[0].mxu0
    %v2535 = vadd.f32 %v2422, %v2534
    %v2536 = vpop.f32.mrb[0].mxu0
    %v2537 = vadd.f32 %v2424, %v2536
    %2538 = vmatprep.mubr.bf16.mxu0 0
    %2539 = vmatmul.mubr.bf16.gmra.mrb[0].mxu0 %v1452
    %v2540 = vpop.f32.mrb[0].mxu0
    %v2541 = vadd.f32 %v2428, %v2540
    %v2542 = vpop.f32.mrb[0].mxu0
    %v2543 = vadd.f32 %v2430, %v2542
    %v2544 = vpop.f32.mrb[0].mxu0
    %v2545 = vadd.f32 %v2432, %v2544
    %v2546 = vpop.f32.mrb[0].mxu0
    %v2547 = vadd.f32 %v2434, %v2546
    %2548 = vmatprep.mubr.bf16.mxu0 0
    %2549 = vmatmul.mubr.bf16.gmra.mrb[0].mxu0 %v1455
    %v2550 = vpop.f32.mrb[0].mxu0
    %v2551 = vadd.f32 %v2438, %v2550
    %v2552 = vpop.f32.mrb[0].mxu0
    %v2553 = vadd.f32 %v2440, %v2552
    %v2554 = vpop.f32.mrb[0].mxu0
    %v2555 = vadd.f32 %v2442, %v2554
    %v2556 = vpop.f32.mrb[0].mxu0
    %v2557 = vadd.f32 %v2444, %v2556
    %2558 = vmatprep.mubr.bf16.mxu0 0
    %2559 = vmatmul.mubr.bf16.gmra.mrb[0].mxu0 %v1458
    %v2560 = vpop.f32.mrb[0].mxu0
    %v2561 = vadd.f32 %v2448, %v2560
    %v2562 = vpop.f32.mrb[0].mxu0
    %v2563 = vadd.f32 %v2450, %v2562
    %v2564 = vpop.f32.mrb[0].mxu0
    %v2565 = vadd.f32 %v2452, %v2564
    %v2566 = vpop.f32.mrb[0].mxu0
    %v2567 = vadd.f32 %v2454, %v2566
    %2568 = vmatprep.mubr.bf16.mxu0 0
    %2569 = vmatmul.mubr.bf16.gmra.mrb[0].mxu0 %v1461
    %v2570 = vpop.f32.mrb[0].mxu0
    %v2571 = vadd.f32 %v2458, %v2570
    %v2572 = vpop.f32.mrb[0].mxu0
    %v2573 = vadd.f32 %v2460, %v2572
    %v2574 = vpop.f32.mrb[0].mxu0
    %v2575 = vadd.f32 %v2462, %v2574
    %v2576 = vpop.f32.mrb[0].mxu0
    %v2577 = vadd.f32 %v2464, %v2576
    %2578 = vmatprep.mubr.bf16.mxu0 0
    %2579 = vmatmul.mubr.bf16.gmra.mrb[0].mxu0 %v1464
    %v2580 = vpop.f32.mrb[0].mxu0
    %v2581 = vadd.f32 %v2468, %v2580
    %v2582 = vpop.f32.mrb[0].mxu0
    %v2583 = vadd.f32 %v2470, %v2582
    %v2584 = vpop.f32.mrb[0].mxu0
    %v2585 = vadd.f32 %v2472, %v2584
    %v2586 = vpop.f32.mrb[0].mxu0
    %v2587 = vadd.f32 %v2474, %v2586
    %2588 = vmatprep.mubr.bf16.mxu0 0
    %2589 = vmatmul.mubr.bf16.gmra.mrb[0].mxu0 %v1467
    %v2590 = vpop.f32.mrb[0].mxu0
    %v2591 = vadd.f32 %v2478, %v2590
    %v2592 = vpop.f32.mrb[0].mxu0
    %v2593 = vadd.f32 %v2480, %v2592
    %v2594 = vpop.f32.mrb[0].mxu0
    %v2595 = vadd.f32 %v2482, %v2594
    %v2596 = vpop.f32.mrb[0].mxu0
    %v2597 = vadd.f32 %v2484, %v2596
    %2598 = vdwg.mxu0
    %v2599 = vxor.u32 %v1617, 2147483648
    %v2600 = vxor.u32 %v1619, 2147483648
    %v2601 = vxor.u32 %v1843, 2147483648
    %v2602 = vxor.u32 %v1845, 2147483648
    %v2603 = vxor.u32 %v2069, 2147483648
    %v2604 = vxor.u32 %v2071, 2147483648
    %v2605 = vxor.u32 %v2295, 2147483648
    %v2606 = vxor.u32 %v2297, 2147483648
    %v2607 = vxor.u32 %v2521, 2147483648
    %v2608 = vxor.u32 %v2523, 2147483648
    %v2609 = vxor.u32 %v1621, 2147483648
    %v2610 = vxor.u32 %v1623, 2147483648
    %v2611 = vxor.u32 %v1847, 2147483648
    %v2612 = vxor.u32 %v1849, 2147483648
    %v2613 = vxor.u32 %v2073, 2147483648
    %v2614 = vxor.u32 %v2075, 2147483648
    %v2615 = vxor.u32 %v2299, 2147483648
    %v2616 = vxor.u32 %v2301, 2147483648
    %v2617 = vxor.u32 %v2525, 2147483648
    %v2618 = vxor.u32 %v2527, 2147483648
    %v2619 = vxor.u32 %v1627, 2147483648
    %v2620 = vxor.u32 %v1629, 2147483648
    %v2621 = vxor.u32 %v1853, 2147483648
    %v2622 = vxor.u32 %v1855, 2147483648
    %v2623 = vxor.u32 %v2079, 2147483648
    %v2624 = vxor.u32 %v2081, 2147483648
    %v2625 = vxor.u32 %v2305, 2147483648
    %v2626 = vxor.u32 %v2307, 2147483648
    %v2627 = vxor.u32 %v2531, 2147483648
    %v2628 = vxor.u32 %v2533, 2147483648
    %v2629 = vxor.u32 %v1631, 2147483648
    %v2630 = vxor.u32 %v1633, 2147483648
    %v2631 = vxor.u32 %v1857, 2147483648
    %v2632 = vxor.u32 %v1859, 2147483648
    %v2633 = vxor.u32 %v2083, 2147483648
    %v2634 = vxor.u32 %v2085, 2147483648
    %v2635 = vxor.u32 %v2309, 2147483648
    %v2636 = vxor.u32 %v2311, 2147483648
    %v2637 = vxor.u32 %v2535, 2147483648
    %v2638 = vxor.u32 %v2537, 2147483648
    %v2639 = vxor.u32 %v1637, 2147483648
    %v2640 = vxor.u32 %v1639, 2147483648
    %v2641 = vxor.u32 %v1863, 2147483648
    %v2642 = vxor.u32 %v1865, 2147483648
    %v2643 = vxor.u32 %v2089, 2147483648
    %v2644 = vxor.u32 %v2091, 2147483648
    %v2645 = vxor.u32 %v2315, 2147483648
    %v2646 = vxor.u32 %v2317, 2147483648
    %v2647 = vxor.u32 %v2541, 2147483648
    %v2648 = vxor.u32 %v2543, 2147483648
    %v2649 = vxor.u32 %v1641, 2147483648
    %v2650 = vxor.u32 %v1643, 2147483648
    %v2651 = vxor.u32 %v1867, 2147483648
    %v2652 = vxor.u32 %v1869, 2147483648
    %v2653 = vxor.u32 %v2093, 2147483648
    %v2654 = vxor.u32 %v2095, 2147483648
    %v2655 = vxor.u32 %v2319, 2147483648
    %v2656 = vxor.u32 %v2321, 2147483648
    %v2657 = vxor.u32 %v2545, 2147483648
    %v2658 = vxor.u32 %v2547, 2147483648
    %v2659 = vxor.u32 %v1647, 2147483648
    %v2660 = vxor.u32 %v1649, 2147483648
    %v2661 = vxor.u32 %v1873, 2147483648
    %v2662 = vxor.u32 %v1875, 2147483648
    %v2663 = vxor.u32 %v2099, 2147483648
    %v2664 = vxor.u32 %v2101, 2147483648
    %v2665 = vxor.u32 %v2325, 2147483648
    %v2666 = vxor.u32 %v2327, 2147483648
    %v2667 = vxor.u32 %v2551, 2147483648
    %v2668 = vxor.u32 %v2553, 2147483648
    %v2669 = vxor.u32 %v1651, 2147483648
    %v2670 = vxor.u32 %v1653, 2147483648
    %v2671 = vxor.u32 %v1877, 2147483648
    %v2672 = vxor.u32 %v1879, 2147483648
    %v2673 = vxor.u32 %v2103, 2147483648
    %v2674 = vxor.u32 %v2105, 2147483648
    %v2675 = vxor.u32 %v2329, 2147483648
    %v2676 = vxor.u32 %v2331, 2147483648
    %v2677 = vxor.u32 %v2555, 2147483648
    %v2678 = vxor.u32 %v2557, 2147483648
    %v2679 = vxor.u32 %v1657, 2147483648
    %v2680 = vxor.u32 %v1659, 2147483648
    %v2681 = vxor.u32 %v1883, 2147483648
    %v2682 = vxor.u32 %v1885, 2147483648
    %v2683 = vxor.u32 %v2109, 2147483648
    %v2684 = vxor.u32 %v2111, 2147483648
    %v2685 = vxor.u32 %v2335, 2147483648
    %v2686 = vxor.u32 %v2337, 2147483648
    %v2687 = vxor.u32 %v2561, 2147483648
    %v2688 = vxor.u32 %v2563, 2147483648
    %v2689 = vxor.u32 %v1661, 2147483648
    %v2690 = vxor.u32 %v1663, 2147483648
    %v2691 = vxor.u32 %v1887, 2147483648
    %v2692 = vxor.u32 %v1889, 2147483648
    %v2693 = vxor.u32 %v2113, 2147483648
    %v2694 = vxor.u32 %v2115, 2147483648
    %v2695 = vxor.u32 %v2339, 2147483648
    %v2696 = vxor.u32 %v2341, 2147483648
    %v2697 = vxor.u32 %v2565, 2147483648
    %v2698 = vxor.u32 %v2567, 2147483648
    %v2699 = vxor.u32 %v1667, 2147483648
    %v2700 = vxor.u32 %v1669, 2147483648
    %v2701 = vxor.u32 %v1893, 2147483648
    %v2702 = vxor.u32 %v1895, 2147483648
    %v2703 = vxor.u32 %v2119, 2147483648
    %v2704 = vxor.u32 %v2121, 2147483648
    %v2705 = vxor.u32 %v2345, 2147483648
    %v2706 = vxor.u32 %v2347, 2147483648
    %v2707 = vxor.u32 %v2571, 2147483648
    %v2708 = vxor.u32 %v2573, 2147483648
    %v2709 = vxor.u32 %v1671, 2147483648
    %v2710 = vxor.u32 %v1673, 2147483648
    %v2711 = vxor.u32 %v1897, 2147483648
    %v2712 = vxor.u32 %v1899, 2147483648
    %v2713 = vxor.u32 %v2123, 2147483648
    %v2714 = vxor.u32 %v2125, 2147483648
    %v2715 = vxor.u32 %v2349, 2147483648
    %v2716 = vxor.u32 %v2351, 2147483648
    %v2717 = vxor.u32 %v2575, 2147483648
    %v2718 = vxor.u32 %v2577, 2147483648
    %v2719 = vxor.u32 %v1677, 2147483648
    %v2720 = vxor.u32 %v1679, 2147483648
    %v2721 = vxor.u32 %v1903, 2147483648
    %v2722 = vxor.u32 %v1905, 2147483648
    %v2723 = vxor.u32 %v2129, 2147483648
    %v2724 = vxor.u32 %v2131, 2147483648
    %v2725 = vxor.u32 %v2355, 2147483648
    %v2726 = vxor.u32 %v2357, 2147483648
    %v2727 = vxor.u32 %v2581, 2147483648
    %v2728 = vxor.u32 %v2583, 2147483648
    %v2729 = vxor.u32 %v1681, 2147483648
    %v2730 = vxor.u32 %v1683, 2147483648
    %v2731 = vxor.u32 %v1907, 2147483648
    %v2732 = vxor.u32 %v1909, 2147483648
    %v2733 = vxor.u32 %v2133, 2147483648
    %v2734 = vxor.u32 %v2135, 2147483648
    %v2735 = vxor.u32 %v2359, 2147483648
    %v2736 = vxor.u32 %v2361, 2147483648
    %v2737 = vxor.u32 %v2585, 2147483648
    %v2738 = vxor.u32 %v2587, 2147483648
    %v2739 = vxor.u32 %v1687, 2147483648
    %v2740 = vxor.u32 %v1689, 2147483648
    %v2741 = vxor.u32 %v1913, 2147483648
    %v2742 = vxor.u32 %v1915, 2147483648
    %v2743 = vxor.u32 %v2139, 2147483648
    %v2744 = vxor.u32 %v2141, 2147483648
    %v2745 = vxor.u32 %v2365, 2147483648
    %v2746 = vxor.u32 %v2367, 2147483648
    %v2747 = vxor.u32 %v2591, 2147483648
    %v2748 = vxor.u32 %v2593, 2147483648
    %v2749 = vxor.u32 %v1691, 2147483648
    %v2750 = vxor.u32 %v1693, 2147483648
    %v2751 = vxor.u32 %v1917, 2147483648
    %v2752 = vxor.u32 %v1919, 2147483648
    %v2753 = vxor.u32 %v2143, 2147483648
    %v2754 = vxor.u32 %v2145, 2147483648
    %v2755 = vxor.u32 %v2369, 2147483648
    %v2756 = vxor.u32 %v2371, 2147483648
    %v2757 = vxor.u32 %v2595, 2147483648
    %v2758 = vxor.u32 %v2597, 2147483648
    %v2759 = vmul.f32 %v2599, 1.442695
    %v2760 = vpow.pop %v2759
    %v2761 = vmul.f32 %v2600, 1.442695
    %v2762 = vpow.pop %v2761
    %v2763 = vmul.f32 %v2601, 1.442695
    %v2764 = vpow.pop %v2763
    %v2765 = vmul.f32 %v2602, 1.442695
    %v2766 = vpow.pop %v2765
    %v2767 = vmul.f32 %v2603, 1.442695
    %v2768 = vpow.pop %v2767
    %v2769 = vmul.f32 %v2604, 1.442695
    %v2770 = vpow.pop %v2769
    %v2771 = vmul.f32 %v2605, 1.442695
    %v2772 = vpow.pop %v2771
    %v2773 = vmul.f32 %v2606, 1.442695
    %v2774 = vpow.pop %v2773
    %v2775 = vmul.f32 %v2607, 1.442695
    %v2776 = vpow.pop %v2775
    %v2777 = vmul.f32 %v2608, 1.442695
    %v2778 = vpow.pop %v2777
    %v2779 = vmul.f32 %v2609, 1.442695
    %v2780 = vpow.pop %v2779
    %v2781 = vmul.f32 %v2610, 1.442695
    %v2782 = vpow.pop %v2781
    %v2783 = vmul.f32 %v2611, 1.442695
    %v2784 = vpow.pop %v2783
    %v2785 = vmul.f32 %v2612, 1.442695
    %v2786 = vpow.pop %v2785
    %v2787 = vmul.f32 %v2613, 1.442695
    %v2788 = vpow.pop %v2787
    %v2789 = vmul.f32 %v2614, 1.442695
    %v2790 = vpow.pop %v2789
    %v2791 = vmul.f32 %v2615, 1.442695
    %v2792 = vpow.pop %v2791
    %v2793 = vmul.f32 %v2616, 1.442695
    %v2794 = vpow.pop %v2793
    %v2795 = vmul.f32 %v2617, 1.442695
    %v2796 = vpow.pop %v2795
    %v2797 = vmul.f32 %v2618, 1.442695
    %v2798 = vpow.pop %v2797
    %v2799 = vmul.f32 %v2619, 1.442695
    %v2800 = vpow.pop %v2799
    %v2801 = vmul.f32 %v2620, 1.442695
    %v2802 = vpow.pop %v2801
    %v2803 = vmul.f32 %v2621, 1.442695
    %v2804 = vpow.pop %v2803
    %v2805 = vmul.f32 %v2622, 1.442695
    %v2806 = vpow.pop %v2805
    %v2807 = vmul.f32 %v2623, 1.442695
    %v2808 = vpow.pop %v2807
    %v2809 = vmul.f32 %v2624, 1.442695
    %v2810 = vpow.pop %v2809
    %v2811 = vmul.f32 %v2625, 1.442695
    %v2812 = vpow.pop %v2811
    %v2813 = vmul.f32 %v2626, 1.442695
    %v2814 = vpow.pop %v2813
    %v2815 = vmul.f32 %v2627, 1.442695
    %v2816 = vpow.pop %v2815
    %v2817 = vmul.f32 %v2628, 1.442695
    %v2818 = vpow.pop %v2817
    %v2819 = vmul.f32 %v2629, 1.442695
    %v2820 = vpow.pop %v2819
    %v2821 = vmul.f32 %v2630, 1.442695
    %v2822 = vpow.pop %v2821
    %v2823 = vmul.f32 %v2631, 1.442695
    %v2824 = vpow.pop %v2823
    %v2825 = vmul.f32 %v2632, 1.442695
    %v2826 = vpow.pop %v2825
    %v2827 = vmul.f32 %v2633, 1.442695
    %v2828 = vpow.pop %v2827
    %v2829 = vmul.f32 %v2634, 1.442695
    %v2830 = vpow.pop %v2829
    %v2831 = vmul.f32 %v2635, 1.442695
    %v2832 = vpow.pop %v2831
    %v2833 = vmul.f32 %v2636, 1.442695
    %v2834 = vpow.pop %v2833
    %v2835 = vmul.f32 %v2637, 1.442695
    %v2836 = vpow.pop %v2835
    %v2837 = vmul.f32 %v2638, 1.442695
    %v2838 = vpow.pop %v2837
    %v2839 = vmul.f32 %v2639, 1.442695
    %v2840 = vpow.pop %v2839
    %v2841 = vmul.f32 %v2640, 1.442695
    %v2842 = vpow.pop %v2841
    %v2843 = vmul.f32 %v2641, 1.442695
    %v2844 = vpow.pop %v2843
    %v2845 = vmul.f32 %v2642, 1.442695
    %v2846 = vpow.pop %v2845
    %v2847 = vmul.f32 %v2643, 1.442695
    %v2848 = vpow.pop %v2847
    %v2849 = vmul.f32 %v2644, 1.442695
    %v2850 = vpow.pop %v2849
    %v2851 = vmul.f32 %v2645, 1.442695
    %v2852 = vpow.pop %v2851
    %v2853 = vmul.f32 %v2646, 1.442695
    %v2854 = vpow.pop %v2853
    %v2855 = vmul.f32 %v2647, 1.442695
    %v2856 = vpow.pop %v2855
    %v2857 = vmul.f32 %v2648, 1.442695
    %v2858 = vpow.pop %v2857
    %v2859 = vmul.f32 %v2649, 1.442695
    %v2860 = vpow.pop %v2859
    %v2861 = vmul.f32 %v2650, 1.442695
    %v2862 = vpow.pop %v2861
    %v2863 = vmul.f32 %v2651, 1.442695
    %v2864 = vpow.pop %v2863
    %v2865 = vmul.f32 %v2652, 1.442695
    %v2866 = vpow.pop %v2865
    %v2867 = vmul.f32 %v2653, 1.442695
    %v2868 = vpow.pop %v2867
    %v2869 = vmul.f32 %v2654, 1.442695
    %v2870 = vpow.pop %v2869
    %v2871 = vmul.f32 %v2655, 1.442695
    %v2872 = vpow.pop %v2871
    %v2873 = vmul.f32 %v2656, 1.442695
    %v2874 = vpow.pop %v2873
    %v2875 = vmul.f32 %v2657, 1.442695
    %v2876 = vpow.pop %v2875
    %v2877 = vmul.f32 %v2658, 1.442695
    %v2878 = vpow.pop %v2877
    %v2879 = vmul.f32 %v2659, 1.442695
    %v2880 = vpow.pop %v2879
    %v2881 = vmul.f32 %v2660, 1.442695
    %v2882 = vpow.pop %v2881
    %v2883 = vmul.f32 %v2661, 1.442695
    %v2884 = vpow.pop %v2883
    %v2885 = vmul.f32 %v2662, 1.442695
    %v2886 = vpow.pop %v2885
    %v2887 = vmul.f32 %v2663, 1.442695
    %v2888 = vpow.pop %v2887
    %v2889 = vmul.f32 %v2664, 1.442695
    %v2890 = vpow.pop %v2889
    %v2891 = vmul.f32 %v2665, 1.442695
    %v2892 = vpow.pop %v2891
    %v2893 = vmul.f32 %v2666, 1.442695
    %v2894 = vpow.pop %v2893
    %v2895 = vmul.f32 %v2667, 1.442695
    %v2896 = vpow.pop %v2895
    %v2897 = vmul.f32 %v2668, 1.442695
    %v2898 = vpow.pop %v2897
    %v2899 = vmul.f32 %v2669, 1.442695
    %v2900 = vpow.pop %v2899
    %v2901 = vmul.f32 %v2670, 1.442695
    %v2902 = vpow.pop %v2901
    %v2903 = vmul.f32 %v2671, 1.442695
    %v2904 = vpow.pop %v2903
    %v2905 = vmul.f32 %v2672, 1.442695
    %v2906 = vpow.pop %v2905
    %v2907 = vmul.f32 %v2673, 1.442695
    %v2908 = vpow.pop %v2907
    %v2909 = vmul.f32 %v2674, 1.442695
    %v2910 = vpow.pop %v2909
    %v2911 = vmul.f32 %v2675, 1.442695
    %v2912 = vpow.pop %v2911
    %v2913 = vmul.f32 %v2676, 1.442695
    %v2914 = vpow.pop %v2913
    %v2915 = vmul.f32 %v2677, 1.442695
    %v2916 = vpow.pop %v2915
    %v2917 = vmul.f32 %v2678, 1.442695
    %v2918 = vpow.pop %v2917
    %v2919 = vmul.f32 %v2679, 1.442695
    %v2920 = vpow.pop %v2919
    %v2921 = vmul.f32 %v2680, 1.442695
    %v2922 = vpow.pop %v2921
    %v2923 = vmul.f32 %v2681, 1.442695
    %v2924 = vpow.pop %v2923
    %v2925 = vmul.f32 %v2682, 1.442695
    %v2926 = vpow.pop %v2925
    %v2927 = vmul.f32 %v2683, 1.442695
    %v2928 = vpow.pop %v2927
    %v2929 = vmul.f32 %v2684, 1.442695
    %v2930 = vpow.pop %v2929
    %v2931 = vmul.f32 %v2685, 1.442695
    %v2932 = vpow.pop %v2931
    %v2933 = vmul.f32 %v2686, 1.442695
    %v2934 = vpow.pop %v2933
    %v2935 = vmul.f32 %v2687, 1.442695
    %v2936 = vpow.pop %v2935
    %v2937 = vmul.f32 %v2688, 1.442695
    %v2938 = vpow.pop %v2937
    %v2939 = vmul.f32 %v2689, 1.442695
    %v2940 = vpow.pop %v2939
    %v2941 = vmul.f32 %v2690, 1.442695
    %v2942 = vpow.pop %v2941
    %v2943 = vmul.f32 %v2691, 1.442695
    %v2944 = vpow.pop %v2943
    %v2945 = vmul.f32 %v2692, 1.442695
    %v2946 = vpow.pop %v2945
    %v2947 = vmul.f32 %v2693, 1.442695
    %v2948 = vpow.pop %v2947
    %v2949 = vmul.f32 %v2694, 1.442695
    %v2950 = vpow.pop %v2949
    %v2951 = vmul.f32 %v2695, 1.442695
    %v2952 = vpow.pop %v2951
    %v2953 = vmul.f32 %v2696, 1.442695
    %v2954 = vpow.pop %v2953
    %v2955 = vmul.f32 %v2697, 1.442695
    %v2956 = vpow.pop %v2955
    %v2957 = vmul.f32 %v2698, 1.442695
    %v2958 = vpow.pop %v2957
    %v2959 = vmul.f32 %v2699, 1.442695
    %v2960 = vpow.pop %v2959
    %v2961 = vmul.f32 %v2700, 1.442695
    %v2962 = vpow.pop %v2961
    %v2963 = vmul.f32 %v2701, 1.442695
    %v2964 = vpow.pop %v2963
    %v2965 = vmul.f32 %v2702, 1.442695
    %v2966 = vpow.pop %v2965
    %v2967 = vmul.f32 %v2703, 1.442695
    %v2968 = vpow.pop %v2967
    %v2969 = vmul.f32 %v2704, 1.442695
    %v2970 = vpow.pop %v2969
    %v2971 = vmul.f32 %v2705, 1.442695
    %v2972 = vpow.pop %v2971
    %v2973 = vmul.f32 %v2706, 1.442695
    %v2974 = vpow.pop %v2973
    %v2975 = vmul.f32 %v2707, 1.442695
    %v2976 = vpow.pop %v2975
    %v2977 = vmul.f32 %v2708, 1.442695
    %v2978 = vpow.pop %v2977
    %v2979 = vmul.f32 %v2709, 1.442695
    %v2980 = vpow.pop %v2979
    %v2981 = vmul.f32 %v2710, 1.442695
    %v2982 = vpow.pop %v2981
    %v2983 = vmul.f32 %v2711, 1.442695
    %v2984 = vpow.pop %v2983
    %v2985 = vmul.f32 %v2712, 1.442695
    %v2986 = vpow.pop %v2985
    %v2987 = vmul.f32 %v2713, 1.442695
    %v2988 = vpow.pop %v2987
    %v2989 = vmul.f32 %v2714, 1.442695
    %v2990 = vpow.pop %v2989
    %v2991 = vmul.f32 %v2715, 1.442695
    %v2992 = vpow.pop %v2991
    %v2993 = vmul.f32 %v2716, 1.442695
    %v2994 = vpow.pop %v2993
    %v2995 = vmul.f32 %v2717, 1.442695
    %v2996 = vpow.pop %v2995
    %v2997 = vmul.f32 %v2718, 1.442695
    %v2998 = vpow.pop %v2997
    %v2999 = vmul.f32 %v2719, 1.442695
    %v3000 = vpow.pop %v2999
    %v3001 = vmul.f32 %v2720, 1.442695
    %v3002 = vpow.pop %v3001
    %v3003 = vmul.f32 %v2721, 1.442695
    %v3004 = vpow.pop %v3003
    %v3005 = vmul.f32 %v2722, 1.442695
    %v3006 = vpow.pop %v3005
    %v3007 = vmul.f32 %v2723, 1.442695
    %v3008 = vpow.pop %v3007
    %v3009 = vmul.f32 %v2724, 1.442695
    %v3010 = vpow.pop %v3009
    %v3011 = vmul.f32 %v2725, 1.442695
    %v3012 = vpow.pop %v3011
    %v3013 = vmul.f32 %v2726, 1.442695
    %v3014 = vpow.pop %v3013
    %v3015 = vmul.f32 %v2727, 1.442695
    %v3016 = vpow.pop %v3015
    %v3017 = vmul.f32 %v2728, 1.442695
    %v3018 = vpow.pop %v3017
    %v3019 = vmul.f32 %v2729, 1.442695
    %v3020 = vpow.pop %v3019
    %v3021 = vmul.f32 %v2730, 1.442695
    %v3022 = vpow.pop %v3021
    %v3023 = vmul.f32 %v2731, 1.442695
    %v3024 = vpow.pop %v3023
    %v3025 = vmul.f32 %v2732, 1.442695
    %v3026 = vpow.pop %v3025
    %v3027 = vmul.f32 %v2733, 1.442695
    %v3028 = vpow.pop %v3027
    %v3029 = vmul.f32 %v2734, 1.442695
    %v3030 = vpow.pop %v3029
    %v3031 = vmul.f32 %v2735, 1.442695
    %v3032 = vpow.pop %v3031
    %v3033 = vmul.f32 %v2736, 1.442695
    %v3034 = vpow.pop %v3033
    %v3035 = vmul.f32 %v2737, 1.442695
    %v3036 = vpow.pop %v3035
    %v3037 = vmul.f32 %v2738, 1.442695
    %v3038 = vpow.pop %v3037
    %v3039 = vmul.f32 %v2739, 1.442695
    %v3040 = vpow.pop %v3039
    %v3041 = vmul.f32 %v2740, 1.442695
    %v3042 = vpow.pop %v3041
    %v3043 = vmul.f32 %v2741, 1.442695
    %v3044 = vpow.pop %v3043
    %v3045 = vmul.f32 %v2742, 1.442695
    %v3046 = vpow.pop %v3045
    %v3047 = vmul.f32 %v2743, 1.442695
    %v3048 = vpow.pop %v3047
    %v3049 = vmul.f32 %v2744, 1.442695
    %v3050 = vpow.pop %v3049
    %v3051 = vmul.f32 %v2745, 1.442695
    %v3052 = vpow.pop %v3051
    %v3053 = vmul.f32 %v2746, 1.442695
    %v3054 = vpow.pop %v3053
    %v3055 = vmul.f32 %v2747, 1.442695
    %v3056 = vpow.pop %v3055
    %v3057 = vmul.f32 %v2748, 1.442695
    %v3058 = vpow.pop %v3057
    %v3059 = vmul.f32 %v2749, 1.442695
    %v3060 = vpow.pop %v3059
    %v3061 = vmul.f32 %v2750, 1.442695
    %v3062 = vpow.pop %v3061
    %v3063 = vmul.f32 %v2751, 1.442695
    %v3064 = vpow.pop %v3063
    %v3065 = vmul.f32 %v2752, 1.442695
    %v3066 = vpow.pop %v3065
    %v3067 = vmul.f32 %v2753, 1.442695
    %v3068 = vpow.pop %v3067
    %v3069 = vmul.f32 %v2754, 1.442695
    %v3070 = vpow.pop %v3069
    %v3071 = vmul.f32 %v2755, 1.442695
    %v3072 = vpow.pop %v3071
    %v3073 = vmul.f32 %v2756, 1.442695
    %v3074 = vpow.pop %v3073
    %v3075 = vmul.f32 %v2757, 1.442695
    %v3076 = vpow.pop %v3075
    %v3077 = vmul.f32 %v2758, 1.442695
    %v3078 = vpow.pop %v3077
    %v3079 = vadd.f32 %v2760, 1.0
    %v3080 = vadd.f32 %v2762, 1.0
    %v3081 = vadd.f32 %v2764, 1.0
    %v3082 = vadd.f32 %v2766, 1.0
    %v3083 = vadd.f32 %v2768, 1.0
    %v3084 = vadd.f32 %v2770, 1.0
    %v3085 = vadd.f32 %v2772, 1.0
    %v3086 = vadd.f32 %v2774, 1.0
    %v3087 = vadd.f32 %v2776, 1.0
    %v3088 = vadd.f32 %v2778, 1.0
    %v3089 = vadd.f32 %v2780, 1.0
    %v3090 = vadd.f32 %v2782, 1.0
    %v3091 = vadd.f32 %v2784, 1.0
    %v3092 = vadd.f32 %v2786, 1.0
    %v3093 = vadd.f32 %v2788, 1.0
    %v3094 = vadd.f32 %v2790, 1.0
    %v3095 = vadd.f32 %v2792, 1.0
    %v3096 = vadd.f32 %v2794, 1.0
    %v3097 = vadd.f32 %v2796, 1.0
    %v3098 = vadd.f32 %v2798, 1.0
    %v3099 = vadd.f32 %v2800, 1.0
    %v3100 = vadd.f32 %v2802, 1.0
    %v3101 = vadd.f32 %v2804, 1.0
    %v3102 = vadd.f32 %v2806, 1.0
    %v3103 = vadd.f32 %v2808, 1.0
    %v3104 = vadd.f32 %v2810, 1.0
    %v3105 = vadd.f32 %v2812, 1.0
    %v3106 = vadd.f32 %v2814, 1.0
    %v3107 = vadd.f32 %v2816, 1.0
    %v3108 = vadd.f32 %v2818, 1.0
    %v3109 = vadd.f32 %v2820, 1.0
    %v3110 = vadd.f32 %v2822, 1.0
    %v3111 = vadd.f32 %v2824, 1.0
    %v3112 = vadd.f32 %v2826, 1.0
    %v3113 = vadd.f32 %v2828, 1.0
    %v3114 = vadd.f32 %v2830, 1.0
    %v3115 = vadd.f32 %v2832, 1.0
    %v3116 = vadd.f32 %v2834, 1.0
    %v3117 = vadd.f32 %v2836, 1.0
    %v3118 = vadd.f32 %v2838, 1.0
    %v3119 = vadd.f32 %v2840, 1.0
    %v3120 = vadd.f32 %v2842, 1.0
    %v3121 = vadd.f32 %v2844, 1.0
    %v3122 = vadd.f32 %v2846, 1.0
    %v3123 = vadd.f32 %v2848, 1.0
    %v3124 = vadd.f32 %v2850, 1.0
    %v3125 = vadd.f32 %v2852, 1.0
    %v3126 = vadd.f32 %v2854, 1.0
    %v3127 = vadd.f32 %v2856, 1.0
    %v3128 = vadd.f32 %v2858, 1.0
    %v3129 = vadd.f32 %v2860, 1.0
    %v3130 = vadd.f32 %v2862, 1.0
    %v3131 = vadd.f32 %v2864, 1.0
    %v3132 = vadd.f32 %v2866, 1.0
    %v3133 = vadd.f32 %v2868, 1.0
    %v3134 = vadd.f32 %v2870, 1.0
    %v3135 = vadd.f32 %v2872, 1.0
    %v3136 = vadd.f32 %v2874, 1.0
    %v3137 = vadd.f32 %v2876, 1.0
    %v3138 = vadd.f32 %v2878, 1.0
    %v3139 = vadd.f32 %v2880, 1.0
    %v3140 = vadd.f32 %v2882, 1.0
    %v3141 = vadd.f32 %v2884, 1.0
    %v3142 = vadd.f32 %v2886, 1.0
    %v3143 = vadd.f32 %v2888, 1.0
    %v3144 = vadd.f32 %v2890, 1.0
    %v3145 = vadd.f32 %v2892, 1.0
    %v3146 = vadd.f32 %v2894, 1.0
    %v3147 = vadd.f32 %v2896, 1.0
    %v3148 = vadd.f32 %v2898, 1.0
    %v3149 = vadd.f32 %v2900, 1.0
    %v3150 = vadd.f32 %v2902, 1.0
    %v3151 = vadd.f32 %v2904, 1.0
    %v3152 = vadd.f32 %v2906, 1.0
    %v3153 = vadd.f32 %v2908, 1.0
    %v3154 = vadd.f32 %v2910, 1.0
    %v3155 = vadd.f32 %v2912, 1.0
    %v3156 = vadd.f32 %v2914, 1.0
    %v3157 = vadd.f32 %v2916, 1.0
    %v3158 = vadd.f32 %v2918, 1.0
    %v3159 = vadd.f32 %v2920, 1.0
    %v3160 = vadd.f32 %v2922, 1.0
    %v3161 = vadd.f32 %v2924, 1.0
    %v3162 = vadd.f32 %v2926, 1.0
    %v3163 = vadd.f32 %v2928, 1.0
    %v3164 = vadd.f32 %v2930, 1.0
    %v3165 = vadd.f32 %v2932, 1.0
    %v3166 = vadd.f32 %v2934, 1.0
    %v3167 = vadd.f32 %v2936, 1.0
    %v3168 = vadd.f32 %v2938, 1.0
    %v3169 = vadd.f32 %v2940, 1.0
    %v3170 = vadd.f32 %v2942, 1.0
    %v3171 = vadd.f32 %v2944, 1.0
    %v3172 = vadd.f32 %v2946, 1.0
    %v3173 = vadd.f32 %v2948, 1.0
    %v3174 = vadd.f32 %v2950, 1.0
    %v3175 = vadd.f32 %v2952, 1.0
    %v3176 = vadd.f32 %v2954, 1.0
    %v3177 = vadd.f32 %v2956, 1.0
    %v3178 = vadd.f32 %v2958, 1.0
    %v3179 = vadd.f32 %v2960, 1.0
    %v3180 = vadd.f32 %v2962, 1.0
    %v3181 = vadd.f32 %v2964, 1.0
    %v3182 = vadd.f32 %v2966, 1.0
    %v3183 = vadd.f32 %v2968, 1.0
    %v3184 = vadd.f32 %v2970, 1.0
    %v3185 = vadd.f32 %v2972, 1.0
    %v3186 = vadd.f32 %v2974, 1.0
    %v3187 = vadd.f32 %v2976, 1.0
    %v3188 = vadd.f32 %v2978, 1.0
    %v3189 = vadd.f32 %v2980, 1.0
    %v3190 = vadd.f32 %v2982, 1.0
    %v3191 = vadd.f32 %v2984, 1.0
    %v3192 = vadd.f32 %v2986, 1.0
    %v3193 = vadd.f32 %v2988, 1.0
    %v3194 = vadd.f32 %v2990, 1.0
    %v3195 = vadd.f32 %v2992, 1.0
    %v3196 = vadd.f32 %v2994, 1.0
    %v3197 = vadd.f32 %v2996, 1.0
    %v3198 = vadd.f32 %v2998, 1.0
    %v3199 = vadd.f32 %v3000, 1.0
    %v3200 = vadd.f32 %v3002, 1.0
    %v3201 = vadd.f32 %v3004, 1.0
    %v3202 = vadd.f32 %v3006, 1.0
    %v3203 = vadd.f32 %v3008, 1.0
    %v3204 = vadd.f32 %v3010, 1.0
    %v3205 = vadd.f32 %v3012, 1.0
    %v3206 = vadd.f32 %v3014, 1.0
    %v3207 = vadd.f32 %v3016, 1.0
    %v3208 = vadd.f32 %v3018, 1.0
    %v3209 = vadd.f32 %v3020, 1.0
    %v3210 = vadd.f32 %v3022, 1.0
    %v3211 = vadd.f32 %v3024, 1.0
    %v3212 = vadd.f32 %v3026, 1.0
    %v3213 = vadd.f32 %v3028, 1.0
    %v3214 = vadd.f32 %v3030, 1.0
    %v3215 = vadd.f32 %v3032, 1.0
    %v3216 = vadd.f32 %v3034, 1.0
    %v3217 = vadd.f32 %v3036, 1.0
    %v3218 = vadd.f32 %v3038, 1.0
    %v3219 = vadd.f32 %v3040, 1.0
    %v3220 = vadd.f32 %v3042, 1.0
    %v3221 = vadd.f32 %v3044, 1.0
    %v3222 = vadd.f32 %v3046, 1.0
    %v3223 = vadd.f32 %v3048, 1.0
    %v3224 = vadd.f32 %v3050, 1.0
    %v3225 = vadd.f32 %v3052, 1.0
    %v3226 = vadd.f32 %v3054, 1.0
    %v3227 = vadd.f32 %v3056, 1.0
    %v3228 = vadd.f32 %v3058, 1.0
    %v3229 = vadd.f32 %v3060, 1.0
    %v3230 = vadd.f32 %v3062, 1.0
    %v3231 = vadd.f32 %v3064, 1.0
    %v3232 = vadd.f32 %v3066, 1.0
    %v3233 = vadd.f32 %v3068, 1.0
    %v3234 = vadd.f32 %v3070, 1.0
    %v3235 = vadd.f32 %v3072, 1.0
    %v3236 = vadd.f32 %v3074, 1.0
    %v3237 = vadd.f32 %v3076, 1.0
    %v3238 = vadd.f32 %v3078, 1.0
    %v3239 = vrcp.pop %v3079
    %v3240 = vmul.f32 1.0, %v3239
    %v3241 = vrcp.pop %v3080
    %v3242 = vmul.f32 1.0, %v3241
    %v3243 = vrcp.pop %v3081
    %v3244 = vmul.f32 1.0, %v3243
    %v3245 = vrcp.pop %v3082
    %v3246 = vmul.f32 1.0, %v3245
    %v3247 = vrcp.pop %v3083
    %v3248 = vmul.f32 1.0, %v3247
    %v3249 = vrcp.pop %v3084
    %v3250 = vmul.f32 1.0, %v3249
    %v3251 = vrcp.pop %v3085
    %v3252 = vmul.f32 1.0, %v3251
    %v3253 = vrcp.pop %v3086
    %v3254 = vmul.f32 1.0, %v3253
    %v3255 = vrcp.pop %v3087
    %v3256 = vmul.f32 1.0, %v3255
    %v3257 = vrcp.pop %v3088
    %v3258 = vmul.f32 1.0, %v3257
    %v3259 = vrcp.pop %v3089
    %v3260 = vmul.f32 1.0, %v3259
    %v3261 = vrcp.pop %v3090
    %v3262 = vmul.f32 1.0, %v3261
    %v3263 = vrcp.pop %v3091
    %v3264 = vmul.f32 1.0, %v3263
    %v3265 = vrcp.pop %v3092
    %v3266 = vmul.f32 1.0, %v3265
    %v3267 = vrcp.pop %v3093
    %v3268 = vmul.f32 1.0, %v3267
    %v3269 = vrcp.pop %v3094
    %v3270 = vmul.f32 1.0, %v3269
    %v3271 = vrcp.pop %v3095
    %v3272 = vmul.f32 1.0, %v3271
    %v3273 = vrcp.pop %v3096
    %v3274 = vmul.f32 1.0, %v3273
    %v3275 = vrcp.pop %v3097
    %v3276 = vmul.f32 1.0, %v3275
    %v3277 = vrcp.pop %v3098
    %v3278 = vmul.f32 1.0, %v3277
    %v3279 = vrcp.pop %v3099
    %v3280 = vmul.f32 1.0, %v3279
    %v3281 = vrcp.pop %v3100
    %v3282 = vmul.f32 1.0, %v3281
    %v3283 = vrcp.pop %v3101
    %v3284 = vmul.f32 1.0, %v3283
    %v3285 = vrcp.pop %v3102
    %v3286 = vmul.f32 1.0, %v3285
    %v3287 = vrcp.pop %v3103
    %v3288 = vmul.f32 1.0, %v3287
    %v3289 = vrcp.pop %v3104
    %v3290 = vmul.f32 1.0, %v3289
    %v3291 = vrcp.pop %v3105
    %v3292 = vmul.f32 1.0, %v3291
    %v3293 = vrcp.pop %v3106
    %v3294 = vmul.f32 1.0, %v3293
    %v3295 = vrcp.pop %v3107
    %v3296 = vmul.f32 1.0, %v3295
    %v3297 = vrcp.pop %v3108
    %v3298 = vmul.f32 1.0, %v3297
    %v3299 = vrcp.pop %v3109
    %v3300 = vmul.f32 1.0, %v3299
    %v3301 = vrcp.pop %v3110
    %v3302 = vmul.f32 1.0, %v3301
    %v3303 = vrcp.pop %v3111
    %v3304 = vmul.f32 1.0, %v3303
    %v3305 = vrcp.pop %v3112
    %v3306 = vmul.f32 1.0, %v3305
    %v3307 = vrcp.pop %v3113
    %v3308 = vmul.f32 1.0, %v3307
    %v3309 = vrcp.pop %v3114
    %v3310 = vmul.f32 1.0, %v3309
    %v3311 = vrcp.pop %v3115
    %v3312 = vmul.f32 1.0, %v3311
    %v3313 = vrcp.pop %v3116
    %v3314 = vmul.f32 1.0, %v3313
    %v3315 = vrcp.pop %v3117
    %v3316 = vmul.f32 1.0, %v3315
    %v3317 = vrcp.pop %v3118
    %v3318 = vmul.f32 1.0, %v3317
    %v3319 = vrcp.pop %v3119
    %v3320 = vmul.f32 1.0, %v3319
    %v3321 = vrcp.pop %v3120
    %v3322 = vmul.f32 1.0, %v3321
    %v3323 = vrcp.pop %v3121
    %v3324 = vmul.f32 1.0, %v3323
    %v3325 = vrcp.pop %v3122
    %v3326 = vmul.f32 1.0, %v3325
    %v3327 = vrcp.pop %v3123
    %v3328 = vmul.f32 1.0, %v3327
    %v3329 = vrcp.pop %v3124
    %v3330 = vmul.f32 1.0, %v3329
    %v3331 = vrcp.pop %v3125
    %v3332 = vmul.f32 1.0, %v3331
    %v3333 = vrcp.pop %v3126
    %v3334 = vmul.f32 1.0, %v3333
    %v3335 = vrcp.pop %v3127
    %v3336 = vmul.f32 1.0, %v3335
    %v3337 = vrcp.pop %v3128
    %v3338 = vmul.f32 1.0, %v3337
    %v3339 = vrcp.pop %v3129
    %v3340 = vmul.f32 1.0, %v3339
    %v3341 = vrcp.pop %v3130
    %v3342 = vmul.f32 1.0, %v3341
    %v3343 = vrcp.pop %v3131
    %v3344 = vmul.f32 1.0, %v3343
    %v3345 = vrcp.pop %v3132
    %v3346 = vmul.f32 1.0, %v3345
    %v3347 = vrcp.pop %v3133
    %v3348 = vmul.f32 1.0, %v3347
    %v3349 = vrcp.pop %v3134
    %v3350 = vmul.f32 1.0, %v3349
    %v3351 = vrcp.pop %v3135
    %v3352 = vmul.f32 1.0, %v3351
    %v3353 = vrcp.pop %v3136
    %v3354 = vmul.f32 1.0, %v3353
    %v3355 = vrcp.pop %v3137
    %v3356 = vmul.f32 1.0, %v3355
    %v3357 = vrcp.pop %v3138
    %v3358 = vmul.f32 1.0, %v3357
    %v3359 = vrcp.pop %v3139
    %v3360 = vmul.f32 1.0, %v3359
    %v3361 = vrcp.pop %v3140
    %v3362 = vmul.f32 1.0, %v3361
    %v3363 = vrcp.pop %v3141
    %v3364 = vmul.f32 1.0, %v3363
    %v3365 = vrcp.pop %v3142
    %v3366 = vmul.f32 1.0, %v3365
    %v3367 = vrcp.pop %v3143
    %v3368 = vmul.f32 1.0, %v3367
    %v3369 = vrcp.pop %v3144
    %v3370 = vmul.f32 1.0, %v3369
    %v3371 = vrcp.pop %v3145
    %v3372 = vmul.f32 1.0, %v3371
    %v3373 = vrcp.pop %v3146
    %v3374 = vmul.f32 1.0, %v3373
    %v3375 = vrcp.pop %v3147
    %v3376 = vmul.f32 1.0, %v3375
    %v3377 = vrcp.pop %v3148
    %v3378 = vmul.f32 1.0, %v3377
    %v3379 = vrcp.pop %v3149
    %v3380 = vmul.f32 1.0, %v3379
    %v3381 = vrcp.pop %v3150
    %v3382 = vmul.f32 1.0, %v3381
    %v3383 = vrcp.pop %v3151
    %v3384 = vmul.f32 1.0, %v3383
    %v3385 = vrcp.pop %v3152
    %v3386 = vmul.f32 1.0, %v3385
    %v3387 = vrcp.pop %v3153
    %v3388 = vmul.f32 1.0, %v3387
    %v3389 = vrcp.pop %v3154
    %v3390 = vmul.f32 1.0, %v3389
    %v3391 = vrcp.pop %v3155
    %v3392 = vmul.f32 1.0, %v3391
    %v3393 = vrcp.pop %v3156
    %v3394 = vmul.f32 1.0, %v3393
    %v3395 = vrcp.pop %v3157
    %v3396 = vmul.f32 1.0, %v3395
    %v3397 = vrcp.pop %v3158
    %v3398 = vmul.f32 1.0, %v3397
    %v3399 = vrcp.pop %v3159
    %v3400 = vmul.f32 1.0, %v3399
    %v3401 = vrcp.pop %v3160
    %v3402 = vmul.f32 1.0, %v3401
    %v3403 = vrcp.pop %v3161
    %v3404 = vmul.f32 1.0, %v3403
    %v3405 = vrcp.pop %v3162
    %v3406 = vmul.f32 1.0, %v3405
    %v3407 = vrcp.pop %v3163
    %v3408 = vmul.f32 1.0, %v3407
    %v3409 = vrcp.pop %v3164
    %v3410 = vmul.f32 1.0, %v3409
    %v3411 = vrcp.pop %v3165
    %v3412 = vmul.f32 1.0, %v3411
    %v3413 = vrcp.pop %v3166
    %v3414 = vmul.f32 1.0, %v3413
    %v3415 = vrcp.pop %v3167
    %v3416 = vmul.f32 1.0, %v3415
    %v3417 = vrcp.pop %v3168
    %v3418 = vmul.f32 1.0, %v3417
    %v3419 = vrcp.pop %v3169
    %v3420 = vmul.f32 1.0, %v3419
    %v3421 = vrcp.pop %v3170
    %v3422 = vmul.f32 1.0, %v3421
    %v3423 = vrcp.pop %v3171
    %v3424 = vmul.f32 1.0, %v3423
    %v3425 = vrcp.pop %v3172
    %v3426 = vmul.f32 1.0, %v3425
    %v3427 = vrcp.pop %v3173
    %v3428 = vmul.f32 1.0, %v3427
    %v3429 = vrcp.pop %v3174
    %v3430 = vmul.f32 1.0, %v3429
    %v3431 = vrcp.pop %v3175
    %v3432 = vmul.f32 1.0, %v3431
    %v3433 = vrcp.pop %v3176
    %v3434 = vmul.f32 1.0, %v3433
    %v3435 = vrcp.pop %v3177
    %v3436 = vmul.f32 1.0, %v3435
    %v3437 = vrcp.pop %v3178
    %v3438 = vmul.f32 1.0, %v3437
    %v3439 = vrcp.pop %v3179
    %v3440 = vmul.f32 1.0, %v3439
    %v3441 = vrcp.pop %v3180
    %v3442 = vmul.f32 1.0, %v3441
    %v3443 = vrcp.pop %v3181
    %v3444 = vmul.f32 1.0, %v3443
    %v3445 = vrcp.pop %v3182
    %v3446 = vmul.f32 1.0, %v3445
    %v3447 = vrcp.pop %v3183
    %v3448 = vmul.f32 1.0, %v3447
    %v3449 = vrcp.pop %v3184
    %v3450 = vmul.f32 1.0, %v3449
    %v3451 = vrcp.pop %v3185
    %v3452 = vmul.f32 1.0, %v3451
    %v3453 = vrcp.pop %v3186
    %v3454 = vmul.f32 1.0, %v3453
    %v3455 = vrcp.pop %v3187
    %v3456 = vmul.f32 1.0, %v3455
    %v3457 = vrcp.pop %v3188
    %v3458 = vmul.f32 1.0, %v3457
    %v3459 = vrcp.pop %v3189
    %v3460 = vmul.f32 1.0, %v3459
    %v3461 = vrcp.pop %v3190
    %v3462 = vmul.f32 1.0, %v3461
    %v3463 = vrcp.pop %v3191
    %v3464 = vmul.f32 1.0, %v3463
    %v3465 = vrcp.pop %v3192
    %v3466 = vmul.f32 1.0, %v3465
    %v3467 = vrcp.pop %v3193
    %v3468 = vmul.f32 1.0, %v3467
    %v3469 = vrcp.pop %v3194
    %v3470 = vmul.f32 1.0, %v3469
    %v3471 = vrcp.pop %v3195
    %v3472 = vmul.f32 1.0, %v3471
    %v3473 = vrcp.pop %v3196
    %v3474 = vmul.f32 1.0, %v3473
    %v3475 = vrcp.pop %v3197
    %v3476 = vmul.f32 1.0, %v3475
    %v3477 = vrcp.pop %v3198
    %v3478 = vmul.f32 1.0, %v3477
    %v3479 = vrcp.pop %v3199
    %v3480 = vmul.f32 1.0, %v3479
    %v3481 = vrcp.pop %v3200
    %v3482 = vmul.f32 1.0, %v3481
    %v3483 = vrcp.pop %v3201
    %v3484 = vmul.f32 1.0, %v3483
    %v3485 = vrcp.pop %v3202
    %v3486 = vmul.f32 1.0, %v3485
    %v3487 = vrcp.pop %v3203
    %v3488 = vmul.f32 1.0, %v3487
    %v3489 = vrcp.pop %v3204
    %v3490 = vmul.f32 1.0, %v3489
    %v3491 = vrcp.pop %v3205
    %v3492 = vmul.f32 1.0, %v3491
    %v3493 = vrcp.pop %v3206
    %v3494 = vmul.f32 1.0, %v3493
    %v3495 = vrcp.pop %v3207
    %v3496 = vmul.f32 1.0, %v3495
    %v3497 = vrcp.pop %v3208
    %v3498 = vmul.f32 1.0, %v3497
    %v3499 = vrcp.pop %v3209
    %v3500 = vmul.f32 1.0, %v3499
    %v3501 = vrcp.pop %v3210
    %v3502 = vmul.f32 1.0, %v3501
    %v3503 = vrcp.pop %v3211
    %v3504 = vmul.f32 1.0, %v3503
    %v3505 = vrcp.pop %v3212
    %v3506 = vmul.f32 1.0, %v3505
    %v3507 = vrcp.pop %v3213
    %v3508 = vmul.f32 1.0, %v3507
    %v3509 = vrcp.pop %v3214
    %v3510 = vmul.f32 1.0, %v3509
    %v3511 = vrcp.pop %v3215
    %v3512 = vmul.f32 1.0, %v3511
    %v3513 = vrcp.pop %v3216
    %v3514 = vmul.f32 1.0, %v3513
    %v3515 = vrcp.pop %v3217
    %v3516 = vmul.f32 1.0, %v3515
    %v3517 = vrcp.pop %v3218
    %v3518 = vmul.f32 1.0, %v3517
    %v3519 = vrcp.pop %v3219
    %v3520 = vmul.f32 1.0, %v3519
    %v3521 = vrcp.pop %v3220
    %v3522 = vmul.f32 1.0, %v3521
    %v3523 = vrcp.pop %v3221
    %v3524 = vmul.f32 1.0, %v3523
    %v3525 = vrcp.pop %v3222
    %v3526 = vmul.f32 1.0, %v3525
    %v3527 = vrcp.pop %v3223
    %v3528 = vmul.f32 1.0, %v3527
    %v3529 = vrcp.pop %v3224
    %v3530 = vmul.f32 1.0, %v3529
    %v3531 = vrcp.pop %v3225
    %v3532 = vmul.f32 1.0, %v3531
    %v3533 = vrcp.pop %v3226
    %v3534 = vmul.f32 1.0, %v3533
    %v3535 = vrcp.pop %v3227
    %v3536 = vmul.f32 1.0, %v3535
    %v3537 = vrcp.pop %v3228
    %v3538 = vmul.f32 1.0, %v3537
    %v3539 = vrcp.pop %v3229
    %v3540 = vmul.f32 1.0, %v3539
    %v3541 = vrcp.pop %v3230
    %v3542 = vmul.f32 1.0, %v3541
    %v3543 = vrcp.pop %v3231
    %v3544 = vmul.f32 1.0, %v3543
    %v3545 = vrcp.pop %v3232
    %v3546 = vmul.f32 1.0, %v3545
    %v3547 = vrcp.pop %v3233
    %v3548 = vmul.f32 1.0, %v3547
    %v3549 = vrcp.pop %v3234
    %v3550 = vmul.f32 1.0, %v3549
    %v3551 = vrcp.pop %v3235
    %v3552 = vmul.f32 1.0, %v3551
    %v3553 = vrcp.pop %v3236
    %v3554 = vmul.f32 1.0, %v3553
    %v3555 = vrcp.pop %v3237
    %v3556 = vmul.f32 1.0, %v3555
    %v3557 = vrcp.pop %v3238
    %v3558 = vmul.f32 1.0, %v3557
    %v3559 = vmul.f32 %v1617, %v3240
    %v3560 = vmul.f32 %v1619, %v3242
    %v3561 = vmul.f32 %v1843, %v3244
    %v3562 = vmul.f32 %v1845, %v3246
    %v3563 = vmul.f32 %v2069, %v3248
    %v3564 = vmul.f32 %v2071, %v3250
    %v3565 = vmul.f32 %v2295, %v3252
    %v3566 = vmul.f32 %v2297, %v3254
    %v3567 = vmul.f32 %v2521, %v3256
    %v3568 = vmul.f32 %v2523, %v3258
    %v3569 = vmul.f32 %v1621, %v3260
    %v3570 = vmul.f32 %v1623, %v3262
    %v3571 = vmul.f32 %v1847, %v3264
    %v3572 = vmul.f32 %v1849, %v3266
    %v3573 = vmul.f32 %v2073, %v3268
    %v3574 = vmul.f32 %v2075, %v3270
    %v3575 = vmul.f32 %v2299, %v3272
    %v3576 = vmul.f32 %v2301, %v3274
    %v3577 = vmul.f32 %v2525, %v3276
    %v3578 = vmul.f32 %v2527, %v3278
    %v3579 = vmul.f32 %v1627, %v3280
    %v3580 = vmul.f32 %v1629, %v3282
    %v3581 = vmul.f32 %v1853, %v3284
    %v3582 = vmul.f32 %v1855, %v3286
    %v3583 = vmul.f32 %v2079, %v3288
    %v3584 = vmul.f32 %v2081, %v3290
    %v3585 = vmul.f32 %v2305, %v3292
    %v3586 = vmul.f32 %v2307, %v3294
    %v3587 = vmul.f32 %v2531, %v3296
    %v3588 = vmul.f32 %v2533, %v3298
    %v3589 = vmul.f32 %v1631, %v3300
    %v3590 = vmul.f32 %v1633, %v3302
    %v3591 = vmul.f32 %v1857, %v3304
    %v3592 = vmul.f32 %v1859, %v3306
    %v3593 = vmul.f32 %v2083, %v3308
    %v3594 = vmul.f32 %v2085, %v3310
    %v3595 = vmul.f32 %v2309, %v3312
    %v3596 = vmul.f32 %v2311, %v3314
    %v3597 = vmul.f32 %v2535, %v3316
    %v3598 = vmul.f32 %v2537, %v3318
    %v3599 = vmul.f32 %v1637, %v3320
    %v3600 = vmul.f32 %v1639, %v3322
    %v3601 = vmul.f32 %v1863, %v3324
    %v3602 = vmul.f32 %v1865, %v3326
    %v3603 = vmul.f32 %v2089, %v3328
    %v3604 = vmul.f32 %v2091, %v3330
    %v3605 = vmul.f32 %v2315, %v3332
    %v3606 = vmul.f32 %v2317, %v3334
    %v3607 = vmul.f32 %v2541, %v3336
    %v3608 = vmul.f32 %v2543, %v3338
    %v3609 = vmul.f32 %v1641, %v3340
    %v3610 = vmul.f32 %v1643, %v3342
    %v3611 = vmul.f32 %v1867, %v3344
    %v3612 = vmul.f32 %v1869, %v3346
    %v3613 = vmul.f32 %v2093, %v3348
    %v3614 = vmul.f32 %v2095, %v3350
    %v3615 = vmul.f32 %v2319, %v3352
    %v3616 = vmul.f32 %v2321, %v3354
    %v3617 = vmul.f32 %v2545, %v3356
    %v3618 = vmul.f32 %v2547, %v3358
    %v3619 = vmul.f32 %v1647, %v3360
    %v3620 = vmul.f32 %v1649, %v3362
    %v3621 = vmul.f32 %v1873, %v3364
    %v3622 = vmul.f32 %v1875, %v3366
    %v3623 = vmul.f32 %v2099, %v3368
    %v3624 = vmul.f32 %v2101, %v3370
    %v3625 = vmul.f32 %v2325, %v3372
    %v3626 = vmul.f32 %v2327, %v3374
    %v3627 = vmul.f32 %v2551, %v3376
    %v3628 = vmul.f32 %v2553, %v3378
    %v3629 = vmul.f32 %v1651, %v3380
    %v3630 = vmul.f32 %v1653, %v3382
    %v3631 = vmul.f32 %v1877, %v3384
    %v3632 = vmul.f32 %v1879, %v3386
    %v3633 = vmul.f32 %v2103, %v3388
    %v3634 = vmul.f32 %v2105, %v3390
    %v3635 = vmul.f32 %v2329, %v3392
    %v3636 = vmul.f32 %v2331, %v3394
    %v3637 = vmul.f32 %v2555, %v3396
    %v3638 = vmul.f32 %v2557, %v3398
    %v3639 = vmul.f32 %v1657, %v3400
    %v3640 = vmul.f32 %v1659, %v3402
    %v3641 = vmul.f32 %v1883, %v3404
    %v3642 = vmul.f32 %v1885, %v3406
    %v3643 = vmul.f32 %v2109, %v3408
    %v3644 = vmul.f32 %v2111, %v3410
    %v3645 = vmul.f32 %v2335, %v3412
    %v3646 = vmul.f32 %v2337, %v3414
    %v3647 = vmul.f32 %v2561, %v3416
    %v3648 = vmul.f32 %v2563, %v3418
    %v3649 = vmul.f32 %v1661, %v3420
    %v3650 = vmul.f32 %v1663, %v3422
    %v3651 = vmul.f32 %v1887, %v3424
    %v3652 = vmul.f32 %v1889, %v3426
    %v3653 = vmul.f32 %v2113, %v3428
    %v3654 = vmul.f32 %v2115, %v3430
    %v3655 = vmul.f32 %v2339, %v3432
    %v3656 = vmul.f32 %v2341, %v3434
    %v3657 = vmul.f32 %v2565, %v3436
    %v3658 = vmul.f32 %v2567, %v3438
    %v3659 = vmul.f32 %v1667, %v3440
    %v3660 = vmul.f32 %v1669, %v3442
    %v3661 = vmul.f32 %v1893, %v3444
    %v3662 = vmul.f32 %v1895, %v3446
    %v3663 = vmul.f32 %v2119, %v3448
    %v3664 = vmul.f32 %v2121, %v3450
    %v3665 = vmul.f32 %v2345, %v3452
    %v3666 = vmul.f32 %v2347, %v3454
    %v3667 = vmul.f32 %v2571, %v3456
    %v3668 = vmul.f32 %v2573, %v3458
    %v3669 = vmul.f32 %v1671, %v3460
    %v3670 = vmul.f32 %v1673, %v3462
    %v3671 = vmul.f32 %v1897, %v3464
    %v3672 = vmul.f32 %v1899, %v3466
    %v3673 = vmul.f32 %v2123, %v3468
    %v3674 = vmul.f32 %v2125, %v3470
    %v3675 = vmul.f32 %v2349, %v3472
    %v3676 = vmul.f32 %v2351, %v3474
    %v3677 = vmul.f32 %v2575, %v3476
    %v3678 = vmul.f32 %v2577, %v3478
    %v3679 = vmul.f32 %v1677, %v3480
    %v3680 = vmul.f32 %v1679, %v3482
    %v3681 = vmul.f32 %v1903, %v3484
    %v3682 = vmul.f32 %v1905, %v3486
    %v3683 = vmul.f32 %v2129, %v3488
    %v3684 = vmul.f32 %v2131, %v3490
    %v3685 = vmul.f32 %v2355, %v3492
    %v3686 = vmul.f32 %v2357, %v3494
    %v3687 = vmul.f32 %v2581, %v3496
    %v3688 = vmul.f32 %v2583, %v3498
    %v3689 = vmul.f32 %v1681, %v3500
    %v3690 = vmul.f32 %v1683, %v3502
    %v3691 = vmul.f32 %v1907, %v3504
    %v3692 = vmul.f32 %v1909, %v3506
    %v3693 = vmul.f32 %v2133, %v3508
    %v3694 = vmul.f32 %v2135, %v3510
    %v3695 = vmul.f32 %v2359, %v3512
    %v3696 = vmul.f32 %v2361, %v3514
    %v3697 = vmul.f32 %v2585, %v3516
    %v3698 = vmul.f32 %v2587, %v3518
    %v3699 = vmul.f32 %v1687, %v3520
    %v3700 = vmul.f32 %v1689, %v3522
    %v3701 = vmul.f32 %v1913, %v3524
    %v3702 = vmul.f32 %v1915, %v3526
    %v3703 = vmul.f32 %v2139, %v3528
    %v3704 = vmul.f32 %v2141, %v3530
    %v3705 = vmul.f32 %v2365, %v3532
    %v3706 = vmul.f32 %v2367, %v3534
    %v3707 = vmul.f32 %v2591, %v3536
    %v3708 = vmul.f32 %v2593, %v3538
    %v3709 = vmul.f32 %v1691, %v3540
    %v3710 = vmul.f32 %v1693, %v3542
    %v3711 = vmul.f32 %v1917, %v3544
    %v3712 = vmul.f32 %v1919, %v3546
    %v3713 = vmul.f32 %v2143, %v3548
    %v3714 = vmul.f32 %v2145, %v3550
    %v3715 = vmul.f32 %v2369, %v3552
    %v3716 = vmul.f32 %v2371, %v3554
    %v3717 = vmul.f32 %v2595, %v3556
    %v3718 = vmul.f32 %v2597, %v3558
    %v3719 = vld [vmem:[%s3] sm:$0xf]
    %v3720 = vpack.c.bf16 %v3569, %v3559
    %v3721 = vpack.c.bf16 %v3570, %v3560
    %v3722 = vpack.c.bf16 %v3571, %v3561
    %v3723 = vpack.c.bf16 %v3572, %v3562
    %v3724 = vpack.c.bf16 %v3573, %v3563
    %v3725 = vpack.c.bf16 %v3574, %v3564
    %v3726 = vpack.c.bf16 %v3575, %v3565
    %v3727 = vpack.c.bf16 %v3576, %v3566
    %v3728 = vpack.c.bf16 %v3577, %v3567
    %v3729 = vpack.c.bf16 %v3578, %v3568
    %v3730 = vpack.c.bf16 %v3589, %v3579
    %v3731 = vpack.c.bf16 %v3590, %v3580
    %v3732 = vpack.c.bf16 %v3591, %v3581
    %v3733 = vpack.c.bf16 %v3592, %v3582
    %v3734 = vpack.c.bf16 %v3593, %v3583
    %v3735 = vpack.c.bf16 %v3594, %v3584
    %v3736 = vpack.c.bf16 %v3595, %v3585
    %v3737 = vpack.c.bf16 %v3596, %v3586
    %v3738 = vpack.c.bf16 %v3597, %v3587
    %v3739 = vpack.c.bf16 %v3598, %v3588
    %v3740 = vpack.c.bf16 %v3609, %v3599
    %v3741 = vpack.c.bf16 %v3610, %v3600
    %v3742 = vpack.c.bf16 %v3611, %v3601
    %v3743 = vpack.c.bf16 %v3612, %v3602
    %v3744 = vpack.c.bf16 %v3613, %v3603
    %v3745 = vpack.c.bf16 %v3614, %v3604
    %v3746 = vpack.c.bf16 %v3615, %v3605
    %v3747 = vpack.c.bf16 %v3616, %v3606
    %v3748 = vpack.c.bf16 %v3617, %v3607
    %v3749 = vpack.c.bf16 %v3618, %v3608
    %v3750 = vpack.c.bf16 %v3629, %v3619
    %v3751 = vpack.c.bf16 %v3630, %v3620
    %v3752 = vpack.c.bf16 %v3631, %v3621
    %v3753 = vpack.c.bf16 %v3632, %v3622
    %v3754 = vpack.c.bf16 %v3633, %v3623
    %v3755 = vpack.c.bf16 %v3634, %v3624
    %v3756 = vpack.c.bf16 %v3635, %v3625
    %v3757 = vpack.c.bf16 %v3636, %v3626
    %v3758 = vpack.c.bf16 %v3637, %v3627
    %v3759 = vpack.c.bf16 %v3638, %v3628
    %v3760 = vpack.c.bf16 %v3649, %v3639
    %v3761 = vpack.c.bf16 %v3650, %v3640
    %v3762 = vpack.c.bf16 %v3651, %v3641
    %v3763 = vpack.c.bf16 %v3652, %v3642
    %v3764 = vpack.c.bf16 %v3653, %v3643
    %v3765 = vpack.c.bf16 %v3654, %v3644
    %v3766 = vpack.c.bf16 %v3655, %v3645
    %v3767 = vpack.c.bf16 %v3656, %v3646
    %v3768 = vpack.c.bf16 %v3657, %v3647
    %v3769 = vpack.c.bf16 %v3658, %v3648
    %v3770 = vpack.c.bf16 %v3669, %v3659
    %v3771 = vpack.c.bf16 %v3670, %v3660
    %v3772 = vpack.c.bf16 %v3671, %v3661
    %v3773 = vpack.c.bf16 %v3672, %v3662
    %v3774 = vpack.c.bf16 %v3673, %v3663
    %v3775 = vpack.c.bf16 %v3674, %v3664
    %v3776 = vpack.c.bf16 %v3675, %v3665
    %v3777 = vpack.c.bf16 %v3676, %v3666
    %v3778 = vpack.c.bf16 %v3677, %v3667
    %v3779 = vpack.c.bf16 %v3678, %v3668
    %v3780 = vpack.c.bf16 %v3689, %v3679
    %v3781 = vpack.c.bf16 %v3690, %v3680
    %v3782 = vpack.c.bf16 %v3691, %v3681
    %v3783 = vpack.c.bf16 %v3692, %v3682
    %v3784 = vpack.c.bf16 %v3693, %v3683
    %v3785 = vpack.c.bf16 %v3694, %v3684
    %v3786 = vpack.c.bf16 %v3695, %v3685
    %v3787 = vpack.c.bf16 %v3696, %v3686
    %v3788 = vpack.c.bf16 %v3697, %v3687
    %v3789 = vpack.c.bf16 %v3698, %v3688
    %v3790 = vpack.c.bf16 %v3709, %v3699
    %v3791 = vpack.c.bf16 %v3710, %v3700
    %v3792 = vpack.c.bf16 %v3711, %v3701
    %v3793 = vpack.c.bf16 %v3712, %v3702
    %v3794 = vpack.c.bf16 %v3713, %v3703
    %v3795 = vpack.c.bf16 %v3714, %v3704
    %v3796 = vpack.c.bf16 %v3715, %v3705
    %v3797 = vpack.c.bf16 %v3716, %v3706
    %v3798 = vpack.c.bf16 %v3717, %v3707
    %v3799 = vpack.c.bf16 %v3718, %v3708
    %3800 = vmatprep.subr.bf16.mxu0 %v3721
    %3801 = vmatpush1.bf16.msra.mxu0 %v3720
    %3802 = vmatprep.subr.bf16.mxu0 %v3731
    %3803 = vmatpush1.bf16.msra.mxu0 %v3730
    %3804 = vmatprep.subr.bf16.mxu0 %v3741
    %3805 = vmatpush1.bf16.msra.mxu0 %v3740
    %3806 = vmatprep.subr.bf16.mxu0 %v3751
    %3807 = vmatpush1.bf16.msra.mxu0 %v3750
    %3808 = vmatprep.subr.bf16.mxu0 %v3761
    %3809 = vmatpush1.bf16.msra.mxu0 %v3760
    %3810 = vmatprep.subr.bf16.mxu0 %v3771
    %3811 = vmatpush1.bf16.msra.mxu0 %v3770
    %3812 = vmatprep.subr.bf16.mxu0 %v3781
    %3813 = vmatpush1.bf16.msra.mxu0 %v3780
    %3814 = vmatprep.subr.bf16.mxu0 %v3791
    %3815 = vmatpush1.bf16.msra.mxu0 %v3790
    %3816 = vmatprep.subr.bf16.mxu0 0
    %3817 = vmatpush1.bf16.msra.mxu0 0
    %3818 = vmatprep.subr.bf16.mxu0 0
    %3819 = vmatpush1.bf16.msra.mxu0 0
    %3820 = vmatprep.subr.bf16.mxu0 0
    %3821 = vmatpush1.bf16.msra.mxu0 0
    %3822 = vmatprep.subr.bf16.mxu0 0
    %3823 = vmatpush1.bf16.msra.mxu0 0
    %3824 = vmatprep.subr.bf16.mxu0 0
    %3825 = vmatpush1.bf16.msra.mxu0 0
    %3826 = vmatprep.subr.bf16.mxu0 0
    %3827 = vmatpush1.bf16.msra.mxu0 0
    %3828 = vmatprep.subr.bf16.mxu0 0
    %3829 = vmatpush1.bf16.msra.mxu0 0
    %3830 = vmatprep.subr.bf16.mxu0 0
    %3831 = vmatpush1.bf16.msra.mxu0 0
    %3832 = vmatprep.mubr.bf16.mxu0 0
    %3833 = vmatmul.mubr.bf16.gmra.mrb[0].mxu0 %v3719
    %v3834 = vpop.f32.mrb[0].mxu0
    %v3835 = vadd.f32 0.0, %v3834
    %v3836 = vpop.f32.mrb[0].mxu0
    %v3837 = vadd.f32 0.0, %v3836
    %v3838 = vpop.f32.mrb[0].mxu0
    %v3839 = vpop.f32.mrb[0].mxu0
    %3840 = vdwg.mxu0
    %3841 = vmatprep.subr.bf16.mxu0 %v3723
    %3842 = vmatpush1.bf16.msra.mxu0 %v3722
    %3843 = vmatprep.subr.bf16.mxu0 %v3733
    %3844 = vmatpush1.bf16.msra.mxu0 %v3732
    %3845 = vmatprep.subr.bf16.mxu0 %v3743
    %3846 = vmatpush1.bf16.msra.mxu0 %v3742
    %3847 = vmatprep.subr.bf16.mxu0 %v3753
    %3848 = vmatpush1.bf16.msra.mxu0 %v3752
    %3849 = vmatprep.subr.bf16.mxu0 %v3763
    %3850 = vmatpush1.bf16.msra.mxu0 %v3762
    %3851 = vmatprep.subr.bf16.mxu0 %v3773
    %3852 = vmatpush1.bf16.msra.mxu0 %v3772
    %3853 = vmatprep.subr.bf16.mxu0 %v3783
    %3854 = vmatpush1.bf16.msra.mxu0 %v3782
    %3855 = vmatprep.subr.bf16.mxu0 %v3793
    %3856 = vmatpush1.bf16.msra.mxu0 %v3792
    %3857 = vmatprep.subr.bf16.mxu0 0
    %3858 = vmatpush1.bf16.msra.mxu0 0
    %3859 = vmatprep.subr.bf16.mxu0 0
    %3860 = vmatpush1.bf16.msra.mxu0 0
    %3861 = vmatprep.subr.bf16.mxu0 0
    %3862 = vmatpush1.bf16.msra.mxu0 0
    %3863 = vmatprep.subr.bf16.mxu0 0
    %3864 = vmatpush1.bf16.msra.mxu0 0
    %3865 = vmatprep.subr.bf16.mxu0 0
    %3866 = vmatpush1.bf16.msra.mxu0 0
    %3867 = vmatprep.subr.bf16.mxu0 0
    %3868 = vmatpush1.bf16.msra.mxu0 0
    %3869 = vmatprep.subr.bf16.mxu0 0
    %3870 = vmatpush1.bf16.msra.mxu0 0
    %3871 = vmatprep.subr.bf16.mxu0 0
    %3872 = vmatpush1.bf16.msra.mxu0 0
    %3873 = vmatprep.mubr.bf16.mxu0 0
    %3874 = vmatmul.mubr.bf16.gmra.mrb[0].mxu0 %v3719
    %v3875 = vpop.f32.mrb[0].mxu0
    %v3876 = vadd.f32 0.0, %v3875
    %v3877 = vpop.f32.mrb[0].mxu0
    %v3878 = vadd.f32 0.0, %v3877
    %v3879 = vpop.f32.mrb[0].mxu0
    %v3880 = vpop.f32.mrb[0].mxu0
    %3881 = vdwg.mxu0
    %3882 = vmatprep.subr.bf16.mxu0 %v3725
    %3883 = vmatpush1.bf16.msra.mxu0 %v3724
    %3884 = vmatprep.subr.bf16.mxu0 %v3735
    %3885 = vmatpush1.bf16.msra.mxu0 %v3734
    %3886 = vmatprep.subr.bf16.mxu0 %v3745
    %3887 = vmatpush1.bf16.msra.mxu0 %v3744
    %3888 = vmatprep.subr.bf16.mxu0 %v3755
    %3889 = vmatpush1.bf16.msra.mxu0 %v3754
    %3890 = vmatprep.subr.bf16.mxu0 %v3765
    %3891 = vmatpush1.bf16.msra.mxu0 %v3764
    %3892 = vmatprep.subr.bf16.mxu0 %v3775
    %3893 = vmatpush1.bf16.msra.mxu0 %v3774
    %3894 = vmatprep.subr.bf16.mxu0 %v3785
    %3895 = vmatpush1.bf16.msra.mxu0 %v3784
    %3896 = vmatprep.subr.bf16.mxu0 %v3795
    %3897 = vmatpush1.bf16.msra.mxu0 %v3794
    %3898 = vmatprep.subr.bf16.mxu0 0
    %3899 = vmatpush1.bf16.msra.mxu0 0
    %3900 = vmatprep.subr.bf16.mxu0 0
    %3901 = vmatpush1.bf16.msra.mxu0 0
    %3902 = vmatprep.subr.bf16.mxu0 0
    %3903 = vmatpush1.bf16.msra.mxu0 0
    %3904 = vmatprep.subr.bf16.mxu0 0
    %3905 = vmatpush1.bf16.msra.mxu0 0
    %3906 = vmatprep.subr.bf16.mxu0 0
    %3907 = vmatpush1.bf16.msra.mxu0 0
    %3908 = vmatprep.subr.bf16.mxu0 0
    %3909 = vmatpush1.bf16.msra.mxu0 0
    %3910 = vmatprep.subr.bf16.mxu0 0
    %3911 = vmatpush1.bf16.msra.mxu0 0
    %3912 = vmatprep.subr.bf16.mxu0 0
    %3913 = vmatpush1.bf16.msra.mxu0 0
    %3914 = vmatprep.mubr.bf16.mxu0 0
    %3915 = vmatmul.mubr.bf16.gmra.mrb[0].mxu0 %v3719
    %v3916 = vpop.f32.mrb[0].mxu0
    %v3917 = vadd.f32 0.0, %v3916
    %v3918 = vpop.f32.mrb[0].mxu0
    %v3919 = vadd.f32 0.0, %v3918
    %v3920 = vpop.f32.mrb[0].mxu0
    %v3921 = vpop.f32.mrb[0].mxu0
    %3922 = vdwg.mxu0
    %3923 = vmatprep.subr.bf16.mxu0 %v3727
    %3924 = vmatpush1.bf16.msra.mxu0 %v3726
    %3925 = vmatprep.subr.bf16.mxu0 %v3737
    %3926 = vmatpush1.bf16.msra.mxu0 %v3736
    %3927 = vmatprep.subr.bf16.mxu0 %v3747
    %3928 = vmatpush1.bf16.msra.mxu0 %v3746
    %3929 = vmatprep.subr.bf16.mxu0 %v3757
    %3930 = vmatpush1.bf16.msra.mxu0 %v3756
    %3931 = vmatprep.subr.bf16.mxu0 %v3767
    %3932 = vmatpush1.bf16.msra.mxu0 %v3766
    %3933 = vmatprep.subr.bf16.mxu0 %v3777
    %3934 = vmatpush1.bf16.msra.mxu0 %v3776
    %3935 = vmatprep.subr.bf16.mxu0 %v3787
    %3936 = vmatpush1.bf16.msra.mxu0 %v3786
    %3937 = vmatprep.subr.bf16.mxu0 %v3797
    %3938 = vmatpush1.bf16.msra.mxu0 %v3796
    %3939 = vmatprep.subr.bf16.mxu0 0
    %3940 = vmatpush1.bf16.msra.mxu0 0
    %3941 = vmatprep.subr.bf16.mxu0 0
    %3942 = vmatpush1.bf16.msra.mxu0 0
    %3943 = vmatprep.subr.bf16.mxu0 0
    %3944 = vmatpush1.bf16.msra.mxu0 0
    %3945 = vmatprep.subr.bf16.mxu0 0
    %3946 = vmatpush1.bf16.msra.mxu0 0
    %3947 = vmatprep.subr.bf16.mxu0 0
    %3948 = vmatpush1.bf16.msra.mxu0 0
    %3949 = vmatprep.subr.bf16.mxu0 0
    %3950 = vmatpush1.bf16.msra.mxu0 0
    %3951 = vmatprep.subr.bf16.mxu0 0
    %3952 = vmatpush1.bf16.msra.mxu0 0
    %3953 = vmatprep.subr.bf16.mxu0 0
    %3954 = vmatpush1.bf16.msra.mxu0 0
    %3955 = vmatprep.mubr.bf16.mxu0 0
    %3956 = vmatmul.mubr.bf16.gmra.mrb[0].mxu0 %v3719
    %v3957 = vpop.f32.mrb[0].mxu0
    %v3958 = vadd.f32 0.0, %v3957
    %v3959 = vpop.f32.mrb[0].mxu0
    %v3960 = vadd.f32 0.0, %v3959
    %v3961 = vpop.f32.mrb[0].mxu0
    %v3962 = vpop.f32.mrb[0].mxu0
    %3963 = vdwg.mxu0
    %3964 = vmatprep.subr.bf16.mxu0 %v3729
    %3965 = vmatpush1.bf16.msra.mxu0 %v3728
    %3966 = vmatprep.subr.bf16.mxu0 %v3739
    %3967 = vmatpush1.bf16.msra.mxu0 %v3738
    %3968 = vmatprep.subr.bf16.mxu0 %v3749
    %3969 = vmatpush1.bf16.msra.mxu0 %v3748
    %3970 = vmatprep.subr.bf16.mxu0 %v3759
    %3971 = vmatpush1.bf16.msra.mxu0 %v3758
    %3972 = vmatprep.subr.bf16.mxu0 %v3769
    %3973 = vmatpush1.bf16.msra.mxu0 %v3768
    %3974 = vmatprep.subr.bf16.mxu0 %v3779
    %3975 = vmatpush1.bf16.msra.mxu0 %v3778
    %3976 = vmatprep.subr.bf16.mxu0 %v3789
    %3977 = vmatpush1.bf16.msra.mxu0 %v3788
    %3978 = vmatprep.subr.bf16.mxu0 %v3799
    %3979 = vmatpush1.bf16.msra.mxu0 %v3798
    %3980 = vmatprep.subr.bf16.mxu0 0
    %3981 = vmatpush1.bf16.msra.mxu0 0
    %3982 = vmatprep.subr.bf16.mxu0 0
    %3983 = vmatpush1.bf16.msra.mxu0 0
    %3984 = vmatprep.subr.bf16.mxu0 0
    %3985 = vmatpush1.bf16.msra.mxu0 0
    %3986 = vmatprep.subr.bf16.mxu0 0
    %3987 = vmatpush1.bf16.msra.mxu0 0
    %3988 = vmatprep.subr.bf16.mxu0 0
    %3989 = vmatpush1.bf16.msra.mxu0 0
    %3990 = vmatprep.subr.bf16.mxu0 0
    %3991 = vmatpush1.bf16.msra.mxu0 0
    %3992 = vmatprep.subr.bf16.mxu0 0
    %3993 = vmatpush1.bf16.msra.mxu0 0
    %3994 = vmatprep.subr.bf16.mxu0 0
    %3995 = vmatpush1.bf16.msra.mxu0 0
    %3996 = vmatprep.mubr.bf16.mxu0 0
    %3997 = vmatmul.mubr.bf16.gmra.mrb[0].mxu0 %v3719
    %v3998 = vpop.f32.mrb[0].mxu0
    %v3999 = vadd.f32 0.0, %v3998
    %v4000 = vpop.f32.mrb[0].mxu0
    %v4001 = vadd.f32 0.0, %v4000
    %v4002 = vpop.f32.mrb[0].mxu0
    %v4003 = vpop.f32.mrb[0].mxu0
    %4004 = vdwg.mxu0
    %v4005 = vpack.c.bf16 %v3835, %v3835
    %v4006 = vpack.c.bf16 %v3837, %v3837
    %v4007 = vpack.c.bf16 %v3876, %v3876
    %v4008 = vpack.c.bf16 %v3878, %v3878
    %v4009 = vpack.c.bf16 %v3917, %v3917
    %v4010 = vpack.c.bf16 %v3919, %v3919
    %v4011 = vpack.c.bf16 %v3958, %v3958
    %v4012 = vpack.c.bf16 %v3960, %v3960
    %v4013 = vpack.c.bf16 %v3999, %v3999
    %v4014 = vpack.c.bf16 %v4001, %v4001
    %v4015 = vld [vmem:[%s4] sm:$0xf]
    %v4016 = vld [vmem:[%s4 + $0x4] sm:$0xf]
    %v4017 = vld [vmem:[%s4 + $0x8] sm:$0xf]
    %v4018 = vld [vmem:[%s4 + $0xc] sm:$0xf]
    %v4019 = vld [vmem:[%s4 + $0x10] sm:$0xf]
    %v4020 = vld [vmem:[%s4 + $0x14] sm:$0xf]
    %v4021 = vld [vmem:[%s4 + $0x18] sm:$0xf]
    %v4022 = vld [vmem:[%s4 + $0x1c] sm:$0xf]
    %v4023 = vld [vmem:[%s4 + $0x20] sm:$0xf]
    %v4024 = vld [vmem:[%s4 + $0x24] sm:$0xf]
    %v4025 = vld [vmem:[%s4 + $0x28] sm:$0xf]
    %v4026 = vld [vmem:[%s4 + $0x2c] sm:$0xf]
    %v4027 = vld [vmem:[%s4 + $0x30] sm:$0xf]
    %v4028 = vld [vmem:[%s4 + $0x34] sm:$0xf]
    %v4029 = vld [vmem:[%s4 + $0x38] sm:$0xf]
    %v4030 = vld [vmem:[%s4 + $0x3c] sm:$0xf]
    %v4031 = vld [vmem:[%s4 + $0x40] sm:$0xf]
    %v4032 = vld [vmem:[%s4 + $0x44] sm:$0xf]
    %v4033 = vld [vmem:[%s4 + $0x48] sm:$0xf]
    %v4034 = vld [vmem:[%s4 + $0x4c] sm:$0xf]
    %v4035 = vld [vmem:[%s4 + $0x50] sm:$0xf]
    %v4036 = vld [vmem:[%s4 + $0x54] sm:$0xf]
    %v4037 = vld [vmem:[%s4 + $0x58] sm:$0xf]
    %v4038 = vld [vmem:[%s4 + $0x5c] sm:$0xf]
    %v4039 = vld [vmem:[%s4 + $0x60] sm:$0xf]
    %v4040 = vld [vmem:[%s4 + $0x64] sm:$0xf]
    %v4041 = vld [vmem:[%s4 + $0x68] sm:$0xf]
    %v4042 = vld [vmem:[%s4 + $0x6c] sm:$0xf]
    %v4043 = vld [vmem:[%s4 + $0x70] sm:$0xf]
    %v4044 = vld [vmem:[%s4 + $0x74] sm:$0xf]
    %v4045 = vld [vmem:[%s4 + $0x78] sm:$0xf]
    %v4046 = vld [vmem:[%s4 + $0x7c] sm:$0xf]
    %v4047 = vld [vmem:[%s4 + $0x80] sm:$0xf]
    %v4048 = vld [vmem:[%s4 + $0x84] sm:$0xf]
    %v4049 = vld [vmem:[%s4 + $0x88] sm:$0xf]
    %v4050 = vld [vmem:[%s4 + $0x8c] sm:$0xf]
    %v4051 = vld [vmem:[%s4 + $0x90] sm:$0xf]
    %v4052 = vld [vmem:[%s4 + $0x94] sm:$0xf]
    %v4053 = vld [vmem:[%s4 + $0x98] sm:$0xf]
    %v4054 = vld [vmem:[%s4 + $0x9c] sm:$0xf]
    %v4055 = vld [vmem:[%s4 + $0xa0] sm:$0xf]
    %v4056 = vld [vmem:[%s4 + $0xa4] sm:$0xf]
    %v4057 = vld [vmem:[%s4 + $0xa8] sm:$0xf]
    %v4058 = vld [vmem:[%s4 + $0xac] sm:$0xf]
    %v4059 = vld [vmem:[%s4 + $0xb0] sm:$0xf]
    %v4060 = vld [vmem:[%s4 + $0xb4] sm:$0xf]
    %v4061 = vld [vmem:[%s4 + $0xb8] sm:$0xf]
    %v4062 = vld [vmem:[%s4 + $0xbc] sm:$0xf]
    %v4063 = vld [vmem:[%s4 + $0xc0] sm:$0xf]
    %v4064 = vld [vmem:[%s4 + $0xc4] sm:$0xf]
    %v4065 = vld [vmem:[%s4 + $0xc8] sm:$0xf]
    %v4066 = vld [vmem:[%s4 + $0xcc] sm:$0xf]
    %v4067 = vld [vmem:[%s4 + $0xd0] sm:$0xf]
    %v4068 = vld [vmem:[%s4 + $0xd4] sm:$0xf]
    %v4069 = vld [vmem:[%s4 + $0xd8] sm:$0xf]
    %v4070 = vld [vmem:[%s4 + $0xdc] sm:$0xf]
    %v4071 = vld [vmem:[%s4 + $0xe0] sm:$0xf]
    %v4072 = vld [vmem:[%s4 + $0xe4] sm:$0xf]
    %v4073 = vld [vmem:[%s4 + $0xe8] sm:$0xf]
    %v4074 = vld [vmem:[%s4 + $0xec] sm:$0xf]
    %v4075 = vld [vmem:[%s4 + $0xf0] sm:$0xf]
    %v4076 = vld [vmem:[%s4 + $0xf4] sm:$0xf]
    %v4077 = vld [vmem:[%s4 + $0xf8] sm:$0xf]
    %v4078 = vld [vmem:[%s4 + $0xfc] sm:$0xf]
    %v4079 = vld [vmem:[%s4 + $0x100] sm:$0xf]
    %v4080 = vld [vmem:[%s4 + $0x104] sm:$0xf]
    %v4081 = vld [vmem:[%s4 + $0x108] sm:$0xf]
    %v4082 = vld [vmem:[%s4 + $0x10c] sm:$0xf]
    %v4083 = vld [vmem:[%s4 + $0x110] sm:$0xf]
    %v4084 = vld [vmem:[%s4 + $0x114] sm:$0xf]
    %v4085 = vld [vmem:[%s4 + $0x118] sm:$0xf]
    %v4086 = vld [vmem:[%s4 + $0x11c] sm:$0xf]
    %v4087 = vld [vmem:[%s4 + $0x120] sm:$0xf]
    %v4088 = vld [vmem:[%s4 + $0x124] sm:$0xf]
    %v4089 = vld [vmem:[%s4 + $0x128] sm:$0xf]
    %v4090 = vld [vmem:[%s4 + $0x12c] sm:$0xf]
    %v4091 = vld [vmem:[%s4 + $0x130] sm:$0xf]
    %v4092 = vld [vmem:[%s4 + $0x134] sm:$0xf]
    %v4093 = vld [vmem:[%s4 + $0x138] sm:$0xf]
    %v4094 = vld [vmem:[%s4 + $0x13c] sm:$0xf]
    %v4095 = vld [vmem:[%s4 + $0x140] sm:$0xf]
    %v4096 = vld [vmem:[%s4 + $0x144] sm:$0xf]
    %v4097 = vld [vmem:[%s4 + $0x148] sm:$0xf]
    %v4098 = vld [vmem:[%s4 + $0x14c] sm:$0xf]
    %v4099 = vld [vmem:[%s4 + $0x150] sm:$0xf]
    %v4100 = vld [vmem:[%s4 + $0x154] sm:$0xf]
    %v4101 = vld [vmem:[%s4 + $0x158] sm:$0xf]
    %v4102 = vld [vmem:[%s4 + $0x15c] sm:$0xf]
    %v4103 = vld [vmem:[%s4 + $0x160] sm:$0xf]
    %v4104 = vld [vmem:[%s4 + $0x164] sm:$0xf]
    %v4105 = vld [vmem:[%s4 + $0x168] sm:$0xf]
    %v4106 = vld [vmem:[%s4 + $0x16c] sm:$0xf]
    %v4107 = vld [vmem:[%s4 + $0x170] sm:$0xf]
    %v4108 = vld [vmem:[%s4 + $0x174] sm:$0xf]
    %v4109 = vld [vmem:[%s4 + $0x178] sm:$0xf]
    %v4110 = vld [vmem:[%s4 + $0x17c] sm:$0xf]
    %v4111 = vld [vmem:[%s4 + $0x180] sm:$0xf]
    %v4112 = vld [vmem:[%s4 + $0x184] sm:$0xf]
    %v4113 = vld [vmem:[%s4 + $0x188] sm:$0xf]
    %v4114 = vld [vmem:[%s4 + $0x18c] sm:$0xf]
    %v4115 = vld [vmem:[%s4 + $0x190] sm:$0xf]
    %v4116 = vld [vmem:[%s4 + $0x194] sm:$0xf]
    %v4117 = vld [vmem:[%s4 + $0x198] sm:$0xf]
    %v4118 = vld [vmem:[%s4 + $0x19c] sm:$0xf]
    %v4119 = vld [vmem:[%s4 + $0x1a0] sm:$0xf]
    %v4120 = vld [vmem:[%s4 + $0x1a4] sm:$0xf]
    %v4121 = vld [vmem:[%s4 + $0x1a8] sm:$0xf]
    %v4122 = vld [vmem:[%s4 + $0x1ac] sm:$0xf]
    %v4123 = vld [vmem:[%s4 + $0x1b0] sm:$0xf]
    %v4124 = vld [vmem:[%s4 + $0x1b4] sm:$0xf]
    %v4125 = vld [vmem:[%s4 + $0x1b8] sm:$0xf]
    %v4126 = vld [vmem:[%s4 + $0x1bc] sm:$0xf]
    %v4127 = vld [vmem:[%s4 + $0x1c0] sm:$0xf]
    %v4128 = vld [vmem:[%s4 + $0x1c4] sm:$0xf]
    %v4129 = vld [vmem:[%s4 + $0x1c8] sm:$0xf]
    %v4130 = vld [vmem:[%s4 + $0x1cc] sm:$0xf]
    %v4131 = vld [vmem:[%s4 + $0x1d0] sm:$0xf]
    %v4132 = vld [vmem:[%s4 + $0x1d4] sm:$0xf]
    %v4133 = vld [vmem:[%s4 + $0x1d8] sm:$0xf]
    %v4134 = vld [vmem:[%s4 + $0x1dc] sm:$0xf]
    %v4135 = vld [vmem:[%s4 + $0x1e0] sm:$0xf]
    %v4136 = vld [vmem:[%s4 + $0x1e4] sm:$0xf]
    %v4137 = vld [vmem:[%s4 + $0x1e8] sm:$0xf]
    %v4138 = vld [vmem:[%s4 + $0x1ec] sm:$0xf]
    %v4139 = vld [vmem:[%s4 + $0x1f0] sm:$0xf]
    %v4140 = vld [vmem:[%s4 + $0x1f4] sm:$0xf]
    %v4141 = vld [vmem:[%s4 + $0x1f8] sm:$0xf]
    %v4142 = vld [vmem:[%s4 + $0x1fc] sm:$0xf]
    %v4143 = vld [vmem:[%s4 + $0x200] sm:$0xf]
    %v4144 = vld [vmem:[%s4 + $0x204] sm:$0xf]
    %v4145 = vld [vmem:[%s4 + $0x208] sm:$0xf]
    %v4146 = vld [vmem:[%s4 + $0x20c] sm:$0xf]
    %v4147 = vld [vmem:[%s4 + $0x210] sm:$0xf]
    %v4148 = vld [vmem:[%s4 + $0x214] sm:$0xf]
    %v4149 = vld [vmem:[%s4 + $0x218] sm:$0xf]
    %v4150 = vld [vmem:[%s4 + $0x21c] sm:$0xf]
    %v4151 = vld [vmem:[%s4 + $0x220] sm:$0xf]
    %v4152 = vld [vmem:[%s4 + $0x224] sm:$0xf]
    %v4153 = vld [vmem:[%s4 + $0x228] sm:$0xf]
    %v4154 = vld [vmem:[%s4 + $0x22c] sm:$0xf]
    %v4155 = vld [vmem:[%s4 + $0x230] sm:$0xf]
    %v4156 = vld [vmem:[%s4 + $0x234] sm:$0xf]
    %v4157 = vld [vmem:[%s4 + $0x238] sm:$0xf]
    %v4158 = vld [vmem:[%s4 + $0x23c] sm:$0xf]
    %v4159 = vld [vmem:[%s4 + $0x240] sm:$0xf]
    %v4160 = vld [vmem:[%s4 + $0x244] sm:$0xf]
    %v4161 = vld [vmem:[%s4 + $0x248] sm:$0xf]
    %v4162 = vld [vmem:[%s4 + $0x24c] sm:$0xf]
    %v4163 = vld [vmem:[%s4 + $0x250] sm:$0xf]
    %v4164 = vld [vmem:[%s4 + $0x254] sm:$0xf]
    %v4165 = vld [vmem:[%s4 + $0x258] sm:$0xf]
    %v4166 = vld [vmem:[%s4 + $0x25c] sm:$0xf]
    %v4167 = vld [vmem:[%s4 + $0x260] sm:$0xf]
    %v4168 = vld [vmem:[%s4 + $0x264] sm:$0xf]
    %v4169 = vld [vmem:[%s4 + $0x268] sm:$0xf]
    %v4170 = vld [vmem:[%s4 + $0x26c] sm:$0xf]
    %v4171 = vld [vmem:[%s4 + $0x270] sm:$0xf]
    %v4172 = vld [vmem:[%s4 + $0x274] sm:$0xf]
    %v4173 = vld [vmem:[%s4 + $0x278] sm:$0xf]
    %v4174 = vld [vmem:[%s4 + $0x27c] sm:$0xf]
    %v4175 = vld [vmem:[%s5] sm:$0x1]
    %v4177 = vlaneseq
    %v4178 = vshrl.u32 %v4177, 7
    %v4179 = vsub.s32 0, %v4178
    %v4180 = vrot.slane %v4175, %v4179
    %v4342 = vunpack.c.l.b16 %v4015
    %v4343 = vunpack.c.l.b16 %v4016
    %v4344 = vunpack.c.l.b16 %v4017
    %v4345 = vunpack.c.l.b16 %v4018
    %v4346 = vunpack.c.l.b16 %v4019
    %v4347 = vunpack.c.l.b16 %v4020
    %v4348 = vunpack.c.l.b16 %v4021
    %v4349 = vunpack.c.l.b16 %v4022
    %v4350 = vunpack.c.l.b16 %v4023
    %v4351 = vunpack.c.l.b16 %v4024
    %v4352 = vunpack.c.l.b16 %v4025
    %v4353 = vunpack.c.l.b16 %v4026
    %v4354 = vunpack.c.l.b16 %v4027
    %v4355 = vunpack.c.l.b16 %v4028
    %v4356 = vunpack.c.l.b16 %v4029
    %v4357 = vunpack.c.l.b16 %v4030
    %v4358 = vunpack.c.l.b16 %v4031
    %v4359 = vunpack.c.l.b16 %v4032
    %v4360 = vunpack.c.l.b16 %v4033
    %v4361 = vunpack.c.l.b16 %v4034
    %v4362 = vunpack.c.l.b16 %v4035
    %v4363 = vunpack.c.l.b16 %v4036
    %v4364 = vunpack.c.l.b16 %v4037
    %v4365 = vunpack.c.l.b16 %v4038
    %v4366 = vunpack.c.l.b16 %v4039
    %v4367 = vunpack.c.l.b16 %v4040
    %v4368 = vunpack.c.l.b16 %v4041
    %v4369 = vunpack.c.l.b16 %v4042
    %v4370 = vunpack.c.l.b16 %v4043
    %v4371 = vunpack.c.l.b16 %v4044
    %v4372 = vunpack.c.l.b16 %v4045
    %v4373 = vunpack.c.l.b16 %v4046
    %v4374 = vunpack.c.l.b16 %v4047
    %v4375 = vunpack.c.l.b16 %v4048
    %v4376 = vunpack.c.l.b16 %v4049
    %v4377 = vunpack.c.l.b16 %v4050
    %v4378 = vunpack.c.l.b16 %v4051
    %v4379 = vunpack.c.l.b16 %v4052
    %v4380 = vunpack.c.l.b16 %v4053
    %v4381 = vunpack.c.l.b16 %v4054
    %v4382 = vunpack.c.l.b16 %v4055
    %v4383 = vunpack.c.l.b16 %v4056
    %v4384 = vunpack.c.l.b16 %v4057
    %v4385 = vunpack.c.l.b16 %v4058
    %v4386 = vunpack.c.l.b16 %v4059
    %v4387 = vunpack.c.l.b16 %v4060
    %v4388 = vunpack.c.l.b16 %v4061
    %v4389 = vunpack.c.l.b16 %v4062
    %v4390 = vunpack.c.l.b16 %v4063
    %v4391 = vunpack.c.l.b16 %v4064
    %v4392 = vunpack.c.l.b16 %v4065
    %v4393 = vunpack.c.l.b16 %v4066
    %v4394 = vunpack.c.l.b16 %v4067
    %v4395 = vunpack.c.l.b16 %v4068
    %v4396 = vunpack.c.l.b16 %v4069
    %v4397 = vunpack.c.l.b16 %v4070
    %v4398 = vunpack.c.l.b16 %v4071
    %v4399 = vunpack.c.l.b16 %v4072
    %v4400 = vunpack.c.l.b16 %v4073
    %v4401 = vunpack.c.l.b16 %v4074
    %v4402 = vunpack.c.l.b16 %v4075
    %v4403 = vunpack.c.l.b16 %v4076
    %v4404 = vunpack.c.l.b16 %v4077
    %v4405 = vunpack.c.l.b16 %v4078
    %v4406 = vunpack.c.l.b16 %v4079
    %v4407 = vunpack.c.l.b16 %v4080
    %v4408 = vunpack.c.l.b16 %v4081
    %v4409 = vunpack.c.l.b16 %v4082
    %v4410 = vunpack.c.l.b16 %v4083
    %v4411 = vunpack.c.l.b16 %v4084
    %v4412 = vunpack.c.l.b16 %v4085
    %v4413 = vunpack.c.l.b16 %v4086
    %v4414 = vunpack.c.l.b16 %v4087
    %v4415 = vunpack.c.l.b16 %v4088
    %v4416 = vunpack.c.l.b16 %v4089
    %v4417 = vunpack.c.l.b16 %v4090
    %v4418 = vunpack.c.l.b16 %v4091
    %v4419 = vunpack.c.l.b16 %v4092
    %v4420 = vunpack.c.l.b16 %v4093
    %v4421 = vunpack.c.l.b16 %v4094
    %v4422 = vunpack.c.l.b16 %v4095
    %v4423 = vunpack.c.l.b16 %v4096
    %v4424 = vunpack.c.l.b16 %v4097
    %v4425 = vunpack.c.l.b16 %v4098
    %v4426 = vunpack.c.l.b16 %v4099
    %v4427 = vunpack.c.l.b16 %v4100
    %v4428 = vunpack.c.l.b16 %v4101
    %v4429 = vunpack.c.l.b16 %v4102
    %v4430 = vunpack.c.l.b16 %v4103
    %v4431 = vunpack.c.l.b16 %v4104
    %v4432 = vunpack.c.l.b16 %v4105
    %v4433 = vunpack.c.l.b16 %v4106
    %v4434 = vunpack.c.l.b16 %v4107
    %v4435 = vunpack.c.l.b16 %v4108
    %v4436 = vunpack.c.l.b16 %v4109
    %v4437 = vunpack.c.l.b16 %v4110
    %v4438 = vunpack.c.l.b16 %v4111
    %v4439 = vunpack.c.l.b16 %v4112
    %v4440 = vunpack.c.l.b16 %v4113
    %v4441 = vunpack.c.l.b16 %v4114
    %v4442 = vunpack.c.l.b16 %v4115
    %v4443 = vunpack.c.l.b16 %v4116
    %v4444 = vunpack.c.l.b16 %v4117
    %v4445 = vunpack.c.l.b16 %v4118
    %v4446 = vunpack.c.l.b16 %v4119
    %v4447 = vunpack.c.l.b16 %v4120
    %v4448 = vunpack.c.l.b16 %v4121
    %v4449 = vunpack.c.l.b16 %v4122
    %v4450 = vunpack.c.l.b16 %v4123
    %v4451 = vunpack.c.l.b16 %v4124
    %v4452 = vunpack.c.l.b16 %v4125
    %v4453 = vunpack.c.l.b16 %v4126
    %v4454 = vunpack.c.l.b16 %v4127
    %v4455 = vunpack.c.l.b16 %v4128
    %v4456 = vunpack.c.l.b16 %v4129
    %v4457 = vunpack.c.l.b16 %v4130
    %v4458 = vunpack.c.l.b16 %v4131
    %v4459 = vunpack.c.l.b16 %v4132
    %v4460 = vunpack.c.l.b16 %v4133
    %v4461 = vunpack.c.l.b16 %v4134
    %v4462 = vunpack.c.l.b16 %v4135
    %v4463 = vunpack.c.l.b16 %v4136
    %v4464 = vunpack.c.l.b16 %v4137
    %v4465 = vunpack.c.l.b16 %v4138
    %v4466 = vunpack.c.l.b16 %v4139
    %v4467 = vunpack.c.l.b16 %v4140
    %v4468 = vunpack.c.l.b16 %v4141
    %v4469 = vunpack.c.l.b16 %v4142
    %v4470 = vunpack.c.l.b16 %v4143
    %v4471 = vunpack.c.l.b16 %v4144
    %v4472 = vunpack.c.l.b16 %v4145
    %v4473 = vunpack.c.l.b16 %v4146
    %v4474 = vunpack.c.l.b16 %v4147
    %v4475 = vunpack.c.l.b16 %v4148
    %v4476 = vunpack.c.l.b16 %v4149
    %v4477 = vunpack.c.l.b16 %v4150
    %v4478 = vunpack.c.l.b16 %v4151
    %v4479 = vunpack.c.l.b16 %v4152
    %v4480 = vunpack.c.l.b16 %v4153
    %v4481 = vunpack.c.l.b16 %v4154
    %v4482 = vunpack.c.l.b16 %v4155
    %v4483 = vunpack.c.l.b16 %v4156
    %v4484 = vunpack.c.l.b16 %v4157
    %v4485 = vunpack.c.l.b16 %v4158
    %v4486 = vunpack.c.l.b16 %v4159
    %v4487 = vunpack.c.l.b16 %v4160
    %v4488 = vunpack.c.l.b16 %v4161
    %v4489 = vunpack.c.l.b16 %v4162
    %v4490 = vunpack.c.l.b16 %v4163
    %v4491 = vunpack.c.l.b16 %v4164
    %v4492 = vunpack.c.l.b16 %v4165
    %v4493 = vunpack.c.l.b16 %v4166
    %v4494 = vunpack.c.l.b16 %v4167
    %v4495 = vunpack.c.l.b16 %v4168
    %v4496 = vunpack.c.l.b16 %v4169
    %v4497 = vunpack.c.l.b16 %v4170
    %v4498 = vunpack.c.l.b16 %v4171
    %v4499 = vunpack.c.l.b16 %v4172
    %v4500 = vunpack.c.l.b16 %v4173
    %v4501 = vunpack.c.l.b16 %v4174
    %v4502 = vpack.c.b16 %v4343, %v4342
    %v4503 = vpack.c.b16 %v4345, %v4344
    %v4504 = vpack.c.b16 %v4347, %v4346
    %v4505 = vpack.c.b16 %v4349, %v4348
    %v4506 = vpack.c.b16 %v4351, %v4350
    %v4507 = vpack.c.b16 %v4353, %v4352
    %v4508 = vpack.c.b16 %v4355, %v4354
    %v4509 = vpack.c.b16 %v4357, %v4356
    %v4510 = vpack.c.b16 %v4359, %v4358
    %v4511 = vpack.c.b16 %v4361, %v4360
    %v4512 = vpack.c.b16 %v4363, %v4362
    %v4513 = vpack.c.b16 %v4365, %v4364
    %v4514 = vpack.c.b16 %v4367, %v4366
    %v4515 = vpack.c.b16 %v4369, %v4368
    %v4516 = vpack.c.b16 %v4371, %v4370
    %v4517 = vpack.c.b16 %v4373, %v4372
    %v4518 = vpack.c.b16 %v4375, %v4374
    %v4519 = vpack.c.b16 %v4377, %v4376
    %v4520 = vpack.c.b16 %v4379, %v4378
    %v4521 = vpack.c.b16 %v4381, %v4380
    %v4522 = vpack.c.b16 %v4383, %v4382
    %v4523 = vpack.c.b16 %v4385, %v4384
    %v4524 = vpack.c.b16 %v4387, %v4386
    %v4525 = vpack.c.b16 %v4389, %v4388
    %v4526 = vpack.c.b16 %v4391, %v4390
    %v4527 = vpack.c.b16 %v4393, %v4392
    %v4528 = vpack.c.b16 %v4395, %v4394
    %v4529 = vpack.c.b16 %v4397, %v4396
    %v4530 = vpack.c.b16 %v4399, %v4398
    %v4531 = vpack.c.b16 %v4401, %v4400
    %v4532 = vpack.c.b16 %v4403, %v4402
    %v4533 = vpack.c.b16 %v4405, %v4404
    %v4534 = vpack.c.b16 %v4407, %v4406
    %v4535 = vpack.c.b16 %v4409, %v4408
    %v4536 = vpack.c.b16 %v4411, %v4410
    %v4537 = vpack.c.b16 %v4413, %v4412
    %v4538 = vpack.c.b16 %v4415, %v4414
    %v4539 = vpack.c.b16 %v4417, %v4416
    %v4540 = vpack.c.b16 %v4419, %v4418
    %v4541 = vpack.c.b16 %v4421, %v4420
    %v4542 = vpack.c.b16 %v4423, %v4422
    %v4543 = vpack.c.b16 %v4425, %v4424
    %v4544 = vpack.c.b16 %v4427, %v4426
    %v4545 = vpack.c.b16 %v4429, %v4428
    %v4546 = vpack.c.b16 %v4431, %v4430
    %v4547 = vpack.c.b16 %v4433, %v4432
    %v4548 = vpack.c.b16 %v4435, %v4434
    %v4549 = vpack.c.b16 %v4437, %v4436
    %v4550 = vpack.c.b16 %v4439, %v4438
    %v4551 = vpack.c.b16 %v4441, %v4440
    %v4552 = vpack.c.b16 %v4443, %v4442
    %v4553 = vpack.c.b16 %v4445, %v4444
    %v4554 = vpack.c.b16 %v4447, %v4446
    %v4555 = vpack.c.b16 %v4449, %v4448
    %v4556 = vpack.c.b16 %v4451, %v4450
    %v4557 = vpack.c.b16 %v4453, %v4452
    %v4558 = vpack.c.b16 %v4455, %v4454
    %v4559 = vpack.c.b16 %v4457, %v4456
    %v4560 = vpack.c.b16 %v4459, %v4458
    %v4561 = vpack.c.b16 %v4461, %v4460
    %v4562 = vpack.c.b16 %v4463, %v4462
    %v4563 = vpack.c.b16 %v4465, %v4464
    %v4564 = vpack.c.b16 %v4467, %v4466
    %v4565 = vpack.c.b16 %v4469, %v4468
    %v4566 = vpack.c.b16 %v4471, %v4470
    %v4567 = vpack.c.b16 %v4473, %v4472
    %v4568 = vpack.c.b16 %v4475, %v4474
    %v4569 = vpack.c.b16 %v4477, %v4476
    %v4570 = vpack.c.b16 %v4479, %v4478
    %v4571 = vpack.c.b16 %v4481, %v4480
    %v4572 = vpack.c.b16 %v4483, %v4482
    %v4573 = vpack.c.b16 %v4485, %v4484
    %v4574 = vpack.c.b16 %v4487, %v4486
    %v4575 = vpack.c.b16 %v4489, %v4488
    %v4576 = vpack.c.b16 %v4491, %v4490
    %v4577 = vpack.c.b16 %v4493, %v4492
    %v4578 = vpack.c.b16 %v4495, %v4494
    %v4579 = vpack.c.b16 %v4497, %v4496
    %v4580 = vpack.c.b16 %v4499, %v4498
    %v4581 = vpack.c.b16 %v4501, %v4500
    %4662 = vmatprep.subr.bf16.mxu0 0
    %4663 = vmatpush1.bf16.msra.mxu0 %v4502
    %4664 = vmatprep.subr.bf16.mxu0 0
    %4665 = vmatpush1.bf16.msra.mxu0 %v4503
    %4666 = vmatprep.subr.bf16.mxu0 0
    %4667 = vmatpush1.bf16.msra.mxu0 %v4504
    %4668 = vmatprep.subr.bf16.mxu0 0
    %4669 = vmatpush1.bf16.msra.mxu0 %v4505
    %4670 = vmatprep.subr.bf16.mxu0 0
    %4671 = vmatpush1.bf16.msra.mxu0 %v4506
    %4672 = vmatprep.subr.bf16.mxu0 0
    %4673 = vmatpush1.bf16.msra.mxu0 %v4507
    %4674 = vmatprep.subr.bf16.mxu0 0
    %4675 = vmatpush1.bf16.msra.mxu0 %v4508
    %4676 = vmatprep.subr.bf16.mxu0 0
    %4677 = vmatpush1.bf16.msra.mxu0 %v4509
    %4678 = vmatprep.subr.bf16.mxu0 0
    %4679 = vmatpush1.bf16.msra.mxu0 %v4510
    %4680 = vmatprep.subr.bf16.mxu0 0
    %4681 = vmatpush1.bf16.msra.mxu0 %v4511
    %4682 = vmatprep.subr.bf16.mxu0 0
    %4683 = vmatpush1.bf16.msra.mxu0 %v4512
    %4684 = vmatprep.subr.bf16.mxu0 0
    %4685 = vmatpush1.bf16.msra.mxu0 %v4513
    %4686 = vmatprep.subr.bf16.mxu0 0
    %4687 = vmatpush1.bf16.msra.mxu0 %v4514
    %4688 = vmatprep.subr.bf16.mxu0 0
    %4689 = vmatpush1.bf16.msra.mxu0 %v4515
    %4690 = vmatprep.subr.bf16.mxu0 0
    %4691 = vmatpush1.bf16.msra.mxu0 %v4516
    %4692 = vmatprep.subr.bf16.mxu0 0
    %4693 = vmatpush1.bf16.msra.mxu0 %v4517
    %4694 = vmatprep.mubr.bf16.mxu0 %v4006
    %4695 = vmatmul.mubr.bf16.gmra.mrb[0].mxu0 %v4005
    %v4696 = vpop.f32.mrb[0].mxu0
    %v4697 = vadd.f32 %v4180, %v4696
    %v4698 = vpop.f32.mrb[0].mxu0
    %v4699 = vpop.f32.mrb[0].mxu0
    %v4700 = vpop.f32.mrb[0].mxu0
    %4701 = vdwg.mxu0
    %4702 = vmatprep.subr.bf16.mxu0 0
    %4703 = vmatpush1.bf16.msra.mxu0 %v4518
    %4704 = vmatprep.subr.bf16.mxu0 0
    %4705 = vmatpush1.bf16.msra.mxu0 %v4519
    %4706 = vmatprep.subr.bf16.mxu0 0
    %4707 = vmatpush1.bf16.msra.mxu0 %v4520
    %4708 = vmatprep.subr.bf16.mxu0 0
    %4709 = vmatpush1.bf16.msra.mxu0 %v4521
    %4710 = vmatprep.subr.bf16.mxu0 0
    %4711 = vmatpush1.bf16.msra.mxu0 %v4522
    %4712 = vmatprep.subr.bf16.mxu0 0
    %4713 = vmatpush1.bf16.msra.mxu0 %v4523
    %4714 = vmatprep.subr.bf16.mxu0 0
    %4715 = vmatpush1.bf16.msra.mxu0 %v4524
    %4716 = vmatprep.subr.bf16.mxu0 0
    %4717 = vmatpush1.bf16.msra.mxu0 %v4525
    %4718 = vmatprep.subr.bf16.mxu0 0
    %4719 = vmatpush1.bf16.msra.mxu0 %v4526
    %4720 = vmatprep.subr.bf16.mxu0 0
    %4721 = vmatpush1.bf16.msra.mxu0 %v4527
    %4722 = vmatprep.subr.bf16.mxu0 0
    %4723 = vmatpush1.bf16.msra.mxu0 %v4528
    %4724 = vmatprep.subr.bf16.mxu0 0
    %4725 = vmatpush1.bf16.msra.mxu0 %v4529
    %4726 = vmatprep.subr.bf16.mxu0 0
    %4727 = vmatpush1.bf16.msra.mxu0 %v4530
    %4728 = vmatprep.subr.bf16.mxu0 0
    %4729 = vmatpush1.bf16.msra.mxu0 %v4531
    %4730 = vmatprep.subr.bf16.mxu0 0
    %4731 = vmatpush1.bf16.msra.mxu0 %v4532
    %4732 = vmatprep.subr.bf16.mxu0 0
    %4733 = vmatpush1.bf16.msra.mxu0 %v4533
    %4734 = vmatprep.mubr.bf16.mxu0 %v4008
    %4735 = vmatmul.mubr.bf16.gmra.mrb[0].mxu0 %v4007
    %v4736 = vpop.f32.mrb[0].mxu0
    %v4737 = vadd.f32 %v4697, %v4736
    %v4738 = vpop.f32.mrb[0].mxu0
    %v4739 = vpop.f32.mrb[0].mxu0
    %v4740 = vpop.f32.mrb[0].mxu0
    %4741 = vdwg.mxu0
    %4742 = vmatprep.subr.bf16.mxu0 0
    %4743 = vmatpush1.bf16.msra.mxu0 %v4534
    %4744 = vmatprep.subr.bf16.mxu0 0
    %4745 = vmatpush1.bf16.msra.mxu0 %v4535
    %4746 = vmatprep.subr.bf16.mxu0 0
    %4747 = vmatpush1.bf16.msra.mxu0 %v4536
    %4748 = vmatprep.subr.bf16.mxu0 0
    %4749 = vmatpush1.bf16.msra.mxu0 %v4537
    %4750 = vmatprep.subr.bf16.mxu0 0
    %4751 = vmatpush1.bf16.msra.mxu0 %v4538
    %4752 = vmatprep.subr.bf16.mxu0 0
    %4753 = vmatpush1.bf16.msra.mxu0 %v4539
    %4754 = vmatprep.subr.bf16.mxu0 0
    %4755 = vmatpush1.bf16.msra.mxu0 %v4540
    %4756 = vmatprep.subr.bf16.mxu0 0
    %4757 = vmatpush1.bf16.msra.mxu0 %v4541
    %4758 = vmatprep.subr.bf16.mxu0 0
    %4759 = vmatpush1.bf16.msra.mxu0 %v4542
    %4760 = vmatprep.subr.bf16.mxu0 0
    %4761 = vmatpush1.bf16.msra.mxu0 %v4543
    %4762 = vmatprep.subr.bf16.mxu0 0
    %4763 = vmatpush1.bf16.msra.mxu0 %v4544
    %4764 = vmatprep.subr.bf16.mxu0 0
    %4765 = vmatpush1.bf16.msra.mxu0 %v4545
    %4766 = vmatprep.subr.bf16.mxu0 0
    %4767 = vmatpush1.bf16.msra.mxu0 %v4546
    %4768 = vmatprep.subr.bf16.mxu0 0
    %4769 = vmatpush1.bf16.msra.mxu0 %v4547
    %4770 = vmatprep.subr.bf16.mxu0 0
    %4771 = vmatpush1.bf16.msra.mxu0 %v4548
    %4772 = vmatprep.subr.bf16.mxu0 0
    %4773 = vmatpush1.bf16.msra.mxu0 %v4549
    %4774 = vmatprep.mubr.bf16.mxu0 %v4010
    %4775 = vmatmul.mubr.bf16.gmra.mrb[0].mxu0 %v4009
    %v4776 = vpop.f32.mrb[0].mxu0
    %v4777 = vadd.f32 %v4737, %v4776
    %v4778 = vpop.f32.mrb[0].mxu0
    %v4779 = vpop.f32.mrb[0].mxu0
    %v4780 = vpop.f32.mrb[0].mxu0
    %4781 = vdwg.mxu0
    %4782 = vmatprep.subr.bf16.mxu0 0
    %4783 = vmatpush1.bf16.msra.mxu0 %v4550
    %4784 = vmatprep.subr.bf16.mxu0 0
    %4785 = vmatpush1.bf16.msra.mxu0 %v4551
    %4786 = vmatprep.subr.bf16.mxu0 0
    %4787 = vmatpush1.bf16.msra.mxu0 %v4552
    %4788 = vmatprep.subr.bf16.mxu0 0
    %4789 = vmatpush1.bf16.msra.mxu0 %v4553
    %4790 = vmatprep.subr.bf16.mxu0 0
    %4791 = vmatpush1.bf16.msra.mxu0 %v4554
    %4792 = vmatprep.subr.bf16.mxu0 0
    %4793 = vmatpush1.bf16.msra.mxu0 %v4555
    %4794 = vmatprep.subr.bf16.mxu0 0
    %4795 = vmatpush1.bf16.msra.mxu0 %v4556
    %4796 = vmatprep.subr.bf16.mxu0 0
    %4797 = vmatpush1.bf16.msra.mxu0 %v4557
    %4798 = vmatprep.subr.bf16.mxu0 0
    %4799 = vmatpush1.bf16.msra.mxu0 %v4558
    %4800 = vmatprep.subr.bf16.mxu0 0
    %4801 = vmatpush1.bf16.msra.mxu0 %v4559
    %4802 = vmatprep.subr.bf16.mxu0 0
    %4803 = vmatpush1.bf16.msra.mxu0 %v4560
    %4804 = vmatprep.subr.bf16.mxu0 0
    %4805 = vmatpush1.bf16.msra.mxu0 %v4561
    %4806 = vmatprep.subr.bf16.mxu0 0
    %4807 = vmatpush1.bf16.msra.mxu0 %v4562
    %4808 = vmatprep.subr.bf16.mxu0 0
    %4809 = vmatpush1.bf16.msra.mxu0 %v4563
    %4810 = vmatprep.subr.bf16.mxu0 0
    %4811 = vmatpush1.bf16.msra.mxu0 %v4564
    %4812 = vmatprep.subr.bf16.mxu0 0
    %4813 = vmatpush1.bf16.msra.mxu0 %v4565
    %4814 = vmatprep.mubr.bf16.mxu0 %v4012
    %4815 = vmatmul.mubr.bf16.gmra.mrb[0].mxu0 %v4011
    %v4816 = vpop.f32.mrb[0].mxu0
    %v4817 = vadd.f32 %v4777, %v4816
    %v4818 = vpop.f32.mrb[0].mxu0
    %v4819 = vpop.f32.mrb[0].mxu0
    %v4820 = vpop.f32.mrb[0].mxu0
    %4821 = vdwg.mxu0
    %4822 = vmatprep.subr.bf16.mxu0 0
    %4823 = vmatpush1.bf16.msra.mxu0 %v4566
    %4824 = vmatprep.subr.bf16.mxu0 0
    %4825 = vmatpush1.bf16.msra.mxu0 %v4567
    %4826 = vmatprep.subr.bf16.mxu0 0
    %4827 = vmatpush1.bf16.msra.mxu0 %v4568
    %4828 = vmatprep.subr.bf16.mxu0 0
    %4829 = vmatpush1.bf16.msra.mxu0 %v4569
    %4830 = vmatprep.subr.bf16.mxu0 0
    %4831 = vmatpush1.bf16.msra.mxu0 %v4570
    %4832 = vmatprep.subr.bf16.mxu0 0
    %4833 = vmatpush1.bf16.msra.mxu0 %v4571
    %4834 = vmatprep.subr.bf16.mxu0 0
    %4835 = vmatpush1.bf16.msra.mxu0 %v4572
    %4836 = vmatprep.subr.bf16.mxu0 0
    %4837 = vmatpush1.bf16.msra.mxu0 %v4573
    %4838 = vmatprep.subr.bf16.mxu0 0
    %4839 = vmatpush1.bf16.msra.mxu0 %v4574
    %4840 = vmatprep.subr.bf16.mxu0 0
    %4841 = vmatpush1.bf16.msra.mxu0 %v4575
    %4842 = vmatprep.subr.bf16.mxu0 0
    %4843 = vmatpush1.bf16.msra.mxu0 %v4576
    %4844 = vmatprep.subr.bf16.mxu0 0
    %4845 = vmatpush1.bf16.msra.mxu0 %v4577
    %4846 = vmatprep.subr.bf16.mxu0 0
    %4847 = vmatpush1.bf16.msra.mxu0 %v4578
    %4848 = vmatprep.subr.bf16.mxu0 0
    %4849 = vmatpush1.bf16.msra.mxu0 %v4579
    %4850 = vmatprep.subr.bf16.mxu0 0
    %4851 = vmatpush1.bf16.msra.mxu0 %v4580
    %4852 = vmatprep.subr.bf16.mxu0 0
    %4853 = vmatpush1.bf16.msra.mxu0 %v4581
    %4854 = vmatprep.mubr.bf16.mxu0 %v4014
    %4855 = vmatmul.mubr.bf16.gmra.mrb[0].mxu0 %v4013
    %v4856 = vpop.f32.mrb[0].mxu0
    %v4857 = vadd.f32 %v4817, %v4856
    %v4858 = vpop.f32.mrb[0].mxu0
    %v4859 = vpop.f32.mrb[0].mxu0
    %v4860 = vpop.f32.mrb[0].mxu0
    %4861 = vdwg.mxu0
    %vm4862 = vcmask 433152
    %4863 = vst.msk [vmem:[%s6] sm:$0xff] %vm4862, %v4857
    // Predicated region
    $region30: #{card_classifier_forward.1} parent=1 // pred_check
      _
    $region31: #{card_classifier_forward.1} parent=1 // pred_check_branch
      %4865 = sbr.rel (0) target = $region33
    $region32: #{card_classifier_forward.1} parent=1 // pred_region
      _
    $region33: #{card_classifier_forward.1} parent=1 // pred_fallthru
      _
    // Predicated region
    $region34: #{card_classifier_forward.1} parent=1 // pred_check
      _
    $region35: #{card_classifier_forward.1} parent=1 // pred_check_branch
      %4867 = sbr.rel (0) target = $region37
    $region36: #{card_classifier_forward.1} parent=1 // pred_region
      _
    $region37: #{card_classifier_forward.1} parent=1 // pred_fallthru
      _
    %4868 = vsyncpa [#allocation3], 1

</llo_original>
